<compile_context>
chip_gen: v6e
topology: v6e:2x2x1
jax: 0.10.0
libtpu: 0.0.40
codegen_flags: <defaults>
</compile_context>

<pallas_src>
import functools

import jax
import jax.numpy as jnp
from jax import lax
from jax.experimental import pallas as pl
from jax.experimental.pallas import tpu as pltpu


# --------------------------------------------------------------------------
# Fused attention kernel (block_b batch elements per grid step)
# --------------------------------------------------------------------------
def _attention_kernel(q_ref, k_ref, v_ref,
                      ln_g_ref, ln_b_ref, w1_ref, b1_ref, w2_ref, b2_ref,
                      mw1_ref, mb1_ref, mw2_ref, mb2_ref,
                      out_ref,
                      qs_ref, ks_ref, vs_ref, xattn_ref,
                      *, num_heads, head_ch, inv_scale, block_b, use_bf16_exp):
    """q/k/v/out refs are (block_b, C, N) channel-major blocks."""
    f32, bf16 = jnp.float32, jnp.bfloat16
    C = num_heads * head_ch
    N = q_ref.shape[-1]

    def leaky(x):
        return jnp.where(x >= 0.0, x, 0.01 * x)

    def mm(w, x):                                   # bf16 MXU, f32 accumulate
        return jnp.dot(w, x.astype(bf16), preferred_element_type=f32)

    def branch(x, i):                               # LN -> Lin -> leaky -> Lin, (C, N)
        mu = jnp.mean(x, axis=0, keepdims=True)
        var = jnp.mean(jnp.square(x - mu), axis=0, keepdims=True)
        h = (x - mu) * lax.rsqrt(var + 1e-5) * ln_g_ref[i] + ln_b_ref[i]
        h = leaky(mm(w1_ref[i], h) + b1_ref[i])     # (2C, N)
        return mm(w2_ref[i], h) + b2_ref[i]         # (C, N)

    def mlp(x, i):                                  # Lin -> leaky -> Lin, (C, N)
        h = leaky(mm(mw1_ref[i], x) + mb1_ref[i])
        return mm(mw2_ref[i], h) + mb2_ref[i]

    def process(b):
        q_p = branch(q_ref[b], 0) * inv_scale       # scale folded into q
        k_p = branch(k_ref[b], 1)
        v_p = branch(v_ref[b], 2)                   # kept f32 for the residual

        # Stage q/k/v as (num_heads, head_ch, N): sublane-aligned, no-op reshape.
        qs_ref[...] = q_p.reshape(num_heads, head_ch, N)
        ks_ref[...] = k_p.reshape(num_heads, head_ch, N)
        vs_ref[...] = v_p.reshape(num_heads, head_ch, N)

        def head_body(h, carry):
            q_h = qs_ref[h].astype(bf16)            # (hc, N)
            k_h = ks_ref[h].astype(bf16)
            v_h = vs_ref[h].astype(bf16)
            # s[m, n] = sum_d k_h[d, m] * q_h[d, n]  ->  (N_k, N_q)
            s = lax.dot_general(k_h, q_h, (((0,), (0,)), ((), ())),
                                preferred_element_type=f32)
            m = jnp.max(s, axis=0, keepdims=True)   # (1, N_q) f32
            z = s - m
            if use_bf16_exp:                        # v6e/v7x: bf16 EUP ~2x f32
                p = jnp.exp(z.astype(bf16))
                l = jnp.sum(p.astype(f32), axis=0, keepdims=True)
            else:                                   # v5e: no bf16 EUP/VPU
                p_f32 = jnp.exp(z)
                l = jnp.sum(p_f32, axis=0, keepdims=True)
                p = p_f32.astype(bf16)
            o_h = jnp.dot(v_h, p, preferred_element_type=f32)   # (hc, N_q)
            # Deferred softmax normalization on the small per-head output.
            xattn_ref[h] = o_h * pl.reciprocal(l, approx=True)
            return carry

        lax.fori_loop(0, num_heads, head_body, 0, unroll=True)

        x_attn = xattn_ref[...].reshape(C, N)       # head merge = layout no-op
        rs1 = v_p + mlp(x_attn, 0)
        rs2 = rs1 + mlp(rs1, 1)
        out_ref[b] = rs2                            # lane-dense (C, N) store

    for b in range(block_b):                        # block_b is small and static
        process(b)


# --------------------------------------------------------------------------
# Wrapper
# --------------------------------------------------------------------------
def _use_bf16_eup():
    """bf16 exp only where the EUP supports it (v6e / v7x)."""
    try:
        kind = jax.devices()[0].device_kind.lower()
    except Exception:
        return False
    return ("v6" in kind) or ("v7" in kind)


@functools.partial(jax.jit,
                   static_argnames=("head_channel", "block_b", "use_bf16_exp"))
def attention_forward(weights, q, k, v, *, head_channel, block_b=None,
                      use_bf16_exp=False):
    """q, k, v: (B, C, H, W) NCHW (torch layout) -> (B, C, H, W)."""
    B, C, H, W = q.shape
    N = H * W
    assert C % head_channel == 0
    num_heads = C // head_channel
    inv_scale = 1.0 / float(head_channel) ** 0.5

    if block_b is None:
        # Take multi-batch blocks only when the grid keeps >= 2 steps, so DMA
        # pipelining / megacore sharding is preserved.
        block_b = 1
        for cand in (8, 4, 2):
            if B % cand == 0 and B // cand >= 2:
                block_b = cand
                break
    assert B % block_b == 0

    bf16 = jnp.bfloat16
    # Channel-major (left-multiply) weight layout, prepared outside the kernel.
    ln_g = weights["ln_g"].reshape(3, C, 1)
    ln_b = weights["ln_b"].reshape(3, C, 1)
    w1 = jnp.swapaxes(weights["w1"], 1, 2).astype(bf16)     # (3, 2C, C)
    b1 = weights["b1"].reshape(3, 2 * C, 1)
    w2 = jnp.swapaxes(weights["w2"], 1, 2).astype(bf16)     # (3, C, 2C)
    b2 = weights["b2"].reshape(3, C, 1)
    mw1 = jnp.swapaxes(weights["mw1"], 1, 2).astype(bf16)   # (2, 2C, C)
    mb1 = weights["mb1"].reshape(2, 2 * C, 1)
    mw2 = jnp.swapaxes(weights["mw2"], 1, 2).astype(bf16)   # (2, C, 2C)
    mb2 = weights["mb2"].reshape(2, C, 1)

    # NCHW -> (B, C, N): free reshape, channel-major kept end-to-end.
    q_cn = q.reshape(B, C, N)
    k_cn = k.reshape(B, C, N)
    v_cn = v.reshape(B, C, N)

    data_spec = pl.BlockSpec((block_b, C, N), lambda i: (i, 0, 0))
    w_arrays = [ln_g, ln_b, w1, b1, w2, b2, mw1, mb1, mw2, mb2]
    w_specs = [pl.BlockSpec(w.shape, lambda i: (0, 0, 0)) for w in w_arrays]

    kernel = functools.partial(
        _attention_kernel, num_heads=num_heads, head_ch=head_channel,
        inv_scale=inv_scale, block_b=block_b, use_bf16_exp=use_bf16_exp)

    out_cn = pl.pallas_call(
        kernel,
        grid=(B // block_b,),
        in_specs=[data_spec, data_spec, data_spec] + w_specs,
        out_specs=pl.BlockSpec((block_b, C, N), lambda i: (i, 0, 0)),
        out_shape=jax.ShapeDtypeStruct((B, C, N), jnp.float32),
        scratch_shapes=[
            pltpu.VMEM((num_heads, head_channel, N), jnp.float32),   # q heads
            pltpu.VMEM((num_heads, head_channel, N), jnp.float32),   # k heads
            pltpu.VMEM((num_heads, head_channel, N), jnp.float32),   # v heads
            pltpu.VMEM((num_heads, head_channel, N), jnp.float32),   # attn out
        ],
        compiler_params=pltpu.CompilerParams(
            dimension_semantics=("parallel",)),
    )(q_cn, k_cn, v_cn, *w_arrays)

    return out_cn.reshape(B, C, H, W)


# --------------------------------------------------------------------------
# Parameters (deterministic, synthetic) and plain-JAX reference
# --------------------------------------------------------------------------
def make_params(key, channel, head_channel):
    C = channel
    keys = iter(jax.random.split(key, 32))

    def lin(cin, cout, scale=0.05):
        w = scale * jax.random.normal(next(keys), (cin, cout), jnp.float32)
        b = scale * jax.random.normal(next(keys), (cout,), jnp.float32)
        return w, b

    b_w1, b_b1, b_w2, b_b2 = [], [], [], []
    for _ in range(3):                                    # q, k, v branches
        w1, b1 = lin(C, 2 * C)
        w2, b2 = lin(2 * C, C)
        b_w1.append(w1); b_b1.append(b1); b_w2.append(w2); b_b2.append(b2)

    m_w1, m_b1, m_w2, m_b2 = [], [], [], []
    for _ in range(2):                                    # mlp_1, mlp_2
        w1, b1 = lin(C, 2 * C)
        w2, b2 = lin(2 * C, C)
        m_w1.append(w1); m_b1.append(b1); m_w2.append(w2); m_b2.append(b2)

    ln_g = 1.0 + 0.1 * jax.random.normal(next(keys), (3, 1, C), jnp.float32)
    ln_b = 0.1 * jax.random.normal(next(keys), (3, 1, C), jnp.float32)

    return {
        "ln_g": ln_g, "ln_b": ln_b,
        "w1": jnp.stack(b_w1), "b1": jnp.stack(b_b1)[:, None, :],
        "w2": jnp.stack(b_w2), "b2": jnp.stack(b_b2)[:, None, :],
        "mw1": jnp.stack(m_w1), "mb1": jnp.stack(m_b1)[:, None, :],
        "mw2": jnp.stack(m_w2), "mb2": jnp.stack(m_b2)[:, None, :],
    }


def attention_reference(weights, q, k, v, head_channel):
    """Plain-JAX reference with the exact torch Attention.forward semantics."""
    B, C, H, W = q.shape
    N = H * W
    hc = head_channel
    nh = C // hc
    scale = float(hc) ** 0.5

    def tok(x):                                           # NCHW -> (B, N, C)
        return x.transpose(0, 2, 3, 1).reshape(B, N, C)

    def branch(x, i):
        g, be = weights["ln_g"][i, 0], weights["ln_b"][i, 0]
        mu = x.mean(-1, keepdims=True)
        var = ((x - mu) ** 2).mean(-1, keepdims=True)
        h = (x - mu) / jnp.sqrt(var + 1e-5) * g + be
        h = h @ weights["w1"][i] + weights["b1"][i, 0]
        h = jnp.where(h >= 0, h, 0.01 * h)
        return h @ weights["w2"][i] + weights["b2"][i, 0]

    def mlp(x, i):
        h = x @ weights["mw1"][i] + weights["mb1"][i, 0]
        h = jnp.where(h >= 0, h, 0.01 * h)
        return h @ weights["mw2"][i] + weights["mb2"][i, 0]

    qp, kp, vp = branch(tok(q), 0), branch(tok(k), 1), branch(tok(v), 2)
    qh = qp.reshape(B, N, nh, hc).transpose(0, 2, 1, 3)
    kh = kp.reshape(B, N, nh, hc).transpose(0, 2, 1, 3)
    vh = vp.reshape(B, N, nh, hc).transpose(0, 2, 1, 3)
    s = jnp.einsum("bhnd,bhmd->bhnm", qh, kh) / scale
    p = jax.nn.softmax(s, axis=-1)
    x = jnp.einsum("bhnm,bhmd->bhnd", p, vh).transpose(0, 2, 1, 3).reshape(B, N, C)
    rs1 = vp + mlp(x, 0)
    rs2 = rs1 + mlp(rs1, 1)
    return rs2.transpose(0, 2, 1).reshape(B, C, H, W)


# --------------------------------------------------------------------------
if __name__ == "__main__":
    B, C, H, W = 2, 32, 16, 16
    head_channel = 8                                      # num_heads = 4

    key = jax.random.PRNGKey(0)
    kp, kq, kk, kv = jax.random.split(key, 4)
    weights = make_params(kp, C, head_channel)
    q = jax.random.normal(kq, (B, C, H, W), jnp.float32)
    k = jax.random.normal(kk, (B, C, H, W), jnp.float32)
    v = jax.random.normal(kv, (B, C, H, W), jnp.float32)

    out = attention_forward(weights, q, k, v, head_channel=head_channel,
                            use_bf16_exp=_use_bf16_eup())
    out = jax.block_until_ready(out)
    assert out.shape == (B, C, H, W), out.shape
    assert bool(jnp.all(jnp.isfinite(out)))

    ref = attention_reference(weights, q, k, v, head_channel)
    max_err = float(jnp.max(jnp.abs(out - ref)))
    assert max_err < 3e-2, f"max abs error vs reference: {max_err}"
    print("KERNEL_OK")
</pallas_src>

<mosaic_0001>
module attributes {stable_mosaic.version = 11 : i64} {
  func.func @_attention_kernel(%arg0: i32, %arg1: memref<1x32x256xf32, #tpu.memory_space<vmem>>, %arg2: memref<1x32x256xf32, #tpu.memory_space<vmem>>, %arg3: memref<1x32x256xf32, #tpu.memory_space<vmem>>, %arg4: memref<3x32x1xf32, #tpu.memory_space<vmem>>, %arg5: memref<3x32x1xf32, #tpu.memory_space<vmem>>, %arg6: memref<3x64x32xbf16, #tpu.memory_space<vmem>>, %arg7: memref<3x64x1xf32, #tpu.memory_space<vmem>>, %arg8: memref<3x32x64xbf16, #tpu.memory_space<vmem>>, %arg9: memref<3x32x1xf32, #tpu.memory_space<vmem>>, %arg10: memref<2x64x32xbf16, #tpu.memory_space<vmem>>, %arg11: memref<2x64x1xf32, #tpu.memory_space<vmem>>, %arg12: memref<2x32x64xbf16, #tpu.memory_space<vmem>>, %arg13: memref<2x32x1xf32, #tpu.memory_space<vmem>>, %arg14: memref<1x32x256xf32, #tpu.memory_space<vmem>>, %arg15: memref<4x8x256xf32, #tpu.memory_space<vmem>>, %arg16: memref<4x8x256xf32, #tpu.memory_space<vmem>>, %arg17: memref<4x8x256xf32, #tpu.memory_space<vmem>>, %arg18: memref<4x8x256xf32, #tpu.memory_space<vmem>>) attributes {dimension_semantics = [#tpu.dimension_semantics<parallel>], iteration_bounds = array<i64: 2>, scalar_prefetch = 0 : i64, scratch_operands = 4 : i64, tpu.core_type = #tpu.core_type<tc>, window_params = [{transform_indices = @transform_0, window_bounds = array<i64: 1, 32, 256>}, {transform_indices = @transform_1, window_bounds = array<i64: 1, 32, 256>}, {transform_indices = @transform_2, window_bounds = array<i64: 1, 32, 256>}, {pipeline_mode = #tpu.pipeline_mode<synchronous>, transform_indices = @transform_3, window_bounds = array<i64: 3, 32, 1>}, {pipeline_mode = #tpu.pipeline_mode<synchronous>, transform_indices = @transform_4, window_bounds = array<i64: 3, 32, 1>}, {pipeline_mode = #tpu.pipeline_mode<synchronous>, transform_indices = @transform_5, window_bounds = array<i64: 3, 64, 32>}, {pipeline_mode = #tpu.pipeline_mode<synchronous>, transform_indices = @transform_6, window_bounds = array<i64: 3, 64, 1>}, {pipeline_mode = #tpu.pipeline_mode<synchronous>, transform_indices = @transform_7, window_bounds = array<i64: 3, 32, 64>}, {pipeline_mode = #tpu.pipeline_mode<synchronous>, transform_indices = @transform_8, window_bounds = array<i64: 3, 32, 1>}, {pipeline_mode = #tpu.pipeline_mode<synchronous>, transform_indices = @transform_9, window_bounds = array<i64: 2, 64, 32>}, {pipeline_mode = #tpu.pipeline_mode<synchronous>, transform_indices = @transform_10, window_bounds = array<i64: 2, 64, 1>}, {pipeline_mode = #tpu.pipeline_mode<synchronous>, transform_indices = @transform_11, window_bounds = array<i64: 2, 32, 64>}, {pipeline_mode = #tpu.pipeline_mode<synchronous>, transform_indices = @transform_12, window_bounds = array<i64: 2, 32, 1>}, {transform_indices = @transform_13, window_bounds = array<i64: 1, 32, 256>}]} {
    %c0 = arith.constant 0 : index
    %c0_0 = arith.constant 0 : index
    %c0_1 = arith.constant 0 : index
    %0 = vector.load %arg1[%c0, %c0_0, %c0_1] : memref<1x32x256xf32, #tpu.memory_space<vmem>>, vector<1x32x256xf32>
    %1 = vector.shape_cast %0 : vector<1x32x256xf32> to vector<32x256xf32>
    %cst = arith.constant dense<0.000000e+00> : vector<256xf32>
    %2 = vector.multi_reduction <add>, %1, %cst [0] : vector<32x256xf32> to vector<256xf32>
    %3 = vector.shape_cast %2 : vector<256xf32> to vector<1x256xf32>
    %cst_2 = arith.constant 3.200000e+01 : f32
    %4 = vector.broadcast %cst_2 : f32 to vector<1x256xf32>
    %5 = arith.divf %3, %4 : vector<1x256xf32>
    %6 = vector.broadcast %5 : vector<1x256xf32> to vector<32x256xf32>
    %7 = arith.subf %1, %6 : vector<32x256xf32>
    %8 = arith.mulf %7, %7 : vector<32x256xf32>
    %cst_3 = arith.constant dense<0.000000e+00> : vector<256xf32>
    %9 = vector.multi_reduction <add>, %8, %cst_3 [0] : vector<32x256xf32> to vector<256xf32>
    %10 = vector.shape_cast %9 : vector<256xf32> to vector<1x256xf32>
    %cst_4 = arith.constant 3.200000e+01 : f32
    %11 = vector.broadcast %cst_4 : f32 to vector<1x256xf32>
    %12 = arith.divf %10, %11 : vector<1x256xf32>
    %13 = vector.broadcast %5 : vector<1x256xf32> to vector<32x256xf32>
    %14 = arith.subf %1, %13 : vector<32x256xf32>
    %cst_5 = arith.constant 9.99999974E-6 : f32
    %15 = vector.broadcast %cst_5 : f32 to vector<1x256xf32>
    %16 = arith.addf %12, %15 : vector<1x256xf32>
    %17 = math.rsqrt %16 : vector<1x256xf32>
    %18 = vector.broadcast %17 : vector<1x256xf32> to vector<32x256xf32>
    %19 = arith.mulf %14, %18 : vector<32x256xf32>
    %c0_6 = arith.constant 0 : index
    %c0_7 = arith.constant 0 : index
    %c0_8 = arith.constant 0 : index
    %20 = vector.load %arg4[%c0_6, %c0_7, %c0_8] : memref<3x32x1xf32, #tpu.memory_space<vmem>>, vector<1x32x1xf32>
    %21 = vector.shape_cast %20 : vector<1x32x1xf32> to vector<32x1xf32>
    %22 = vector.broadcast %21 : vector<32x1xf32> to vector<32x256xf32>
    %23 = arith.mulf %19, %22 : vector<32x256xf32>
    %c0_9 = arith.constant 0 : index
    %c0_10 = arith.constant 0 : index
    %c0_11 = arith.constant 0 : index
    %24 = vector.load %arg5[%c0_9, %c0_10, %c0_11] : memref<3x32x1xf32, #tpu.memory_space<vmem>>, vector<1x32x1xf32>
    %25 = vector.shape_cast %24 : vector<1x32x1xf32> to vector<32x1xf32>
    %26 = vector.broadcast %25 : vector<32x1xf32> to vector<32x256xf32>
    %27 = arith.addf %23, %26 : vector<32x256xf32>
    %c0_12 = arith.constant 0 : index
    %c0_13 = arith.constant 0 : index
    %c0_14 = arith.constant 0 : index
    %28 = vector.load %arg6[%c0_12, %c0_13, %c0_14] : memref<3x64x32xbf16, #tpu.memory_space<vmem>>, vector<1x64x32xbf16>
    %29 = vector.shape_cast %28 : vector<1x64x32xbf16> to vector<64x32xbf16>
    %30 = arith.truncf %27 : vector<32x256xf32> to vector<32x256xbf16>
    %cst_15 = arith.constant dense<0.000000e+00> : vector<64x256xf32>
    %31 = tpu.matmul %29, %30, %cst_15 {dimension_numbers = #tpu.dot_dimension_numbers<[1], [0], [0], [1], [0, 0, 1, 1], [], []>} : vector<64x32xbf16>, vector<32x256xbf16>, vector<64x256xf32> -> vector<64x256xf32>
    %c0_16 = arith.constant 0 : index
    %c0_17 = arith.constant 0 : index
    %c0_18 = arith.constant 0 : index
    %32 = vector.load %arg7[%c0_16, %c0_17, %c0_18] : memref<3x64x1xf32, #tpu.memory_space<vmem>>, vector<1x64x1xf32>
    %33 = vector.shape_cast %32 : vector<1x64x1xf32> to vector<64x1xf32>
    %34 = vector.broadcast %33 : vector<64x1xf32> to vector<64x256xf32>
    %35 = arith.addf %31, %34 : vector<64x256xf32>
    %cst_19 = arith.constant 0.000000e+00 : f32
    %36 = vector.broadcast %cst_19 : f32 to vector<64x256xf32>
    %37 = arith.cmpf oge, %35, %36 : vector<64x256xf32>
    %cst_20 = arith.constant 0.00999999977 : f32
    %38 = vector.broadcast %cst_20 : f32 to vector<64x256xf32>
    %39 = arith.mulf %38, %35 : vector<64x256xf32>
    %40 = arith.select %37, %35, %39 : vector<64x256xi1>, vector<64x256xf32>
    %c0_21 = arith.constant 0 : index
    %c0_22 = arith.constant 0 : index
    %c0_23 = arith.constant 0 : index
    %41 = vector.load %arg8[%c0_21, %c0_22, %c0_23] : memref<3x32x64xbf16, #tpu.memory_space<vmem>>, vector<1x32x64xbf16>
    %42 = vector.shape_cast %41 : vector<1x32x64xbf16> to vector<32x64xbf16>
    %43 = arith.truncf %40 : vector<64x256xf32> to vector<64x256xbf16>
    %cst_24 = arith.constant dense<0.000000e+00> : vector<32x256xf32>
    %44 = tpu.matmul %42, %43, %cst_24 {dimension_numbers = #tpu.dot_dimension_numbers<[1], [0], [0], [1], [0, 0, 1, 1], [], []>} : vector<32x64xbf16>, vector<64x256xbf16>, vector<32x256xf32> -> vector<32x256xf32>
    %c0_25 = arith.constant 0 : index
    %c0_26 = arith.constant 0 : index
    %c0_27 = arith.constant 0 : index
    %45 = vector.load %arg9[%c0_25, %c0_26, %c0_27] : memref<3x32x1xf32, #tpu.memory_space<vmem>>, vector<1x32x1xf32>
    %46 = vector.shape_cast %45 : vector<1x32x1xf32> to vector<32x1xf32>
    %47 = vector.broadcast %46 : vector<32x1xf32> to vector<32x256xf32>
    %48 = arith.addf %44, %47 : vector<32x256xf32>
    %cst_28 = arith.constant 0.353553385 : f32
    %49 = vector.broadcast %cst_28 : f32 to vector<32x256xf32>
    %50 = arith.mulf %48, %49 : vector<32x256xf32>
    %c0_29 = arith.constant 0 : index
    %c0_30 = arith.constant 0 : index
    %c0_31 = arith.constant 0 : index
    %51 = vector.load %arg2[%c0_29, %c0_30, %c0_31] : memref<1x32x256xf32, #tpu.memory_space<vmem>>, vector<1x32x256xf32>
    %52 = vector.shape_cast %51 : vector<1x32x256xf32> to vector<32x256xf32>
    %cst_32 = arith.constant dense<0.000000e+00> : vector<256xf32>
    %53 = vector.multi_reduction <add>, %52, %cst_32 [0] : vector<32x256xf32> to vector<256xf32>
    %54 = vector.shape_cast %53 : vector<256xf32> to vector<1x256xf32>
    %cst_33 = arith.constant 3.200000e+01 : f32
    %55 = vector.broadcast %cst_33 : f32 to vector<1x256xf32>
    %56 = arith.divf %54, %55 : vector<1x256xf32>
    %57 = vector.broadcast %56 : vector<1x256xf32> to vector<32x256xf32>
    %58 = arith.subf %52, %57 : vector<32x256xf32>
    %59 = arith.mulf %58, %58 : vector<32x256xf32>
    %cst_34 = arith.constant dense<0.000000e+00> : vector<256xf32>
    %60 = vector.multi_reduction <add>, %59, %cst_34 [0] : vector<32x256xf32> to vector<256xf32>
    %61 = vector.shape_cast %60 : vector<256xf32> to vector<1x256xf32>
    %cst_35 = arith.constant 3.200000e+01 : f32
    %62 = vector.broadcast %cst_35 : f32 to vector<1x256xf32>
    %63 = arith.divf %61, %62 : vector<1x256xf32>
    %64 = vector.broadcast %56 : vector<1x256xf32> to vector<32x256xf32>
    %65 = arith.subf %52, %64 : vector<32x256xf32>
    %cst_36 = arith.constant 9.99999974E-6 : f32
    %66 = vector.broadcast %cst_36 : f32 to vector<1x256xf32>
    %67 = arith.addf %63, %66 : vector<1x256xf32>
    %68 = math.rsqrt %67 : vector<1x256xf32>
    %69 = vector.broadcast %68 : vector<1x256xf32> to vector<32x256xf32>
    %70 = arith.mulf %65, %69 : vector<32x256xf32>
    %c1 = arith.constant 1 : index
    %c0_37 = arith.constant 0 : index
    %c0_38 = arith.constant 0 : index
    %71 = vector.load %arg4[%c1, %c0_37, %c0_38] : memref<3x32x1xf32, #tpu.memory_space<vmem>>, vector<1x32x1xf32>
    %72 = vector.shape_cast %71 : vector<1x32x1xf32> to vector<32x1xf32>
    %73 = vector.broadcast %72 : vector<32x1xf32> to vector<32x256xf32>
    %74 = arith.mulf %70, %73 : vector<32x256xf32>
    %c1_39 = arith.constant 1 : index
    %c0_40 = arith.constant 0 : index
    %c0_41 = arith.constant 0 : index
    %75 = vector.load %arg5[%c1_39, %c0_40, %c0_41] : memref<3x32x1xf32, #tpu.memory_space<vmem>>, vector<1x32x1xf32>
    %76 = vector.shape_cast %75 : vector<1x32x1xf32> to vector<32x1xf32>
    %77 = vector.broadcast %76 : vector<32x1xf32> to vector<32x256xf32>
    %78 = arith.addf %74, %77 : vector<32x256xf32>
    %c1_42 = arith.constant 1 : index
    %c0_43 = arith.constant 0 : index
    %c0_44 = arith.constant 0 : index
    %79 = vector.load %arg6[%c1_42, %c0_43, %c0_44] : memref<3x64x32xbf16, #tpu.memory_space<vmem>>, vector<1x64x32xbf16>
    %80 = vector.shape_cast %79 : vector<1x64x32xbf16> to vector<64x32xbf16>
    %81 = arith.truncf %78 : vector<32x256xf32> to vector<32x256xbf16>
    %cst_45 = arith.constant dense<0.000000e+00> : vector<64x256xf32>
    %82 = tpu.matmul %80, %81, %cst_45 {dimension_numbers = #tpu.dot_dimension_numbers<[1], [0], [0], [1], [0, 0, 1, 1], [], []>} : vector<64x32xbf16>, vector<32x256xbf16>, vector<64x256xf32> -> vector<64x256xf32>
    %c1_46 = arith.constant 1 : index
    %c0_47 = arith.constant 0 : index
    %c0_48 = arith.constant 0 : index
    %83 = vector.load %arg7[%c1_46, %c0_47, %c0_48] : memref<3x64x1xf32, #tpu.memory_space<vmem>>, vector<1x64x1xf32>
    %84 = vector.shape_cast %83 : vector<1x64x1xf32> to vector<64x1xf32>
    %85 = vector.broadcast %84 : vector<64x1xf32> to vector<64x256xf32>
    %86 = arith.addf %82, %85 : vector<64x256xf32>
    %cst_49 = arith.constant 0.000000e+00 : f32
    %87 = vector.broadcast %cst_49 : f32 to vector<64x256xf32>
    %88 = arith.cmpf oge, %86, %87 : vector<64x256xf32>
    %cst_50 = arith.constant 0.00999999977 : f32
    %89 = vector.broadcast %cst_50 : f32 to vector<64x256xf32>
    %90 = arith.mulf %89, %86 : vector<64x256xf32>
    %91 = arith.select %88, %86, %90 : vector<64x256xi1>, vector<64x256xf32>
    %c1_51 = arith.constant 1 : index
    %c0_52 = arith.constant 0 : index
    %c0_53 = arith.constant 0 : index
    %92 = vector.load %arg8[%c1_51, %c0_52, %c0_53] : memref<3x32x64xbf16, #tpu.memory_space<vmem>>, vector<1x32x64xbf16>
    %93 = vector.shape_cast %92 : vector<1x32x64xbf16> to vector<32x64xbf16>
    %94 = arith.truncf %91 : vector<64x256xf32> to vector<64x256xbf16>
    %cst_54 = arith.constant dense<0.000000e+00> : vector<32x256xf32>
    %95 = tpu.matmul %93, %94, %cst_54 {dimension_numbers = #tpu.dot_dimension_numbers<[1], [0], [0], [1], [0, 0, 1, 1], [], []>} : vector<32x64xbf16>, vector<64x256xbf16>, vector<32x256xf32> -> vector<32x256xf32>
    %c1_55 = arith.constant 1 : index
    %c0_56 = arith.constant 0 : index
    %c0_57 = arith.constant 0 : index
    %96 = vector.load %arg9[%c1_55, %c0_56, %c0_57] : memref<3x32x1xf32, #tpu.memory_space<vmem>>, vector<1x32x1xf32>
    %97 = vector.shape_cast %96 : vector<1x32x1xf32> to vector<32x1xf32>
    %98 = vector.broadcast %97 : vector<32x1xf32> to vector<32x256xf32>
    %99 = arith.addf %95, %98 : vector<32x256xf32>
    %c0_58 = arith.constant 0 : index
    %c0_59 = arith.constant 0 : index
    %c0_60 = arith.constant 0 : index
    %100 = vector.load %arg3[%c0_58, %c0_59, %c0_60] : memref<1x32x256xf32, #tpu.memory_space<vmem>>, vector<1x32x256xf32>
    %101 = vector.shape_cast %100 : vector<1x32x256xf32> to vector<32x256xf32>
    %cst_61 = arith.constant dense<0.000000e+00> : vector<256xf32>
    %102 = vector.multi_reduction <add>, %101, %cst_61 [0] : vector<32x256xf32> to vector<256xf32>
    %103 = vector.shape_cast %102 : vector<256xf32> to vector<1x256xf32>
    %cst_62 = arith.constant 3.200000e+01 : f32
    %104 = vector.broadcast %cst_62 : f32 to vector<1x256xf32>
    %105 = arith.divf %103, %104 : vector<1x256xf32>
    %106 = vector.broadcast %105 : vector<1x256xf32> to vector<32x256xf32>
    %107 = arith.subf %101, %106 : vector<32x256xf32>
    %108 = arith.mulf %107, %107 : vector<32x256xf32>
    %cst_63 = arith.constant dense<0.000000e+00> : vector<256xf32>
    %109 = vector.multi_reduction <add>, %108, %cst_63 [0] : vector<32x256xf32> to vector<256xf32>
    %110 = vector.shape_cast %109 : vector<256xf32> to vector<1x256xf32>
    %cst_64 = arith.constant 3.200000e+01 : f32
    %111 = vector.broadcast %cst_64 : f32 to vector<1x256xf32>
    %112 = arith.divf %110, %111 : vector<1x256xf32>
    %113 = vector.broadcast %105 : vector<1x256xf32> to vector<32x256xf32>
    %114 = arith.subf %101, %113 : vector<32x256xf32>
    %cst_65 = arith.constant 9.99999974E-6 : f32
    %115 = vector.broadcast %cst_65 : f32 to vector<1x256xf32>
    %116 = arith.addf %112, %115 : vector<1x256xf32>
    %117 = math.rsqrt %116 : vector<1x256xf32>
    %118 = vector.broadcast %117 : vector<1x256xf32> to vector<32x256xf32>
    %119 = arith.mulf %114, %118 : vector<32x256xf32>
    %c2 = arith.constant 2 : index
    %c0_66 = arith.constant 0 : index
    %c0_67 = arith.constant 0 : index
    %120 = vector.load %arg4[%c2, %c0_66, %c0_67] : memref<3x32x1xf32, #tpu.memory_space<vmem>>, vector<1x32x1xf32>
    %121 = vector.shape_cast %120 : vector<1x32x1xf32> to vector<32x1xf32>
    %122 = vector.broadcast %121 : vector<32x1xf32> to vector<32x256xf32>
    %123 = arith.mulf %119, %122 : vector<32x256xf32>
    %c2_68 = arith.constant 2 : index
    %c0_69 = arith.constant 0 : index
    %c0_70 = arith.constant 0 : index
    %124 = vector.load %arg5[%c2_68, %c0_69, %c0_70] : memref<3x32x1xf32, #tpu.memory_space<vmem>>, vector<1x32x1xf32>
    %125 = vector.shape_cast %124 : vector<1x32x1xf32> to vector<32x1xf32>
    %126 = vector.broadcast %125 : vector<32x1xf32> to vector<32x256xf32>
    %127 = arith.addf %123, %126 : vector<32x256xf32>
    %c2_71 = arith.constant 2 : index
    %c0_72 = arith.constant 0 : index
    %c0_73 = arith.constant 0 : index
    %128 = vector.load %arg6[%c2_71, %c0_72, %c0_73] : memref<3x64x32xbf16, #tpu.memory_space<vmem>>, vector<1x64x32xbf16>
    %129 = vector.shape_cast %128 : vector<1x64x32xbf16> to vector<64x32xbf16>
    %130 = arith.truncf %127 : vector<32x256xf32> to vector<32x256xbf16>
    %cst_74 = arith.constant dense<0.000000e+00> : vector<64x256xf32>
    %131 = tpu.matmul %129, %130, %cst_74 {dimension_numbers = #tpu.dot_dimension_numbers<[1], [0], [0], [1], [0, 0, 1, 1], [], []>} : vector<64x32xbf16>, vector<32x256xbf16>, vector<64x256xf32> -> vector<64x256xf32>
    %c2_75 = arith.constant 2 : index
    %c0_76 = arith.constant 0 : index
    %c0_77 = arith.constant 0 : index
    %132 = vector.load %arg7[%c2_75, %c0_76, %c0_77] : memref<3x64x1xf32, #tpu.memory_space<vmem>>, vector<1x64x1xf32>
    %133 = vector.shape_cast %132 : vector<1x64x1xf32> to vector<64x1xf32>
    %134 = vector.broadcast %133 : vector<64x1xf32> to vector<64x256xf32>
    %135 = arith.addf %131, %134 : vector<64x256xf32>
    %cst_78 = arith.constant 0.000000e+00 : f32
    %136 = vector.broadcast %cst_78 : f32 to vector<64x256xf32>
    %137 = arith.cmpf oge, %135, %136 : vector<64x256xf32>
    %cst_79 = arith.constant 0.00999999977 : f32
    %138 = vector.broadcast %cst_79 : f32 to vector<64x256xf32>
    %139 = arith.mulf %138, %135 : vector<64x256xf32>
    %140 = arith.select %137, %135, %139 : vector<64x256xi1>, vector<64x256xf32>
    %c2_80 = arith.constant 2 : index
    %c0_81 = arith.constant 0 : index
    %c0_82 = arith.constant 0 : index
    %141 = vector.load %arg8[%c2_80, %c0_81, %c0_82] : memref<3x32x64xbf16, #tpu.memory_space<vmem>>, vector<1x32x64xbf16>
    %142 = vector.shape_cast %141 : vector<1x32x64xbf16> to vector<32x64xbf16>
    %143 = arith.truncf %140 : vector<64x256xf32> to vector<64x256xbf16>
    %cst_83 = arith.constant dense<0.000000e+00> : vector<32x256xf32>
    %144 = tpu.matmul %142, %143, %cst_83 {dimension_numbers = #tpu.dot_dimension_numbers<[1], [0], [0], [1], [0, 0, 1, 1], [], []>} : vector<32x64xbf16>, vector<64x256xbf16>, vector<32x256xf32> -> vector<32x256xf32>
    %c2_84 = arith.constant 2 : index
    %c0_85 = arith.constant 0 : index
    %c0_86 = arith.constant 0 : index
    %145 = vector.load %arg9[%c2_84, %c0_85, %c0_86] : memref<3x32x1xf32, #tpu.memory_space<vmem>>, vector<1x32x1xf32>
    %146 = vector.shape_cast %145 : vector<1x32x1xf32> to vector<32x1xf32>
    %147 = vector.broadcast %146 : vector<32x1xf32> to vector<32x256xf32>
    %148 = arith.addf %144, %147 : vector<32x256xf32>
    %149 = vector.shape_cast %50 : vector<32x256xf32> to vector<4x8x256xf32>
    %c0_87 = arith.constant 0 : index
    %c0_88 = arith.constant 0 : index
    %c0_89 = arith.constant 0 : index
    %150 = vector.load %arg15[%c0_87, %c0_88, %c0_89] : memref<4x8x256xf32, #tpu.memory_space<vmem>>, vector<4x8x256xf32>
    tpu.vector_store %arg15[%c0_87, %c0_88, %c0_89], %149 {strides = array<i32>} : memref<4x8x256xf32, #tpu.memory_space<vmem>>, vector<4x8x256xf32>,
    %151 = vector.shape_cast %99 : vector<32x256xf32> to vector<4x8x256xf32>
    %c0_90 = arith.constant 0 : index
    %c0_91 = arith.constant 0 : index
    %c0_92 = arith.constant 0 : index
    %152 = vector.load %arg16[%c0_90, %c0_91, %c0_92] : memref<4x8x256xf32, #tpu.memory_space<vmem>>, vector<4x8x256xf32>
    tpu.vector_store %arg16[%c0_90, %c0_91, %c0_92], %151 {strides = array<i32>} : memref<4x8x256xf32, #tpu.memory_space<vmem>>, vector<4x8x256xf32>,
    %153 = vector.shape_cast %148 : vector<32x256xf32> to vector<4x8x256xf32>
    %c0_93 = arith.constant 0 : index
    %c0_94 = arith.constant 0 : index
    %c0_95 = arith.constant 0 : index
    %154 = vector.load %arg17[%c0_93, %c0_94, %c0_95] : memref<4x8x256xf32, #tpu.memory_space<vmem>>, vector<4x8x256xf32>
    tpu.vector_store %arg17[%c0_93, %c0_94, %c0_95], %153 {strides = array<i32>} : memref<4x8x256xf32, #tpu.memory_space<vmem>>, vector<4x8x256xf32>,
    %c0_i32 = arith.constant 0 : i32
    %155 = arith.index_cast %c0_i32 : i32 to index
    %c0_96 = arith.constant 0 : index
    %c0_97 = arith.constant 0 : index
    %156 = vector.load %arg15[%155, %c0_96, %c0_97] : memref<4x8x256xf32, #tpu.memory_space<vmem>>, vector<1x8x256xf32>
    %157 = vector.shape_cast %156 : vector<1x8x256xf32> to vector<8x256xf32>
    %158 = arith.truncf %157 : vector<8x256xf32> to vector<8x256xbf16>
    %159 = arith.index_cast %c0_i32 : i32 to index
    %c0_98 = arith.constant 0 : index
    %c0_99 = arith.constant 0 : index
    %160 = vector.load %arg16[%159, %c0_98, %c0_99] : memref<4x8x256xf32, #tpu.memory_space<vmem>>, vector<1x8x256xf32>
    %161 = vector.shape_cast %160 : vector<1x8x256xf32> to vector<8x256xf32>
    %162 = arith.truncf %161 : vector<8x256xf32> to vector<8x256xbf16>
    %163 = arith.index_cast %c0_i32 : i32 to index
    %c0_100 = arith.constant 0 : index
    %c0_101 = arith.constant 0 : index
    %164 = vector.load %arg17[%163, %c0_100, %c0_101] : memref<4x8x256xf32, #tpu.memory_space<vmem>>, vector<1x8x256xf32>
    %165 = vector.shape_cast %164 : vector<1x8x256xf32> to vector<8x256xf32>
    %166 = arith.truncf %165 : vector<8x256xf32> to vector<8x256xbf16>
    %cst_102 = arith.constant dense<0.000000e+00> : vector<256x256xf32>
    %167 = tpu.matmul %162, %158, %cst_102 {dimension_numbers = #tpu.dot_dimension_numbers<[0], [0], [1], [1], [0, 1, 1, 1], [], []>} : vector<8x256xbf16>, vector<8x256xbf16>, vector<256x256xf32> -> vector<256x256xf32>
    %cst_103 = arith.constant dense<0xFF800000> : vector<256xf32>
    %168 = vector.multi_reduction <maximumf>, %167, %cst_103 [0] : vector<256x256xf32> to vector<256xf32>
    %169 = vector.shape_cast %168 : vector<256xf32> to vector<1x256xf32>
    %170 = vector.broadcast %169 : vector<1x256xf32> to vector<256x256xf32>
    %171 = arith.subf %167, %170 : vector<256x256xf32>
    %172 = math.exp %171 : vector<256x256xf32>
    %cst_104 = arith.constant dense<0.000000e+00> : vector<256xf32>
    %173 = vector.multi_reduction <add>, %172, %cst_104 [0] : vector<256x256xf32> to vector<256xf32>
    %174 = vector.shape_cast %173 : vector<256xf32> to vector<1x256xf32>
    %175 = arith.truncf %172 : vector<256x256xf32> to vector<256x256xbf16>
    %cst_105 = arith.constant dense<0.000000e+00> : vector<8x256xf32>
    %176 = tpu.matmul %166, %175, %cst_105 {dimension_numbers = #tpu.dot_dimension_numbers<[1], [0], [0], [1], [0, 0, 1, 1], [], []>} : vector<8x256xbf16>, vector<256x256xbf16>, vector<8x256xf32> -> vector<8x256xf32>
    %177 = tpu.reciprocal %174 {approx = true} : vector<1x256xf32> -> vector<1x256xf32>
    %178 = vector.broadcast %177 : vector<1x256xf32> to vector<8x256xf32>
    %179 = arith.mulf %176, %178 : vector<8x256xf32>
    %180 = arith.index_cast %c0_i32 : i32 to index
    %c0_106 = arith.constant 0 : index
    %c0_107 = arith.constant 0 : index
    %181 = vector.load %arg18[%180, %c0_106, %c0_107] : memref<4x8x256xf32, #tpu.memory_space<vmem>>, vector<1x8x256xf32>
    %182 = vector.shape_cast %181 : vector<1x8x256xf32> to vector<8x256xf32>
    %183 = vector.shape_cast %179 : vector<8x256xf32> to vector<1x8x256xf32>
    tpu.vector_store %arg18[%180, %c0_106, %c0_107], %183 {strides = array<i32>} : memref<4x8x256xf32, #tpu.memory_space<vmem>>, vector<1x8x256xf32>,
    %c1_i32 = arith.constant 1 : i32
    %184 = arith.index_cast %c1_i32 : i32 to index
    %c0_108 = arith.constant 0 : index
    %c0_109 = arith.constant 0 : index
    %185 = vector.load %arg15[%184, %c0_108, %c0_109] : memref<4x8x256xf32, #tpu.memory_space<vmem>>, vector<1x8x256xf32>
    %186 = vector.shape_cast %185 : vector<1x8x256xf32> to vector<8x256xf32>
    %187 = arith.truncf %186 : vector<8x256xf32> to vector<8x256xbf16>
    %188 = arith.index_cast %c1_i32 : i32 to index
    %c0_110 = arith.constant 0 : index
    %c0_111 = arith.constant 0 : index
    %189 = vector.load %arg16[%188, %c0_110, %c0_111] : memref<4x8x256xf32, #tpu.memory_space<vmem>>, vector<1x8x256xf32>
    %190 = vector.shape_cast %189 : vector<1x8x256xf32> to vector<8x256xf32>
    %191 = arith.truncf %190 : vector<8x256xf32> to vector<8x256xbf16>
    %192 = arith.index_cast %c1_i32 : i32 to index
    %c0_112 = arith.constant 0 : index
    %c0_113 = arith.constant 0 : index
    %193 = vector.load %arg17[%192, %c0_112, %c0_113] : memref<4x8x256xf32, #tpu.memory_space<vmem>>, vector<1x8x256xf32>
    %194 = vector.shape_cast %193 : vector<1x8x256xf32> to vector<8x256xf32>
    %195 = arith.truncf %194 : vector<8x256xf32> to vector<8x256xbf16>
    %cst_114 = arith.constant dense<0.000000e+00> : vector<256x256xf32>
    %196 = tpu.matmul %191, %187, %cst_114 {dimension_numbers = #tpu.dot_dimension_numbers<[0], [0], [1], [1], [0, 1, 1, 1], [], []>} : vector<8x256xbf16>, vector<8x256xbf16>, vector<256x256xf32> -> vector<256x256xf32>
    %cst_115 = arith.constant dense<0xFF800000> : vector<256xf32>
    %197 = vector.multi_reduction <maximumf>, %196, %cst_115 [0] : vector<256x256xf32> to vector<256xf32>
    %198 = vector.shape_cast %197 : vector<256xf32> to vector<1x256xf32>
    %199 = vector.broadcast %198 : vector<1x256xf32> to vector<256x256xf32>
    %200 = arith.subf %196, %199 : vector<256x256xf32>
    %201 = math.exp %200 : vector<256x256xf32>
    %cst_116 = arith.constant dense<0.000000e+00> : vector<256xf32>
    %202 = vector.multi_reduction <add>, %201, %cst_116 [0] : vector<256x256xf32> to vector<256xf32>
    %203 = vector.shape_cast %202 : vector<256xf32> to vector<1x256xf32>
    %204 = arith.truncf %201 : vector<256x256xf32> to vector<256x256xbf16>
    %cst_117 = arith.constant dense<0.000000e+00> : vector<8x256xf32>
    %205 = tpu.matmul %195, %204, %cst_117 {dimension_numbers = #tpu.dot_dimension_numbers<[1], [0], [0], [1], [0, 0, 1, 1], [], []>} : vector<8x256xbf16>, vector<256x256xbf16>, vector<8x256xf32> -> vector<8x256xf32>
    %206 = tpu.reciprocal %203 {approx = true} : vector<1x256xf32> -> vector<1x256xf32>
    %207 = vector.broadcast %206 : vector<1x256xf32> to vector<8x256xf32>
    %208 = arith.mulf %205, %207 : vector<8x256xf32>
    %209 = arith.index_cast %c1_i32 : i32 to index
    %c0_118 = arith.constant 0 : index
    %c0_119 = arith.constant 0 : index
    %210 = vector.load %arg18[%209, %c0_118, %c0_119] : memref<4x8x256xf32, #tpu.memory_space<vmem>>, vector<1x8x256xf32>
    %211 = vector.shape_cast %210 : vector<1x8x256xf32> to vector<8x256xf32>
    %212 = vector.shape_cast %208 : vector<8x256xf32> to vector<1x8x256xf32>
    tpu.vector_store %arg18[%209, %c0_118, %c0_119], %212 {strides = array<i32>} : memref<4x8x256xf32, #tpu.memory_space<vmem>>, vector<1x8x256xf32>,
    %c2_i32 = arith.constant 2 : i32
    %213 = arith.index_cast %c2_i32 : i32 to index
    %c0_120 = arith.constant 0 : index
    %c0_121 = arith.constant 0 : index
    %214 = vector.load %arg15[%213, %c0_120, %c0_121] : memref<4x8x256xf32, #tpu.memory_space<vmem>>, vector<1x8x256xf32>
    %215 = vector.shape_cast %214 : vector<1x8x256xf32> to vector<8x256xf32>
    %216 = arith.truncf %215 : vector<8x256xf32> to vector<8x256xbf16>
    %217 = arith.index_cast %c2_i32 : i32 to index
    %c0_122 = arith.constant 0 : index
    %c0_123 = arith.constant 0 : index
    %218 = vector.load %arg16[%217, %c0_122, %c0_123] : memref<4x8x256xf32, #tpu.memory_space<vmem>>, vector<1x8x256xf32>
    %219 = vector.shape_cast %218 : vector<1x8x256xf32> to vector<8x256xf32>
    %220 = arith.truncf %219 : vector<8x256xf32> to vector<8x256xbf16>
    %221 = arith.index_cast %c2_i32 : i32 to index
    %c0_124 = arith.constant 0 : index
    %c0_125 = arith.constant 0 : index
    %222 = vector.load %arg17[%221, %c0_124, %c0_125] : memref<4x8x256xf32, #tpu.memory_space<vmem>>, vector<1x8x256xf32>
    %223 = vector.shape_cast %222 : vector<1x8x256xf32> to vector<8x256xf32>
    %224 = arith.truncf %223 : vector<8x256xf32> to vector<8x256xbf16>
    %cst_126 = arith.constant dense<0.000000e+00> : vector<256x256xf32>
    %225 = tpu.matmul %220, %216, %cst_126 {dimension_numbers = #tpu.dot_dimension_numbers<[0], [0], [1], [1], [0, 1, 1, 1], [], []>} : vector<8x256xbf16>, vector<8x256xbf16>, vector<256x256xf32> -> vector<256x256xf32>
    %cst_127 = arith.constant dense<0xFF800000> : vector<256xf32>
    %226 = vector.multi_reduction <maximumf>, %225, %cst_127 [0] : vector<256x256xf32> to vector<256xf32>
    %227 = vector.shape_cast %226 : vector<256xf32> to vector<1x256xf32>
    %228 = vector.broadcast %227 : vector<1x256xf32> to vector<256x256xf32>
    %229 = arith.subf %225, %228 : vector<256x256xf32>
    %230 = math.exp %229 : vector<256x256xf32>
    %cst_128 = arith.constant dense<0.000000e+00> : vector<256xf32>
    %231 = vector.multi_reduction <add>, %230, %cst_128 [0] : vector<256x256xf32> to vector<256xf32>
    %232 = vector.shape_cast %231 : vector<256xf32> to vector<1x256xf32>
    %233 = arith.truncf %230 : vector<256x256xf32> to vector<256x256xbf16>
    %cst_129 = arith.constant dense<0.000000e+00> : vector<8x256xf32>
    %234 = tpu.matmul %224, %233, %cst_129 {dimension_numbers = #tpu.dot_dimension_numbers<[1], [0], [0], [1], [0, 0, 1, 1], [], []>} : vector<8x256xbf16>, vector<256x256xbf16>, vector<8x256xf32> -> vector<8x256xf32>
    %235 = tpu.reciprocal %232 {approx = true} : vector<1x256xf32> -> vector<1x256xf32>
    %236 = vector.broadcast %235 : vector<1x256xf32> to vector<8x256xf32>
    %237 = arith.mulf %234, %236 : vector<8x256xf32>
    %238 = arith.index_cast %c2_i32 : i32 to index
    %c0_130 = arith.constant 0 : index
    %c0_131 = arith.constant 0 : index
    %239 = vector.load %arg18[%238, %c0_130, %c0_131] : memref<4x8x256xf32, #tpu.memory_space<vmem>>, vector<1x8x256xf32>
    %240 = vector.shape_cast %239 : vector<1x8x256xf32> to vector<8x256xf32>
    %241 = vector.shape_cast %237 : vector<8x256xf32> to vector<1x8x256xf32>
    tpu.vector_store %arg18[%238, %c0_130, %c0_131], %241 {strides = array<i32>} : memref<4x8x256xf32, #tpu.memory_space<vmem>>, vector<1x8x256xf32>,
    %c3_i32 = arith.constant 3 : i32
    %242 = arith.index_cast %c3_i32 : i32 to index
    %c0_132 = arith.constant 0 : index
    %c0_133 = arith.constant 0 : index
    %243 = vector.load %arg15[%242, %c0_132, %c0_133] : memref<4x8x256xf32, #tpu.memory_space<vmem>>, vector<1x8x256xf32>
    %244 = vector.shape_cast %243 : vector<1x8x256xf32> to vector<8x256xf32>
    %245 = arith.truncf %244 : vector<8x256xf32> to vector<8x256xbf16>
    %246 = arith.index_cast %c3_i32 : i32 to index
    %c0_134 = arith.constant 0 : index
    %c0_135 = arith.constant 0 : index
    %247 = vector.load %arg16[%246, %c0_134, %c0_135] : memref<4x8x256xf32, #tpu.memory_space<vmem>>, vector<1x8x256xf32>
    %248 = vector.shape_cast %247 : vector<1x8x256xf32> to vector<8x256xf32>
    %249 = arith.truncf %248 : vector<8x256xf32> to vector<8x256xbf16>
    %250 = arith.index_cast %c3_i32 : i32 to index
    %c0_136 = arith.constant 0 : index
    %c0_137 = arith.constant 0 : index
    %251 = vector.load %arg17[%250, %c0_136, %c0_137] : memref<4x8x256xf32, #tpu.memory_space<vmem>>, vector<1x8x256xf32>
    %252 = vector.shape_cast %251 : vector<1x8x256xf32> to vector<8x256xf32>
    %253 = arith.truncf %252 : vector<8x256xf32> to vector<8x256xbf16>
    %cst_138 = arith.constant dense<0.000000e+00> : vector<256x256xf32>
    %254 = tpu.matmul %249, %245, %cst_138 {dimension_numbers = #tpu.dot_dimension_numbers<[0], [0], [1], [1], [0, 1, 1, 1], [], []>} : vector<8x256xbf16>, vector<8x256xbf16>, vector<256x256xf32> -> vector<256x256xf32>
    %cst_139 = arith.constant dense<0xFF800000> : vector<256xf32>
    %255 = vector.multi_reduction <maximumf>, %254, %cst_139 [0] : vector<256x256xf32> to vector<256xf32>
    %256 = vector.shape_cast %255 : vector<256xf32> to vector<1x256xf32>
    %257 = vector.broadcast %256 : vector<1x256xf32> to vector<256x256xf32>
    %258 = arith.subf %254, %257 : vector<256x256xf32>
    %259 = math.exp %258 : vector<256x256xf32>
    %cst_140 = arith.constant dense<0.000000e+00> : vector<256xf32>
    %260 = vector.multi_reduction <add>, %259, %cst_140 [0] : vector<256x256xf32> to vector<256xf32>
    %261 = vector.shape_cast %260 : vector<256xf32> to vector<1x256xf32>
    %262 = arith.truncf %259 : vector<256x256xf32> to vector<256x256xbf16>
    %cst_141 = arith.constant dense<0.000000e+00> : vector<8x256xf32>
    %263 = tpu.matmul %253, %262, %cst_141 {dimension_numbers = #tpu.dot_dimension_numbers<[1], [0], [0], [1], [0, 0, 1, 1], [], []>} : vector<8x256xbf16>, vector<256x256xbf16>, vector<8x256xf32> -> vector<8x256xf32>
    %264 = tpu.reciprocal %261 {approx = true} : vector<1x256xf32> -> vector<1x256xf32>
    %265 = vector.broadcast %264 : vector<1x256xf32> to vector<8x256xf32>
    %266 = arith.mulf %263, %265 : vector<8x256xf32>
    %267 = arith.index_cast %c3_i32 : i32 to index
    %c0_142 = arith.constant 0 : index
    %c0_143 = arith.constant 0 : index
    %268 = vector.load %arg18[%267, %c0_142, %c0_143] : memref<4x8x256xf32, #tpu.memory_space<vmem>>, vector<1x8x256xf32>
    %269 = vector.shape_cast %268 : vector<1x8x256xf32> to vector<8x256xf32>
    %270 = vector.shape_cast %266 : vector<8x256xf32> to vector<1x8x256xf32>
    tpu.vector_store %arg18[%267, %c0_142, %c0_143], %270 {strides = array<i32>} : memref<4x8x256xf32, #tpu.memory_space<vmem>>, vector<1x8x256xf32>,
    %c4_i32 = arith.constant 4 : i32
    %c0_144 = arith.constant 0 : index
    %c0_145 = arith.constant 0 : index
    %c0_146 = arith.constant 0 : index
    %271 = vector.load %arg18[%c0_144, %c0_145, %c0_146] : memref<4x8x256xf32, #tpu.memory_space<vmem>>, vector<4x8x256xf32>
    %272 = vector.shape_cast %271 : vector<4x8x256xf32> to vector<32x256xf32>
    %c0_147 = arith.constant 0 : index
    %c0_148 = arith.constant 0 : index
    %c0_149 = arith.constant 0 : index
    %273 = vector.load %arg10[%c0_147, %c0_148, %c0_149] : memref<2x64x32xbf16, #tpu.memory_space<vmem>>, vector<1x64x32xbf16>
    %274 = vector.shape_cast %273 : vector<1x64x32xbf16> to vector<64x32xbf16>
    %275 = arith.truncf %272 : vector<32x256xf32> to vector<32x256xbf16>
    %cst_150 = arith.constant dense<0.000000e+00> : vector<64x256xf32>
    %276 = tpu.matmul %274, %275, %cst_150 {dimension_numbers = #tpu.dot_dimension_numbers<[1], [0], [0], [1], [0, 0, 1, 1], [], []>} : vector<64x32xbf16>, vector<32x256xbf16>, vector<64x256xf32> -> vector<64x256xf32>
    %c0_151 = arith.constant 0 : index
    %c0_152 = arith.constant 0 : index
    %c0_153 = arith.constant 0 : index
    %277 = vector.load %arg11[%c0_151, %c0_152, %c0_153] : memref<2x64x1xf32, #tpu.memory_space<vmem>>, vector<1x64x1xf32>
    %278 = vector.shape_cast %277 : vector<1x64x1xf32> to vector<64x1xf32>
    %279 = vector.broadcast %278 : vector<64x1xf32> to vector<64x256xf32>
    %280 = arith.addf %276, %279 : vector<64x256xf32>
    %cst_154 = arith.constant 0.000000e+00 : f32
    %281 = vector.broadcast %cst_154 : f32 to vector<64x256xf32>
    %282 = arith.cmpf oge, %280, %281 : vector<64x256xf32>
    %cst_155 = arith.constant 0.00999999977 : f32
    %283 = vector.broadcast %cst_155 : f32 to vector<64x256xf32>
    %284 = arith.mulf %283, %280 : vector<64x256xf32>
    %285 = arith.select %282, %280, %284 : vector<64x256xi1>, vector<64x256xf32>
    %c0_156 = arith.constant 0 : index
    %c0_157 = arith.constant 0 : index
    %c0_158 = arith.constant 0 : index
    %286 = vector.load %arg12[%c0_156, %c0_157, %c0_158] : memref<2x32x64xbf16, #tpu.memory_space<vmem>>, vector<1x32x64xbf16>
    %287 = vector.shape_cast %286 : vector<1x32x64xbf16> to vector<32x64xbf16>
    %288 = arith.truncf %285 : vector<64x256xf32> to vector<64x256xbf16>
    %cst_159 = arith.constant dense<0.000000e+00> : vector<32x256xf32>
    %289 = tpu.matmul %287, %288, %cst_159 {dimension_numbers = #tpu.dot_dimension_numbers<[1], [0], [0], [1], [0, 0, 1, 1], [], []>} : vector<32x64xbf16>, vector<64x256xbf16>, vector<32x256xf32> -> vector<32x256xf32>
    %c0_160 = arith.constant 0 : index
    %c0_161 = arith.constant 0 : index
    %c0_162 = arith.constant 0 : index
    %290 = vector.load %arg13[%c0_160, %c0_161, %c0_162] : memref<2x32x1xf32, #tpu.memory_space<vmem>>, vector<1x32x1xf32>
    %291 = vector.shape_cast %290 : vector<1x32x1xf32> to vector<32x1xf32>
    %292 = vector.broadcast %291 : vector<32x1xf32> to vector<32x256xf32>
    %293 = arith.addf %289, %292 : vector<32x256xf32>
    %294 = arith.addf %148, %293 : vector<32x256xf32>
    %c1_163 = arith.constant 1 : index
    %c0_164 = arith.constant 0 : index
    %c0_165 = arith.constant 0 : index
    %295 = vector.load %arg10[%c1_163, %c0_164, %c0_165] : memref<2x64x32xbf16, #tpu.memory_space<vmem>>, vector<1x64x32xbf16>
    %296 = vector.shape_cast %295 : vector<1x64x32xbf16> to vector<64x32xbf16>
    %297 = arith.truncf %294 : vector<32x256xf32> to vector<32x256xbf16>
    %cst_166 = arith.constant dense<0.000000e+00> : vector<64x256xf32>
    %298 = tpu.matmul %296, %297, %cst_166 {dimension_numbers = #tpu.dot_dimension_numbers<[1], [0], [0], [1], [0, 0, 1, 1], [], []>} : vector<64x32xbf16>, vector<32x256xbf16>, vector<64x256xf32> -> vector<64x256xf32>
    %c1_167 = arith.constant 1 : index
    %c0_168 = arith.constant 0 : index
    %c0_169 = arith.constant 0 : index
    %299 = vector.load %arg11[%c1_167, %c0_168, %c0_169] : memref<2x64x1xf32, #tpu.memory_space<vmem>>, vector<1x64x1xf32>
    %300 = vector.shape_cast %299 : vector<1x64x1xf32> to vector<64x1xf32>
    %301 = vector.broadcast %300 : vector<64x1xf32> to vector<64x256xf32>
    %302 = arith.addf %298, %301 : vector<64x256xf32>
    %cst_170 = arith.constant 0.000000e+00 : f32
    %303 = vector.broadcast %cst_170 : f32 to vector<64x256xf32>
    %304 = arith.cmpf oge, %302, %303 : vector<64x256xf32>
    %cst_171 = arith.constant 0.00999999977 : f32
    %305 = vector.broadcast %cst_171 : f32 to vector<64x256xf32>
    %306 = arith.mulf %305, %302 : vector<64x256xf32>
    %307 = arith.select %304, %302, %306 : vector<64x256xi1>, vector<64x256xf32>
    %c1_172 = arith.constant 1 : index
    %c0_173 = arith.constant 0 : index
    %c0_174 = arith.constant 0 : index
    %308 = vector.load %arg12[%c1_172, %c0_173, %c0_174] : memref<2x32x64xbf16, #tpu.memory_space<vmem>>, vector<1x32x64xbf16>
    %309 = vector.shape_cast %308 : vector<1x32x64xbf16> to vector<32x64xbf16>
    %310 = arith.truncf %307 : vector<64x256xf32> to vector<64x256xbf16>
    %cst_175 = arith.constant dense<0.000000e+00> : vector<32x256xf32>
    %311 = tpu.matmul %309, %310, %cst_175 {dimension_numbers = #tpu.dot_dimension_numbers<[1], [0], [0], [1], [0, 0, 1, 1], [], []>} : vector<32x64xbf16>, vector<64x256xbf16>, vector<32x256xf32> -> vector<32x256xf32>
    %c1_176 = arith.constant 1 : index
    %c0_177 = arith.constant 0 : index
    %c0_178 = arith.constant 0 : index
    %312 = vector.load %arg13[%c1_176, %c0_177, %c0_178] : memref<2x32x1xf32, #tpu.memory_space<vmem>>, vector<1x32x1xf32>
    %313 = vector.shape_cast %312 : vector<1x32x1xf32> to vector<32x1xf32>
    %314 = vector.broadcast %313 : vector<32x1xf32> to vector<32x256xf32>
    %315 = arith.addf %311, %314 : vector<32x256xf32>
    %316 = arith.addf %294, %315 : vector<32x256xf32>
    %c0_179 = arith.constant 0 : index
    %c0_180 = arith.constant 0 : index
    %c0_181 = arith.constant 0 : index
    %317 = vector.load %arg14[%c0_179, %c0_180, %c0_181] : memref<1x32x256xf32, #tpu.memory_space<vmem>>, vector<1x32x256xf32>
    %318 = vector.shape_cast %317 : vector<1x32x256xf32> to vector<32x256xf32>
    %319 = vector.shape_cast %316 : vector<32x256xf32> to vector<1x32x256xf32>
    tpu.vector_store %arg14[%c0_179, %c0_180, %c0_181], %319 {strides = array<i32>} : memref<1x32x256xf32, #tpu.memory_space<vmem>>, vector<1x32x256xf32>,
    return
  }
  func.func @transform_0(%arg0: i32) -> (i32, i32, i32) {
    %c0_i32 = arith.constant 0 : i32
    %c0_i32_0 = arith.constant 0 : i32
    %c0_i32_1 = arith.constant 0 : i32
    return %arg0, %c0_i32, %c0_i32_0 : i32, i32, i32
  }
  func.func @transform_1(%arg0: i32) -> (i32, i32, i32) {
    %c0_i32 = arith.constant 0 : i32
    %c0_i32_0 = arith.constant 0 : i32
    %c0_i32_1 = arith.constant 0 : i32
    return %arg0, %c0_i32, %c0_i32_0 : i32, i32, i32
  }
  func.func @transform_2(%arg0: i32) -> (i32, i32, i32) {
    %c0_i32 = arith.constant 0 : i32
    %c0_i32_0 = arith.constant 0 : i32
    %c0_i32_1 = arith.constant 0 : i32
    return %arg0, %c0_i32, %c0_i32_0 : i32, i32, i32
  }
  func.func @transform_3(%arg0: i32) -> (i32, i32, i32) {
    %c0_i32 = arith.constant 0 : i32
    %c0_i32_0 = arith.constant 0 : i32
    %c0_i32_1 = arith.constant 0 : i32
    %c0_i32_2 = arith.constant 0 : i32
    return %c0_i32, %c0_i32_0, %c0_i32_1 : i32, i32, i32
  }
  func.func @transform_4(%arg0: i32) -> (i32, i32, i32) {
    %c0_i32 = arith.constant 0 : i32
    %c0_i32_0 = arith.constant 0 : i32
    %c0_i32_1 = arith.constant 0 : i32
    %c0_i32_2 = arith.constant 0 : i32
    return %c0_i32, %c0_i32_0, %c0_i32_1 : i32, i32, i32
  }
  func.func @transform_5(%arg0: i32) -> (i32, i32, i32) {
    %c0_i32 = arith.constant 0 : i32
    %c0_i32_0 = arith.constant 0 : i32
    %c0_i32_1 = arith.constant 0 : i32
    %c0_i32_2 = arith.constant 0 : i32
    return %c0_i32, %c0_i32_0, %c0_i32_1 : i32, i32, i32
  }
  func.func @transform_6(%arg0: i32) -> (i32, i32, i32) {
    %c0_i32 = arith.constant 0 : i32
    %c0_i32_0 = arith.constant 0 : i32
    %c0_i32_1 = arith.constant 0 : i32
    %c0_i32_2 = arith.constant 0 : i32
    return %c0_i32, %c0_i32_0, %c0_i32_1 : i32, i32, i32
  }
  func.func @transform_7(%arg0: i32) -> (i32, i32, i32) {
    %c0_i32 = arith.constant 0 : i32
    %c0_i32_0 = arith.constant 0 : i32
    %c0_i32_1 = arith.constant 0 : i32
    %c0_i32_2 = arith.constant 0 : i32
    return %c0_i32, %c0_i32_0, %c0_i32_1 : i32, i32, i32
  }
  func.func @transform_8(%arg0: i32) -> (i32, i32, i32) {
    %c0_i32 = arith.constant 0 : i32
    %c0_i32_0 = arith.constant 0 : i32
    %c0_i32_1 = arith.constant 0 : i32
    %c0_i32_2 = arith.constant 0 : i32
    return %c0_i32, %c0_i32_0, %c0_i32_1 : i32, i32, i32
  }
  func.func @transform_9(%arg0: i32) -> (i32, i32, i32) {
    %c0_i32 = arith.constant 0 : i32
    %c0_i32_0 = arith.constant 0 : i32
    %c0_i32_1 = arith.constant 0 : i32
    %c0_i32_2 = arith.constant 0 : i32
    return %c0_i32, %c0_i32_0, %c0_i32_1 : i32, i32, i32
  }
  func.func @transform_10(%arg0: i32) -> (i32, i32, i32) {
    %c0_i32 = arith.constant 0 : i32
    %c0_i32_0 = arith.constant 0 : i32
    %c0_i32_1 = arith.constant 0 : i32
    %c0_i32_2 = arith.constant 0 : i32
    return %c0_i32, %c0_i32_0, %c0_i32_1 : i32, i32, i32
  }
  func.func @transform_11(%arg0: i32) -> (i32, i32, i32) {
    %c0_i32 = arith.constant 0 : i32
    %c0_i32_0 = arith.constant 0 : i32
    %c0_i32_1 = arith.constant 0 : i32
    %c0_i32_2 = arith.constant 0 : i32
    return %c0_i32, %c0_i32_0, %c0_i32_1 : i32, i32, i32
  }
  func.func @transform_12(%arg0: i32) -> (i32, i32, i32) {
    %c0_i32 = arith.constant 0 : i32
    %c0_i32_0 = arith.constant 0 : i32
    %c0_i32_1 = arith.constant 0 : i32
    %c0_i32_2 = arith.constant 0 : i32
    return %c0_i32, %c0_i32_0, %c0_i32_1 : i32, i32, i32
  }
  func.func @transform_13(%arg0: i32) -> (i32, i32, i32) {
    %c0_i32 = arith.constant 0 : i32
    %c0_i32_0 = arith.constant 0 : i32
    %c0_i32_1 = arith.constant 0 : i32
    return %arg0, %c0_i32, %c0_i32_0 : i32, i32, i32
  }
}

</mosaic_0001>

<llo_original>
// kernel: attention_forward.1
$region0: #{attention_forward.1}
  #allocation0 [shape = 'u32[]', space=smem, size = 0x4, offset = 0x4, fixed_abs, tag = 'smem constant byte address 0x4 - core index']
  #allocation1 [shape = 'u32[144,128]{1,0:T(1,128)}', space=vmem, size = 0x12000, scoped, tag = 'internal scratch']
  #allocation2 [shape = 'f32[4,8,256]{2,1,0:T(8,128)}', space=vmem, size = 0x8000, scoped, tag = 'scratch operand']
  #allocation3 [shape = 'f32[4,8,256]{2,1,0:T(8,128)}', space=vmem, size = 0x8000, scoped, tag = 'scratch operand']
  #allocation4 [shape = 'f32[4,8,256]{2,1,0:T(8,128)}', space=vmem, size = 0x8000, scoped, tag = 'scratch operand']
  #allocation5 [shape = 'f32[4,8,256]{2,1,0:T(8,128)}', space=vmem, size = 0x8000, scoped, tag = 'scratch operand']
  %s0 = inlined_call_operand.vmem [shape: f32[2,32,256], index: 0, kind: input, shape index: {}]
  %s1 = inlined_call_operand.vmem [shape: f32[2,32,256], index: 1, kind: input, shape index: {}]
  %s2 = inlined_call_operand.vmem [shape: f32[2,32,256], index: 2, kind: input, shape index: {}]
  %s3 = inlined_call_operand.vmem [shape: f32[3,32,1], index: 3, kind: input, shape index: {}]
  %s4 = inlined_call_operand.vmem [shape: f32[3,32,1], index: 4, kind: input, shape index: {}]
  %s5 = inlined_call_operand.vmem [shape: bf16[3,64,32], index: 5, kind: input, shape index: {}]
  %s6 = inlined_call_operand.vmem [shape: f32[3,64,1], index: 6, kind: input, shape index: {}]
  %s7 = inlined_call_operand.vmem [shape: bf16[3,32,64], index: 7, kind: input, shape index: {}]
  %s8 = inlined_call_operand.vmem [shape: f32[3,32,1], index: 8, kind: input, shape index: {}]
  %s9 = inlined_call_operand.vmem [shape: bf16[2,64,32], index: 9, kind: input, shape index: {}]
  %s10 = inlined_call_operand.vmem [shape: f32[2,64,1], index: 10, kind: input, shape index: {}]
  %s11 = inlined_call_operand.vmem [shape: bf16[2,32,64], index: 11, kind: input, shape index: {}]
  %s12 = inlined_call_operand.vmem [shape: f32[2,32,1], index: 12, kind: input, shape index: {}]
  %s13 = inlined_call_operand.vmem [shape: f32[2,32,256], index: 13, kind: output, shape index: {}]
  %s14 = sld [smem:[#allocation0]]
  $region85: #{attention_forward.1} parent=0
    _
  %s16 = ssub.s32 1, %s14
  %s17 = scalar_select 0, %s16, %s14
  loop: start=0, step=1, limit=4
  $region2: #{attention_forward.1} parent=0 // loop_pre_header
    _
  $region3: #{attention_forward.1} parent=0 // loop_header
    %s19 = sphi 0, %s23
    %p20 = scmp.ge.s32.totalorder %s19, 4
    %s29 = sphi 0, %s31
    %s32 = sphi 0, %s29
    %s33 = sphi 0, %s32
    %s49 = sphi 0, %s33
    %s55 = sphi 0, %s57
    %s58 = sphi 0, %s55
    %s59 = sphi 0, %s58
    %s75 = sphi 0, %s59
    %s81 = sphi 0, %s83
    %s84 = sphi 0, %s81
    %s85 = sphi 0, %s84
    %s101 = sphi 0, %s85
    %s105 = sphi 0, %s105
    %s107 = sphi 0, %s105
    %s108 = sphi 0, %s107
    %s122 = sphi 0, %s108
    %s126 = sphi 0, %s126
    %s128 = sphi 0, %s126
    %s129 = sphi 0, %s128
    %s143 = sphi 0, %s129
    %s147 = sphi 0, %s147
    %s149 = sphi 0, %s147
    %s150 = sphi 0, %s149
    %s164 = sphi 0, %s150
    %s168 = sphi 0, %s168
    %s170 = sphi 0, %s168
    %s171 = sphi 0, %s170
    %s185 = sphi 0, %s171
    %s189 = sphi 0, %s189
    %s191 = sphi 0, %s189
    %s192 = sphi 0, %s191
    %s206 = sphi 0, %s192
    %s210 = sphi 0, %s210
    %s212 = sphi 0, %s210
    %s213 = sphi 0, %s212
    %s227 = sphi 0, %s213
    %s231 = sphi 0, %s231
    %s233 = sphi 0, %s231
    %s234 = sphi 0, %s233
    %s248 = sphi 0, %s234
    %s252 = sphi 0, %s252
    %s254 = sphi 0, %s252
    %s255 = sphi 0, %s254
    %s269 = sphi 0, %s255
    %s273 = sphi 0, %s273
    %s275 = sphi 0, %s273
    %s276 = sphi 0, %s275
    %s290 = sphi 0, %s276
    %s294 = sphi 0, %s294
    %s296 = sphi 0, %s294
    %s297 = sphi 0, %s296
    %s311 = sphi 0, %s297
    %s317 = sphi 0, %s319
    %s320 = sphi 0, %s317
    %s321 = sphi 0, %s320
    %s337 = sphi 0, %s321
  $region4: #{attention_forward.1} parent=0 // loop_header_branch
    %22 = sbr.rel (%p20) target = $region8
  $region5: #{attention_forward.1} parent=0 // loop_body
    %s24 = ssub.s32 %s19, 1
    %s25 = ssub.s32 %s19, 2
    %s26 = sadd.s32 %s19, 1
    %s27 = ssub.s32 %s19, %s26
    %p28 = scmp.eq.s32.totalorder %s27, 0
    %s30 = sadd.s32 %s29, 1
    %s31 = scalar_select %p28, %s29, %s30
    %p34 = pneg %p28
    %p35 = scmp.eq.s32.totalorder %s19, 1
    %p36 = por %p34, %p35
    %p37 = scmp.ne.s32.totalorder %s29, %s32
    %p38 = scmp.eq.s32.totalorder %s19, 0
    %p39 = por %p37, %p38
    %p40 = scmp.ne.s32.totalorder %s29, %s32
    %p41 = scmp.eq.s32.totalorder %s24, 1
    %p42 = por %p40, %p41
    %p43 = scmp.ne.s32.totalorder %s32, %s33
    %p44 = scmp.eq.s32.totalorder %s24, 0
    %p45 = por %p43, %p44
    %p46 = scmp.ne.s32.totalorder %s32, %s33
    %p47 = scmp.eq.s32.totalorder %s25, 1
    %p48 = por %p46, %p47
    %p50 = scmp.ne.s32.totalorder %s33, %s49
    %p51 = scmp.eq.s32.totalorder %s25, 0
    %p52 = por %p50, %p51
    %s53 = ssub.s32 %s19, %s26
    %p54 = scmp.eq.s32.totalorder %s53, 0
    %s56 = sadd.s32 %s55, 1
    %s57 = scalar_select %p54, %s55, %s56
    %p60 = pneg %p54
    %p61 = scmp.eq.s32.totalorder %s19, 1
    %p62 = por %p60, %p61
    %p63 = scmp.ne.s32.totalorder %s55, %s58
    %p64 = scmp.eq.s32.totalorder %s19, 0
    %p65 = por %p63, %p64
    %p66 = scmp.ne.s32.totalorder %s55, %s58
    %p67 = scmp.eq.s32.totalorder %s24, 1
    %p68 = por %p66, %p67
    %p69 = scmp.ne.s32.totalorder %s58, %s59
    %p70 = scmp.eq.s32.totalorder %s24, 0
    %p71 = por %p69, %p70
    %p72 = scmp.ne.s32.totalorder %s58, %s59
    %p73 = scmp.eq.s32.totalorder %s25, 1
    %p74 = por %p72, %p73
    %p76 = scmp.ne.s32.totalorder %s59, %s75
    %p77 = scmp.eq.s32.totalorder %s25, 0
    %p78 = por %p76, %p77
    %s79 = ssub.s32 %s19, %s26
    %p80 = scmp.eq.s32.totalorder %s79, 0
    %s82 = sadd.s32 %s81, 1
    %s83 = scalar_select %p80, %s81, %s82
    %p86 = pneg %p80
    %p87 = scmp.eq.s32.totalorder %s19, 1
    %p88 = por %p86, %p87
    %p89 = scmp.ne.s32.totalorder %s81, %s84
    %p90 = scmp.eq.s32.totalorder %s19, 0
    %p91 = por %p89, %p90
    %p92 = scmp.ne.s32.totalorder %s81, %s84
    %p93 = scmp.eq.s32.totalorder %s24, 1
    %p94 = por %p92, %p93
    %p95 = scmp.ne.s32.totalorder %s84, %s85
    %p96 = scmp.eq.s32.totalorder %s24, 0
    %p97 = por %p95, %p96
    %p98 = scmp.ne.s32.totalorder %s84, %s85
    %p99 = scmp.eq.s32.totalorder %s25, 1
    %p100 = por %p98, %p99
    %p102 = scmp.ne.s32.totalorder %s85, %s101
    %p103 = scmp.eq.s32.totalorder %s25, 0
    %p104 = por %p102, %p103
    %s106 = sadd.s32 %s105, 1
    %p109 = scmp.eq.s32.totalorder %s19, 1
    %p110 = scmp.ne.s32.totalorder %s105, %s107
    %p111 = scmp.eq.s32.totalorder %s19, 0
    %p112 = por %p110, %p111
    %p113 = scmp.ne.s32.totalorder %s105, %s107
    %p114 = scmp.eq.s32.totalorder %s24, 1
    %p115 = por %p113, %p114
    %p116 = scmp.ne.s32.totalorder %s107, %s108
    %p117 = scmp.eq.s32.totalorder %s24, 0
    %p118 = por %p116, %p117
    %p119 = scmp.ne.s32.totalorder %s107, %s108
    %p120 = scmp.eq.s32.totalorder %s25, 1
    %p121 = por %p119, %p120
    %p123 = scmp.ne.s32.totalorder %s108, %s122
    %p124 = scmp.eq.s32.totalorder %s25, 0
    %p125 = por %p123, %p124
    %s127 = sadd.s32 %s126, 1
    %p130 = scmp.eq.s32.totalorder %s19, 1
    %p131 = scmp.ne.s32.totalorder %s126, %s128
    %p132 = scmp.eq.s32.totalorder %s19, 0
    %p133 = por %p131, %p132
    %p134 = scmp.ne.s32.totalorder %s126, %s128
    %p135 = scmp.eq.s32.totalorder %s24, 1
    %p136 = por %p134, %p135
    %p137 = scmp.ne.s32.totalorder %s128, %s129
    %p138 = scmp.eq.s32.totalorder %s24, 0
    %p139 = por %p137, %p138
    %p140 = scmp.ne.s32.totalorder %s128, %s129
    %p141 = scmp.eq.s32.totalorder %s25, 1
    %p142 = por %p140, %p141
    %p144 = scmp.ne.s32.totalorder %s129, %s143
    %p145 = scmp.eq.s32.totalorder %s25, 0
    %p146 = por %p144, %p145
    %s148 = sadd.s32 %s147, 1
    %p151 = scmp.eq.s32.totalorder %s19, 1
    %p152 = scmp.ne.s32.totalorder %s147, %s149
    %p153 = scmp.eq.s32.totalorder %s19, 0
    %p154 = por %p152, %p153
    %p155 = scmp.ne.s32.totalorder %s147, %s149
    %p156 = scmp.eq.s32.totalorder %s24, 1
    %p157 = por %p155, %p156
    %p158 = scmp.ne.s32.totalorder %s149, %s150
    %p159 = scmp.eq.s32.totalorder %s24, 0
    %p160 = por %p158, %p159
    %p161 = scmp.ne.s32.totalorder %s149, %s150
    %p162 = scmp.eq.s32.totalorder %s25, 1
    %p163 = por %p161, %p162
    %p165 = scmp.ne.s32.totalorder %s150, %s164
    %p166 = scmp.eq.s32.totalorder %s25, 0
    %p167 = por %p165, %p166
    %s169 = sadd.s32 %s168, 1
    %p172 = scmp.eq.s32.totalorder %s19, 1
    %p173 = scmp.ne.s32.totalorder %s168, %s170
    %p174 = scmp.eq.s32.totalorder %s19, 0
    %p175 = por %p173, %p174
    %p176 = scmp.ne.s32.totalorder %s168, %s170
    %p177 = scmp.eq.s32.totalorder %s24, 1
    %p178 = por %p176, %p177
    %p179 = scmp.ne.s32.totalorder %s170, %s171
    %p180 = scmp.eq.s32.totalorder %s24, 0
    %p181 = por %p179, %p180
    %p182 = scmp.ne.s32.totalorder %s170, %s171
    %p183 = scmp.eq.s32.totalorder %s25, 1
    %p184 = por %p182, %p183
    %p186 = scmp.ne.s32.totalorder %s171, %s185
    %p187 = scmp.eq.s32.totalorder %s25, 0
    %p188 = por %p186, %p187
    %s190 = sadd.s32 %s189, 1
    %p193 = scmp.eq.s32.totalorder %s19, 1
    %p194 = scmp.ne.s32.totalorder %s189, %s191
    %p195 = scmp.eq.s32.totalorder %s19, 0
    %p196 = por %p194, %p195
    %p197 = scmp.ne.s32.totalorder %s189, %s191
    %p198 = scmp.eq.s32.totalorder %s24, 1
    %p199 = por %p197, %p198
    %p200 = scmp.ne.s32.totalorder %s191, %s192
    %p201 = scmp.eq.s32.totalorder %s24, 0
    %p202 = por %p200, %p201
    %p203 = scmp.ne.s32.totalorder %s191, %s192
    %p204 = scmp.eq.s32.totalorder %s25, 1
    %p205 = por %p203, %p204
    %p207 = scmp.ne.s32.totalorder %s192, %s206
    %p208 = scmp.eq.s32.totalorder %s25, 0
    %p209 = por %p207, %p208
    %s211 = sadd.s32 %s210, 1
    %p214 = scmp.eq.s32.totalorder %s19, 1
    %p215 = scmp.ne.s32.totalorder %s210, %s212
    %p216 = scmp.eq.s32.totalorder %s19, 0
    %p217 = por %p215, %p216
    %p218 = scmp.ne.s32.totalorder %s210, %s212
    %p219 = scmp.eq.s32.totalorder %s24, 1
    %p220 = por %p218, %p219
    %p221 = scmp.ne.s32.totalorder %s212, %s213
    %p222 = scmp.eq.s32.totalorder %s24, 0
    %p223 = por %p221, %p222
    %p224 = scmp.ne.s32.totalorder %s212, %s213
    %p225 = scmp.eq.s32.totalorder %s25, 1
    %p226 = por %p224, %p225
    %p228 = scmp.ne.s32.totalorder %s213, %s227
    %p229 = scmp.eq.s32.totalorder %s25, 0
    %p230 = por %p228, %p229
    %s232 = sadd.s32 %s231, 1
    %p235 = scmp.eq.s32.totalorder %s19, 1
    %p236 = scmp.ne.s32.totalorder %s231, %s233
    %p237 = scmp.eq.s32.totalorder %s19, 0
    %p238 = por %p236, %p237
    %p239 = scmp.ne.s32.totalorder %s231, %s233
    %p240 = scmp.eq.s32.totalorder %s24, 1
    %p241 = por %p239, %p240
    %p242 = scmp.ne.s32.totalorder %s233, %s234
    %p243 = scmp.eq.s32.totalorder %s24, 0
    %p244 = por %p242, %p243
    %p245 = scmp.ne.s32.totalorder %s233, %s234
    %p246 = scmp.eq.s32.totalorder %s25, 1
    %p247 = por %p245, %p246
    %p249 = scmp.ne.s32.totalorder %s234, %s248
    %p250 = scmp.eq.s32.totalorder %s25, 0
    %p251 = por %p249, %p250
    %s253 = sadd.s32 %s252, 1
    %p256 = scmp.eq.s32.totalorder %s19, 1
    %p257 = scmp.ne.s32.totalorder %s252, %s254
    %p258 = scmp.eq.s32.totalorder %s19, 0
    %p259 = por %p257, %p258
    %p260 = scmp.ne.s32.totalorder %s252, %s254
    %p261 = scmp.eq.s32.totalorder %s24, 1
    %p262 = por %p260, %p261
    %p263 = scmp.ne.s32.totalorder %s254, %s255
    %p264 = scmp.eq.s32.totalorder %s24, 0
    %p265 = por %p263, %p264
    %p266 = scmp.ne.s32.totalorder %s254, %s255
    %p267 = scmp.eq.s32.totalorder %s25, 1
    %p268 = por %p266, %p267
    %p270 = scmp.ne.s32.totalorder %s255, %s269
    %p271 = scmp.eq.s32.totalorder %s25, 0
    %p272 = por %p270, %p271
    %s274 = sadd.s32 %s273, 1
    %p277 = scmp.eq.s32.totalorder %s19, 1
    %p278 = scmp.ne.s32.totalorder %s273, %s275
    %p279 = scmp.eq.s32.totalorder %s19, 0
    %p280 = por %p278, %p279
    %p281 = scmp.ne.s32.totalorder %s273, %s275
    %p282 = scmp.eq.s32.totalorder %s24, 1
    %p283 = por %p281, %p282
    %p284 = scmp.ne.s32.totalorder %s275, %s276
    %p285 = scmp.eq.s32.totalorder %s24, 0
    %p286 = por %p284, %p285
    %p287 = scmp.ne.s32.totalorder %s275, %s276
    %p288 = scmp.eq.s32.totalorder %s25, 1
    %p289 = por %p287, %p288
    %p291 = scmp.ne.s32.totalorder %s276, %s290
    %p292 = scmp.eq.s32.totalorder %s25, 0
    %p293 = por %p291, %p292
    %s295 = sadd.s32 %s294, 1
    %p298 = scmp.eq.s32.totalorder %s19, 1
    %p299 = scmp.ne.s32.totalorder %s294, %s296
    %p300 = scmp.eq.s32.totalorder %s19, 0
    %p301 = por %p299, %p300
    %p302 = scmp.ne.s32.totalorder %s294, %s296
    %p303 = scmp.eq.s32.totalorder %s24, 1
    %p304 = por %p302, %p303
    %p305 = scmp.ne.s32.totalorder %s296, %s297
    %p306 = scmp.eq.s32.totalorder %s24, 0
    %p307 = por %p305, %p306
    %p308 = scmp.ne.s32.totalorder %s296, %s297
    %p309 = scmp.eq.s32.totalorder %s25, 1
    %p310 = por %p308, %p309
    %p312 = scmp.ne.s32.totalorder %s297, %s311
    %p313 = scmp.eq.s32.totalorder %s25, 0
    %p314 = por %p312, %p313
    %s315 = ssub.s32 %s19, %s26
    %p316 = scmp.eq.s32.totalorder %s315, 0
    %s318 = sadd.s32 %s317, 1
    %s319 = scalar_select %p316, %s317, %s318
    %p322 = pneg %p316
    %p323 = scmp.eq.s32.totalorder %s19, 1
    %p324 = por %p322, %p323
    %p325 = scmp.ne.s32.totalorder %s317, %s320
    %p326 = scmp.eq.s32.totalorder %s19, 0
    %p327 = por %p325, %p326
    %p328 = scmp.ne.s32.totalorder %s317, %s320
    %p329 = scmp.eq.s32.totalorder %s24, 1
    %p330 = por %p328, %p329
    %p331 = scmp.ne.s32.totalorder %s320, %s321
    %p332 = scmp.eq.s32.totalorder %s24, 0
    %p333 = por %p331, %p332
    %p334 = scmp.ne.s32.totalorder %s320, %s321
    %p335 = scmp.eq.s32.totalorder %s25, 1
    %p336 = por %p334, %p335
    %p338 = scmp.ne.s32.totalorder %s321, %s337
    %p339 = scmp.eq.s32.totalorder %s25, 0
    %p340 = por %p338, %p339
    %p341 = scmp.le.s32.totalorder 1, %s19
    %p342 = scmp.lt.s32.totalorder %s19, 3
    %p343 = pnand %p341, %p342
    %p344 = pneg %p343
    // Predicated region
    $region9: #{attention_forward.1} parent=5 // pred_check
      _
    $region10: #{attention_forward.1} parent=5 // pred_check_branch
      %346 = sbr.rel (%p343) target = $region12
    $region11: #{attention_forward.1} parent=5 // pred_region
      %s347 = ssub.s32 %s19, 1
      // Predicated region
      $region13: #{attention_forward.1} parent=11 // pred_check
        %p348 = pneg %p118
      $region14: #{attention_forward.1} parent=11 // pred_check_branch
        %350 = sbr.rel (%p348) target = $region16
      $region15: #{attention_forward.1} parent=11 // pred_region
        _
      $region16: #{attention_forward.1} parent=11 // pred_fallthru
        _
      // Predicated region
      $region17: #{attention_forward.1} parent=11 // pred_check
        %p351 = pneg %p139
      $region18: #{attention_forward.1} parent=11 // pred_check_branch
        %353 = sbr.rel (%p351) target = $region20
      $region19: #{attention_forward.1} parent=11 // pred_region
        _
      $region20: #{attention_forward.1} parent=11 // pred_fallthru
        _
      // Predicated region
      $region21: #{attention_forward.1} parent=11 // pred_check
        %p354 = pneg %p160
      $region22: #{attention_forward.1} parent=11 // pred_check_branch
        %356 = sbr.rel (%p354) target = $region24
      $region23: #{attention_forward.1} parent=11 // pred_region
        _
      $region24: #{attention_forward.1} parent=11 // pred_fallthru
        _
      // Predicated region
      $region25: #{attention_forward.1} parent=11 // pred_check
        %p357 = pneg %p181
      $region26: #{attention_forward.1} parent=11 // pred_check_branch
        %359 = sbr.rel (%p357) target = $region28
      $region27: #{attention_forward.1} parent=11 // pred_region
        _
      $region28: #{attention_forward.1} parent=11 // pred_fallthru
        _
      // Predicated region
      $region29: #{attention_forward.1} parent=11 // pred_check
        %p360 = pneg %p202
      $region30: #{attention_forward.1} parent=11 // pred_check_branch
        %362 = sbr.rel (%p360) target = $region32
      $region31: #{attention_forward.1} parent=11 // pred_region
        _
      $region32: #{attention_forward.1} parent=11 // pred_fallthru
        _
      // Predicated region
      $region33: #{attention_forward.1} parent=11 // pred_check
        %p363 = pneg %p223
      $region34: #{attention_forward.1} parent=11 // pred_check_branch
        %365 = sbr.rel (%p363) target = $region36
      $region35: #{attention_forward.1} parent=11 // pred_region
        _
      $region36: #{attention_forward.1} parent=11 // pred_fallthru
        _
      // Predicated region
      $region37: #{attention_forward.1} parent=11 // pred_check
        %p366 = pneg %p244
      $region38: #{attention_forward.1} parent=11 // pred_check_branch
        %368 = sbr.rel (%p366) target = $region40
      $region39: #{attention_forward.1} parent=11 // pred_region
        _
      $region40: #{attention_forward.1} parent=11 // pred_fallthru
        _
      // Predicated region
      $region41: #{attention_forward.1} parent=11 // pred_check
        %p369 = pneg %p265
      $region42: #{attention_forward.1} parent=11 // pred_check_branch
        %371 = sbr.rel (%p369) target = $region44
      $region43: #{attention_forward.1} parent=11 // pred_region
        _
      $region44: #{attention_forward.1} parent=11 // pred_fallthru
        _
      // Predicated region
      $region45: #{attention_forward.1} parent=11 // pred_check
        %p372 = pneg %p286
      $region46: #{attention_forward.1} parent=11 // pred_check_branch
        %374 = sbr.rel (%p372) target = $region48
      $region47: #{attention_forward.1} parent=11 // pred_region
        _
      $region48: #{attention_forward.1} parent=11 // pred_fallthru
        _
      // Predicated region
      $region49: #{attention_forward.1} parent=11 // pred_check
        %p375 = pneg %p307
      $region50: #{attention_forward.1} parent=11 // pred_check_branch
        %377 = sbr.rel (%p375) target = $region52
      $region51: #{attention_forward.1} parent=11 // pred_region
        _
      $region52: #{attention_forward.1} parent=11 // pred_fallthru
        _
    $region12: #{attention_forward.1} parent=5 // pred_fallthru
      _
    %p378 = scmp.lt.s32.totalorder %s19, 2
    // Predicated region
    $region53: #{attention_forward.1} parent=5 // pred_check
      %p379 = pneg %p378
    $region54: #{attention_forward.1} parent=5 // pred_check_branch
      %381 = sbr.rel (%p379) target = $region56
    $region55: #{attention_forward.1} parent=5 // pred_region
      // Predicated region
      $region57: #{attention_forward.1} parent=55 // pred_check
        %p382 = pneg %p39
      $region58: #{attention_forward.1} parent=55 // pred_check_branch
        %384 = sbr.rel (%p382) target = $region60
      $region59: #{attention_forward.1} parent=55 // pred_region
        %p385 = scmp.lt.s32.totalorder %s19, 1
        %s386 = scalar_select %p385, %s19, 1
        %s387 = smul.addr %s386, 8
        %s388 = smul.addr %s387, 8
        %s389 = scalar_lea.vmem %s0, %s388
      $region60: #{attention_forward.1} parent=55 // pred_fallthru
        _
      // Predicated region
      $region61: #{attention_forward.1} parent=55 // pred_check
        %p390 = pneg %p65
      $region62: #{attention_forward.1} parent=55 // pred_check_branch
        %392 = sbr.rel (%p390) target = $region64
      $region63: #{attention_forward.1} parent=55 // pred_region
        %p393 = scmp.lt.s32.totalorder %s19, 1
        %s394 = scalar_select %p393, %s19, 1
        %s395 = smul.addr %s394, 8
        %s396 = smul.addr %s395, 8
        %s397 = scalar_lea.vmem %s1, %s396
      $region64: #{attention_forward.1} parent=55 // pred_fallthru
        _
      // Predicated region
      $region65: #{attention_forward.1} parent=55 // pred_check
        %p398 = pneg %p91
      $region66: #{attention_forward.1} parent=55 // pred_check_branch
        %400 = sbr.rel (%p398) target = $region68
      $region67: #{attention_forward.1} parent=55 // pred_region
        %p401 = scmp.lt.s32.totalorder %s19, 1
        %s402 = scalar_select %p401, %s19, 1
        %s403 = smul.addr %s402, 8
        %s404 = smul.addr %s403, 8
        %s405 = scalar_lea.vmem %s2, %s404
      $region68: #{attention_forward.1} parent=55 // pred_fallthru
        _
    $region56: #{attention_forward.1} parent=5 // pred_fallthru
      _
    %p406 = scmp.le.s32.totalorder 1, %s19
    %p407 = scmp.lt.s32.totalorder %s19, 3
    %p408 = pnand %p406, %p407
    %p409 = pneg %p408
    // Predicated region
    $region69: #{attention_forward.1} parent=5 // pred_check
      _
    $region70: #{attention_forward.1} parent=5 // pred_check_branch
      %411 = sbr.rel (%p408) target = $region72
    $region71: #{attention_forward.1} parent=5 // pred_region
      %s412 = ssub.s32 %s19, 1
      %p413 = scmp.lt.s32.totalorder %s24, 1
      %s414 = scalar_select %p413, %s24, 1
      %s415 = smul.addr %s414, 8
      %s416 = smul.addr %s415, 8
      %s417 = scalar_lea.vmem %s0, %s416
      %p418 = pneg %p45
      %p419 = pneg %p42
      %p420 = scmp.lt.s32.totalorder %s24, 1
      %s421 = scalar_select %p420, %s24, 1
      %s422 = smul.addr %s421, 8
      %s423 = smul.addr %s422, 8
      %s424 = scalar_lea.vmem %s1, %s423
      %p425 = pneg %p71
      %p426 = pneg %p68
      %p427 = scmp.lt.s32.totalorder %s24, 1
      %s428 = scalar_select %p427, %s24, 1
      %s429 = smul.addr %s428, 8
      %s430 = smul.addr %s429, 8
      %s431 = scalar_lea.vmem %s2, %s430
      %p432 = pneg %p97
      %p433 = pneg %p94
      %p434 = pneg %p118
      %p435 = pneg %p115
      %p436 = pneg %p139
      %p437 = pneg %p136
      %p438 = pneg %p160
      %p439 = pneg %p157
      %p440 = pneg %p181
      %p441 = pneg %p178
      %p442 = pneg %p202
      %p443 = pneg %p199
      %p444 = pneg %p223
      %p445 = pneg %p220
      %p446 = pneg %p244
      %p447 = pneg %p241
      %p448 = pneg %p265
      %p449 = pneg %p262
      %p450 = pneg %p286
      %p451 = pneg %p283
      %p452 = pneg %p307
      %p453 = pneg %p304
      %p454 = pneg %p333
      %p455 = pneg %p330
      %p456 = scmp.lt.s32.totalorder %s24, 1
      %s457 = scalar_select %p456, %s24, 1
      %s458 = smul.addr %s457, 8
      %s459 = smul.addr %s458, 8
      %s460 = scalar_lea.vmem %s13, %s459
      %p461 = scmp.lt.s32.totalorder %s24, 1
      %s462 = scalar_select %p461, %s24, 1
      %s463 = smul.addr %s462, 8
      %s464 = smul.addr %s463, 8
      %s465 = scalar_lea.vmem %s0, %s464
      %p466 = scmp.lt.s32.totalorder %s24, 1
      %s467 = scalar_select %p466, %s24, 1
      %s468 = smul.addr %s467, 8
      %s469 = smul.addr %s468, 8
      %s470 = scalar_lea.vmem %s1, %s469
      %p471 = scmp.lt.s32.totalorder %s24, 1
      %s472 = scalar_select %p471, %s24, 1
      %s473 = smul.addr %s472, 8
      %s474 = smul.addr %s473, 8
      %s475 = scalar_lea.vmem %s2, %s474
      %p476 = scmp.lt.s32.totalorder %s24, 1
      %s477 = scalar_select %p476, %s24, 1
      %s478 = smul.addr %s477, 8
      %s479 = smul.addr %s478, 8
      %s480 = scalar_lea.vmem %s13, %s479
      %v482 = vld [vmem:[%s465] sm:$0xff]
      %v483 = vld [vmem:[%s465 + $0x8] sm:$0xff]
      %v484 = vld [vmem:[%s465 + $0x10] sm:$0xff]
      %v485 = vld [vmem:[%s465 + $0x18] sm:$0xff]
      %v486 = vld [vmem:[%s465 + $0x20] sm:$0xff]
      %v487 = vld [vmem:[%s465 + $0x28] sm:$0xff]
      %v488 = vld [vmem:[%s465 + $0x30] sm:$0xff]
      %v489 = vld [vmem:[%s465 + $0x38] sm:$0xff]
      %v490 = vadd.f32 %v482, %v484
      %v491 = vadd.f32 %v490, %v486
      %v492 = vadd.f32 %v491, %v488
      %v493 = vrot.slane %v492, 4
      %v494 = vadd.f32 %v492, %v493
      %v495 = vrot.slane %v494, 2
      %v496 = vadd.f32 %v494, %v495
      %v497 = vrot.slane %v496, 1
      %v498 = vadd.f32 %v496, %v497
      %v499 = vadd.f32 %v483, %v485
      %v500 = vadd.f32 %v499, %v487
      %v501 = vadd.f32 %v500, %v489
      %v502 = vrot.slane %v501, 4
      %v503 = vadd.f32 %v501, %v502
      %v504 = vrot.slane %v503, 2
      %v505 = vadd.f32 %v503, %v504
      %v506 = vrot.slane %v505, 1
      %v507 = vadd.f32 %v505, %v506
      %v508 = vrcp.pop 32.0
      %v509 = vmul.f32 %v498, %v508
      %v510 = vmul.f32 %v507, %v508
      %v511 = vsub.f32 %v482, %v509
      %v512 = vsub.f32 %v483, %v510
      %v513 = vsub.f32 %v484, %v509
      %v514 = vsub.f32 %v485, %v510
      %v515 = vsub.f32 %v486, %v509
      %v516 = vsub.f32 %v487, %v510
      %v517 = vsub.f32 %v488, %v509
      %v518 = vsub.f32 %v489, %v510
      %v519 = vmul.f32 %v511, %v511
      %v520 = vmul.f32 %v512, %v512
      %v521 = vmul.f32 %v513, %v513
      %v522 = vmul.f32 %v514, %v514
      %v523 = vmul.f32 %v515, %v515
      %v524 = vmul.f32 %v516, %v516
      %v525 = vmul.f32 %v517, %v517
      %v526 = vmul.f32 %v518, %v518
      %v527 = vadd.f32 %v519, %v521
      %v528 = vadd.f32 %v527, %v523
      %v529 = vadd.f32 %v528, %v525
      %v530 = vrot.slane %v529, 4
      %v531 = vadd.f32 %v529, %v530
      %v532 = vrot.slane %v531, 2
      %v533 = vadd.f32 %v531, %v532
      %v534 = vrot.slane %v533, 1
      %v535 = vadd.f32 %v533, %v534
      %v536 = vadd.f32 %v520, %v522
      %v537 = vadd.f32 %v536, %v524
      %v538 = vadd.f32 %v537, %v526
      %v539 = vrot.slane %v538, 4
      %v540 = vadd.f32 %v538, %v539
      %v541 = vrot.slane %v540, 2
      %v542 = vadd.f32 %v540, %v541
      %v543 = vrot.slane %v542, 1
      %v544 = vadd.f32 %v542, %v543
      %v545 = vmul.f32 %v535, %v508
      %v546 = vmul.f32 %v544, %v508
      %v547 = vadd.f32 %v545, 1e-05
      %v548 = vadd.f32 %v546, 1e-05
      %v549 = vrsqrt.pop %v547
      %v550 = vrsqrt.pop %v548
      %v551 = vmul.f32 %v511, %v549
      %v552 = vmul.f32 %v512, %v550
      %v553 = vmul.f32 %v513, %v549
      %v554 = vmul.f32 %v514, %v550
      %v555 = vmul.f32 %v515, %v549
      %v556 = vmul.f32 %v516, %v550
      %v557 = vmul.f32 %v517, %v549
      %v558 = vmul.f32 %v518, %v550
      %v559 = vld [vmem:[%s3] sm:$0xff]
      %v560 = vld [vmem:[%s3 + $0x8] sm:$0xff]
      %v561 = vld [vmem:[%s3 + $0x10] sm:$0xff]
      %v562 = vld [vmem:[%s3 + $0x18] sm:$0xff]
      %564 = vset.pattern.permute.xlu0 0
      %565 = vperm.xlu0 %564, %v559
      %v566 = vpop.permute.xlu0 %565
      %569 = vset.pattern.permute.xlu0 0
      %570 = vperm.xlu0 %569, %v560
      %v571 = vpop.permute.xlu0 %570
      %574 = vset.pattern.permute.xlu0 0
      %575 = vperm.xlu0 %574, %v561
      %v576 = vpop.permute.xlu0 %575
      %579 = vset.pattern.permute.xlu0 0
      %580 = vperm.xlu0 %579, %v562
      %v581 = vpop.permute.xlu0 %580
      %v583 = vmul.f32 %v551, %v566
      %v584 = vmul.f32 %v552, %v566
      %v585 = vmul.f32 %v553, %v571
      %v586 = vmul.f32 %v554, %v571
      %v587 = vmul.f32 %v555, %v576
      %v588 = vmul.f32 %v556, %v576
      %v589 = vmul.f32 %v557, %v581
      %v590 = vmul.f32 %v558, %v581
      %v591 = vld [vmem:[%s4] sm:$0xff]
      %v592 = vld [vmem:[%s4 + $0x8] sm:$0xff]
      %v593 = vld [vmem:[%s4 + $0x10] sm:$0xff]
      %v594 = vld [vmem:[%s4 + $0x18] sm:$0xff]
      %596 = vset.pattern.permute.xlu0 0
      %597 = vperm.xlu0 %596, %v591
      %v598 = vpop.permute.xlu0 %597
      %601 = vset.pattern.permute.xlu0 0
      %602 = vperm.xlu0 %601, %v592
      %v603 = vpop.permute.xlu0 %602
      %606 = vset.pattern.permute.xlu0 0
      %607 = vperm.xlu0 %606, %v593
      %v608 = vpop.permute.xlu0 %607
      %611 = vset.pattern.permute.xlu0 0
      %612 = vperm.xlu0 %611, %v594
      %v613 = vpop.permute.xlu0 %612
      %v615 = vadd.f32 %v583, %v598
      %v616 = vadd.f32 %v584, %v598
      %v617 = vadd.f32 %v585, %v603
      %v618 = vadd.f32 %v586, %v603
      %v619 = vadd.f32 %v587, %v608
      %v620 = vadd.f32 %v588, %v608
      %v621 = vadd.f32 %v589, %v613
      %v622 = vadd.f32 %v590, %v613
      %v623 = vld [vmem:[%s5] sm:$0xf]
      %v624 = vld [vmem:[%s5 + $0x4] sm:$0xf]
      %v625 = vld [vmem:[%s5 + $0x8] sm:$0xf]
      %v626 = vld [vmem:[%s5 + $0xc] sm:$0xf]
      %v627 = vld [vmem:[%s5 + $0x10] sm:$0xf]
      %v628 = vld [vmem:[%s5 + $0x14] sm:$0xf]
      %v629 = vld [vmem:[%s5 + $0x18] sm:$0xf]
      %v630 = vld [vmem:[%s5 + $0x1c] sm:$0xf]
      %v631 = vpack.c.bf16 %v617, %v615
      %v632 = vpack.c.bf16 %v618, %v616
      %v633 = vpack.c.bf16 %v621, %v619
      %v634 = vpack.c.bf16 %v622, %v620
      %v635 = vld [vmem:[%s6] sm:$0xff]
      %v636 = vld [vmem:[%s6 + $0x8] sm:$0xff]
      %v637 = vld [vmem:[%s6 + $0x10] sm:$0xff]
      %v638 = vld [vmem:[%s6 + $0x18] sm:$0xff]
      %v639 = vld [vmem:[%s6 + $0x20] sm:$0xff]
      %v640 = vld [vmem:[%s6 + $0x28] sm:$0xff]
      %v641 = vld [vmem:[%s6 + $0x30] sm:$0xff]
      %v642 = vld [vmem:[%s6 + $0x38] sm:$0xff]
      %644 = vset.pattern.permute.xlu0 0
      %645 = vperm.xlu0 %644, %v635
      %v646 = vpop.permute.xlu0 %645
      %649 = vset.pattern.permute.xlu0 0
      %650 = vperm.xlu0 %649, %v636
      %v651 = vpop.permute.xlu0 %650
      %654 = vset.pattern.permute.xlu0 0
      %655 = vperm.xlu0 %654, %v637
      %v656 = vpop.permute.xlu0 %655
      %659 = vset.pattern.permute.xlu0 0
      %660 = vperm.xlu0 %659, %v638
      %v661 = vpop.permute.xlu0 %660
      %664 = vset.pattern.permute.xlu0 0
      %665 = vperm.xlu0 %664, %v639
      %v666 = vpop.permute.xlu0 %665
      %669 = vset.pattern.permute.xlu0 0
      %670 = vperm.xlu0 %669, %v640
      %v671 = vpop.permute.xlu0 %670
      %674 = vset.pattern.permute.xlu0 0
      %675 = vperm.xlu0 %674, %v641
      %v676 = vpop.permute.xlu0 %675
      %679 = vset.pattern.permute.xlu0 0
      %680 = vperm.xlu0 %679, %v642
      %v681 = vpop.permute.xlu0 %680
      %v691 = vunpack.c.l.b16 %v623
      %v692 = vunpack.c.l.b16 %v624
      %v693 = vunpack.c.l.b16 %v625
      %v694 = vunpack.c.l.b16 %v626
      %v695 = vunpack.c.l.b16 %v627
      %v696 = vunpack.c.l.b16 %v628
      %v697 = vunpack.c.l.b16 %v629
      %v698 = vunpack.c.l.b16 %v630
      %v699 = vpack.c.b16 %v692, %v691
      %v700 = vpack.c.b16 %v694, %v693
      %v701 = vpack.c.b16 %v696, %v695
      %v702 = vpack.c.b16 %v698, %v697
      %vm703 = vcmask 261120
      %v705 = vsel %vm703, %v699, 0
      %v708 = vsel %vm703, %v700, 0
      %v711 = vsel %vm703, %v701, 0
      %v714 = vsel %vm703, %v702, 0
      %716 = vmatprep.subr.bf16.mxu0 0
      %717 = vmatpush1.bf16.msra.mxu0 0
      %718 = vmatprep.subr.bf16.mxu0 0
      %719 = vmatpush1.bf16.msra.mxu0 0
      %720 = vmatprep.subr.bf16.mxu0 0
      %721 = vmatpush1.bf16.msra.mxu0 0
      %722 = vmatprep.subr.bf16.mxu0 0
      %723 = vmatpush1.bf16.msra.mxu0 0
      %724 = vmatprep.subr.bf16.mxu0 0
      %725 = vmatpush1.bf16.msra.mxu0 0
      %726 = vmatprep.subr.bf16.mxu0 0
      %727 = vmatpush1.bf16.msra.mxu0 0
      %728 = vmatprep.subr.bf16.mxu0 %v634
      %729 = vmatpush1.bf16.msra.mxu0 %v633
      %730 = vmatprep.subr.bf16.mxu0 %v632
      %731 = vmatpush1.bf16.msra.mxu0 %v631
      %732 = vmatprep.subr.bf16.mxu0 0
      %733 = vmatpush2.bf16.msra.mxu0 0
      %734 = vmatprep.subr.bf16.mxu0 0
      %735 = vmatpush2.bf16.msra.mxu0 0
      %736 = vmatprep.subr.bf16.mxu0 0
      %737 = vmatpush2.bf16.msra.mxu0 0
      %738 = vmatprep.subr.bf16.mxu0 0
      %739 = vmatpush2.bf16.msra.mxu0 0
      %740 = vmatprep.subr.bf16.mxu0 0
      %741 = vmatpush2.bf16.msra.mxu0 0
      %742 = vmatprep.subr.bf16.mxu0 0
      %743 = vmatpush2.bf16.msra.mxu0 0
      %744 = vmatprep.subr.bf16.mxu0 0
      %745 = vmatpush2.bf16.msra.mxu0 0
      %746 = vmatprep.subr.bf16.mxu0 0
      %747 = vmatpush2.bf16.msra.mxu0 0
      %748 = vmatprep.mubr.bf16.mxu0 0
      %749 = vmatmul.mubr.bf16.gmra.mxu0 %v705
      %v750 = vpop.f32.mrf.mxu0
      %v751 = vadd.f32 %v646, %v750
      %v752 = vpop.f32.mrf.mxu0
      %v753 = vadd.f32 %v646, %v752
      %v754 = vpop.f32.mrf.mxu0
      %v755 = vadd.f32 %v651, %v754
      %v756 = vpop.f32.mrf.mxu0
      %v757 = vadd.f32 %v651, %v756
      %758 = vmatprep.mubr.bf16.mxu0 0
      %759 = vmatmul.mubr.bf16.gmra.mxu0 %v708
      %v760 = vpop.f32.mrf.mxu0
      %v761 = vadd.f32 %v656, %v760
      %v762 = vpop.f32.mrf.mxu0
      %v763 = vadd.f32 %v656, %v762
      %v764 = vpop.f32.mrf.mxu0
      %v765 = vadd.f32 %v661, %v764
      %v766 = vpop.f32.mrf.mxu0
      %v767 = vadd.f32 %v661, %v766
      %768 = vmatprep.mubr.bf16.mxu0 0
      %769 = vmatmul.mubr.bf16.gmra.mxu0 %v711
      %v770 = vpop.f32.mrf.mxu0
      %v771 = vadd.f32 %v666, %v770
      %v772 = vpop.f32.mrf.mxu0
      %v773 = vadd.f32 %v666, %v772
      %v774 = vpop.f32.mrf.mxu0
      %v775 = vadd.f32 %v671, %v774
      %v776 = vpop.f32.mrf.mxu0
      %v777 = vadd.f32 %v671, %v776
      %778 = vmatprep.mubr.bf16.mxu0 0
      %779 = vmatmul.mubr.bf16.gmra.mxu0 %v714
      %v780 = vpop.f32.mrf.mxu0
      %v781 = vadd.f32 %v676, %v780
      %v782 = vpop.f32.mrf.mxu0
      %v783 = vadd.f32 %v676, %v782
      %v784 = vpop.f32.mrf.mxu0
      %v785 = vadd.f32 %v681, %v784
      %v786 = vpop.f32.mrf.mxu0
      %v787 = vadd.f32 %v681, %v786
      %788 = vdwg.mxu0
      %vm789 = vcmp.ge.f32.partialorder %v751, 0.0
      %vm790 = vcmp.ge.f32.partialorder %v753, 0.0
      %vm791 = vcmp.ge.f32.partialorder %v755, 0.0
      %vm792 = vcmp.ge.f32.partialorder %v757, 0.0
      %vm793 = vcmp.ge.f32.partialorder %v761, 0.0
      %vm794 = vcmp.ge.f32.partialorder %v763, 0.0
      %vm795 = vcmp.ge.f32.partialorder %v765, 0.0
      %vm796 = vcmp.ge.f32.partialorder %v767, 0.0
      %vm797 = vcmp.ge.f32.partialorder %v771, 0.0
      %vm798 = vcmp.ge.f32.partialorder %v773, 0.0
      %vm799 = vcmp.ge.f32.partialorder %v775, 0.0
      %vm800 = vcmp.ge.f32.partialorder %v777, 0.0
      %vm801 = vcmp.ge.f32.partialorder %v781, 0.0
      %vm802 = vcmp.ge.f32.partialorder %v783, 0.0
      %vm803 = vcmp.ge.f32.partialorder %v785, 0.0
      %vm804 = vcmp.ge.f32.partialorder %v787, 0.0
      %v805 = vmul.f32 %v751, 0.01
      %v806 = vmul.f32 %v753, 0.01
      %v807 = vmul.f32 %v755, 0.01
      %v808 = vmul.f32 %v757, 0.01
      %v809 = vmul.f32 %v761, 0.01
      %v810 = vmul.f32 %v763, 0.01
      %v811 = vmul.f32 %v765, 0.01
      %v812 = vmul.f32 %v767, 0.01
      %v813 = vmul.f32 %v771, 0.01
      %v814 = vmul.f32 %v773, 0.01
      %v815 = vmul.f32 %v775, 0.01
      %v816 = vmul.f32 %v777, 0.01
      %v817 = vmul.f32 %v781, 0.01
      %v818 = vmul.f32 %v783, 0.01
      %v819 = vmul.f32 %v785, 0.01
      %v820 = vmul.f32 %v787, 0.01
      %v821 = vsel %vm789, %v751, %v805
      %v822 = vsel %vm790, %v753, %v806
      %v823 = vsel %vm791, %v755, %v807
      %v824 = vsel %vm792, %v757, %v808
      %v825 = vsel %vm793, %v761, %v809
      %v826 = vsel %vm794, %v763, %v810
      %v827 = vsel %vm795, %v765, %v811
      %v828 = vsel %vm796, %v767, %v812
      %v829 = vsel %vm797, %v771, %v813
      %v830 = vsel %vm798, %v773, %v814
      %v831 = vsel %vm799, %v775, %v815
      %v832 = vsel %vm800, %v777, %v816
      %v833 = vsel %vm801, %v781, %v817
      %v834 = vsel %vm802, %v783, %v818
      %v835 = vsel %vm803, %v785, %v819
      %v836 = vsel %vm804, %v787, %v820
      %v837 = vld [vmem:[%s7] sm:$0xf]
      %v838 = vld [vmem:[%s7 + $0x4] sm:$0xf]
      %v839 = vld [vmem:[%s7 + $0x8] sm:$0xf]
      %v840 = vld [vmem:[%s7 + $0xc] sm:$0xf]
      %v841 = vpack.c.bf16 %v823, %v821
      %v842 = vpack.c.bf16 %v824, %v822
      %v843 = vpack.c.bf16 %v827, %v825
      %v844 = vpack.c.bf16 %v828, %v826
      %v845 = vpack.c.bf16 %v831, %v829
      %v846 = vpack.c.bf16 %v832, %v830
      %v847 = vpack.c.bf16 %v835, %v833
      %v848 = vpack.c.bf16 %v836, %v834
      %v849 = vld [vmem:[%s8] sm:$0xff]
      %v850 = vld [vmem:[%s8 + $0x8] sm:$0xff]
      %v851 = vld [vmem:[%s8 + $0x10] sm:$0xff]
      %v852 = vld [vmem:[%s8 + $0x18] sm:$0xff]
      %854 = vset.pattern.permute.xlu0 0
      %855 = vperm.xlu0 %854, %v849
      %v856 = vpop.permute.xlu0 %855
      %859 = vset.pattern.permute.xlu0 0
      %860 = vperm.xlu0 %859, %v850
      %v861 = vpop.permute.xlu0 %860
      %864 = vset.pattern.permute.xlu0 0
      %865 = vperm.xlu0 %864, %v851
      %v866 = vpop.permute.xlu0 %865
      %869 = vset.pattern.permute.xlu0 0
      %870 = vperm.xlu0 %869, %v852
      %v871 = vpop.permute.xlu0 %870
      %v877 = vunpack.c.l.b16 %v837
      %v878 = vunpack.c.l.b16 %v838
      %v879 = vunpack.c.l.b16 %v839
      %v880 = vunpack.c.l.b16 %v840
      %v881 = vpack.c.b16 %v878, %v877
      %v882 = vpack.c.b16 %v880, %v879
      %vm883 = vcmask 523264
      %v885 = vsel %vm883, %v881, 0
      %v888 = vsel %vm883, %v882, 0
      %890 = vmatprep.subr.bf16.mxu0 0
      %891 = vmatpush1.bf16.msra.mxu0 0
      %892 = vmatprep.subr.bf16.mxu0 0
      %893 = vmatpush1.bf16.msra.mxu0 0
      %894 = vmatprep.subr.bf16.mxu0 0
      %895 = vmatpush1.bf16.msra.mxu0 0
      %896 = vmatprep.subr.bf16.mxu0 0
      %897 = vmatpush1.bf16.msra.mxu0 0
      %898 = vmatprep.subr.bf16.mxu0 %v848
      %899 = vmatpush1.bf16.msra.mxu0 %v847
      %900 = vmatprep.subr.bf16.mxu0 %v846
      %901 = vmatpush1.bf16.msra.mxu0 %v845
      %902 = vmatprep.subr.bf16.mxu0 %v844
      %903 = vmatpush1.bf16.msra.mxu0 %v843
      %904 = vmatprep.subr.bf16.mxu0 %v842
      %905 = vmatpush1.bf16.msra.mxu0 %v841
      %906 = vmatprep.subr.bf16.mxu0 0
      %907 = vmatpush2.bf16.msra.mxu0 0
      %908 = vmatprep.subr.bf16.mxu0 0
      %909 = vmatpush2.bf16.msra.mxu0 0
      %910 = vmatprep.subr.bf16.mxu0 0
      %911 = vmatpush2.bf16.msra.mxu0 0
      %912 = vmatprep.subr.bf16.mxu0 0
      %913 = vmatpush2.bf16.msra.mxu0 0
      %914 = vmatprep.subr.bf16.mxu0 0
      %915 = vmatpush2.bf16.msra.mxu0 0
      %916 = vmatprep.subr.bf16.mxu0 0
      %917 = vmatpush2.bf16.msra.mxu0 0
      %918 = vmatprep.subr.bf16.mxu0 0
      %919 = vmatpush2.bf16.msra.mxu0 0
      %920 = vmatprep.subr.bf16.mxu0 0
      %921 = vmatpush2.bf16.msra.mxu0 0
      %922 = vmatprep.mubr.bf16.mxu0 0
      %923 = vmatmul.mubr.bf16.gmra.mxu0 %v885
      %v924 = vpop.f32.mrf.mxu0
      %v925 = vadd.f32 %v856, %v924
      %v926 = vpop.f32.mrf.mxu0
      %v927 = vadd.f32 %v856, %v926
      %v928 = vpop.f32.mrf.mxu0
      %v929 = vadd.f32 %v861, %v928
      %v930 = vpop.f32.mrf.mxu0
      %v931 = vadd.f32 %v861, %v930
      %932 = vmatprep.mubr.bf16.mxu0 0
      %933 = vmatmul.mubr.bf16.gmra.mxu0 %v888
      %v934 = vpop.f32.mrf.mxu0
      %v935 = vadd.f32 %v866, %v934
      %v936 = vpop.f32.mrf.mxu0
      %v937 = vadd.f32 %v866, %v936
      %v938 = vpop.f32.mrf.mxu0
      %v939 = vadd.f32 %v871, %v938
      %v940 = vpop.f32.mrf.mxu0
      %v941 = vadd.f32 %v871, %v940
      %942 = vdwg.mxu0
      %v943 = vmul.f32 %v925, 0.35355338
      %v944 = vmul.f32 %v927, 0.35355338
      %v945 = vmul.f32 %v929, 0.35355338
      %v946 = vmul.f32 %v931, 0.35355338
      %v947 = vmul.f32 %v935, 0.35355338
      %v948 = vmul.f32 %v937, 0.35355338
      %v949 = vmul.f32 %v939, 0.35355338
      %v950 = vmul.f32 %v941, 0.35355338
      %v951 = vld [vmem:[%s470] sm:$0xff]
      %v952 = vld [vmem:[%s470 + $0x8] sm:$0xff]
      %v953 = vld [vmem:[%s470 + $0x10] sm:$0xff]
      %v954 = vld [vmem:[%s470 + $0x18] sm:$0xff]
      %v955 = vld [vmem:[%s470 + $0x20] sm:$0xff]
      %v956 = vld [vmem:[%s470 + $0x28] sm:$0xff]
      %v957 = vld [vmem:[%s470 + $0x30] sm:$0xff]
      %v958 = vld [vmem:[%s470 + $0x38] sm:$0xff]
      %v959 = vadd.f32 %v951, %v953
      %v960 = vadd.f32 %v959, %v955
      %v961 = vadd.f32 %v960, %v957
      %v962 = vrot.slane %v961, 4
      %v963 = vadd.f32 %v961, %v962
      %v964 = vrot.slane %v963, 2
      %v965 = vadd.f32 %v963, %v964
      %v966 = vrot.slane %v965, 1
      %v967 = vadd.f32 %v965, %v966
      %v968 = vadd.f32 %v952, %v954
      %v969 = vadd.f32 %v968, %v956
      %v970 = vadd.f32 %v969, %v958
      %v971 = vrot.slane %v970, 4
      %v972 = vadd.f32 %v970, %v971
      %v973 = vrot.slane %v972, 2
      %v974 = vadd.f32 %v972, %v973
      %v975 = vrot.slane %v974, 1
      %v976 = vadd.f32 %v974, %v975
      %v977 = vmul.f32 %v967, %v508
      %v978 = vmul.f32 %v976, %v508
      %v979 = vsub.f32 %v951, %v977
      %v980 = vsub.f32 %v952, %v978
      %v981 = vsub.f32 %v953, %v977
      %v982 = vsub.f32 %v954, %v978
      %v983 = vsub.f32 %v955, %v977
      %v984 = vsub.f32 %v956, %v978
      %v985 = vsub.f32 %v957, %v977
      %v986 = vsub.f32 %v958, %v978
      %v987 = vmul.f32 %v979, %v979
      %v988 = vmul.f32 %v980, %v980
      %v989 = vmul.f32 %v981, %v981
      %v990 = vmul.f32 %v982, %v982
      %v991 = vmul.f32 %v983, %v983
      %v992 = vmul.f32 %v984, %v984
      %v993 = vmul.f32 %v985, %v985
      %v994 = vmul.f32 %v986, %v986
      %v995 = vadd.f32 %v987, %v989
      %v996 = vadd.f32 %v995, %v991
      %v997 = vadd.f32 %v996, %v993
      %v998 = vrot.slane %v997, 4
      %v999 = vadd.f32 %v997, %v998
      %v1000 = vrot.slane %v999, 2
      %v1001 = vadd.f32 %v999, %v1000
      %v1002 = vrot.slane %v1001, 1
      %v1003 = vadd.f32 %v1001, %v1002
      %v1004 = vadd.f32 %v988, %v990
      %v1005 = vadd.f32 %v1004, %v992
      %v1006 = vadd.f32 %v1005, %v994
      %v1007 = vrot.slane %v1006, 4
      %v1008 = vadd.f32 %v1006, %v1007
      %v1009 = vrot.slane %v1008, 2
      %v1010 = vadd.f32 %v1008, %v1009
      %v1011 = vrot.slane %v1010, 1
      %v1012 = vadd.f32 %v1010, %v1011
      %v1013 = vmul.f32 %v1003, %v508
      %v1014 = vmul.f32 %v1012, %v508
      %v1015 = vadd.f32 %v1013, 1e-05
      %v1016 = vadd.f32 %v1014, 1e-05
      %v1017 = vrsqrt.pop %v1015
      %v1018 = vrsqrt.pop %v1016
      %v1019 = vmul.f32 %v979, %v1017
      %v1020 = vmul.f32 %v980, %v1018
      %v1021 = vmul.f32 %v981, %v1017
      %v1022 = vmul.f32 %v982, %v1018
      %v1023 = vmul.f32 %v983, %v1017
      %v1024 = vmul.f32 %v984, %v1018
      %v1025 = vmul.f32 %v985, %v1017
      %v1026 = vmul.f32 %v986, %v1018
      %s1027 = scalar_lea.vmem %s3, 32
      %v1028 = vld [vmem:[%s1027] sm:$0xff]
      %v1029 = vld [vmem:[%s1027 + $0x8] sm:$0xff]
      %v1030 = vld [vmem:[%s1027 + $0x10] sm:$0xff]
      %v1031 = vld [vmem:[%s1027 + $0x18] sm:$0xff]
      %1033 = vset.pattern.permute.xlu0 0
      %1034 = vperm.xlu0 %1033, %v1028
      %v1035 = vpop.permute.xlu0 %1034
      %1038 = vset.pattern.permute.xlu0 0
      %1039 = vperm.xlu0 %1038, %v1029
      %v1040 = vpop.permute.xlu0 %1039
      %1043 = vset.pattern.permute.xlu0 0
      %1044 = vperm.xlu0 %1043, %v1030
      %v1045 = vpop.permute.xlu0 %1044
      %1048 = vset.pattern.permute.xlu0 0
      %1049 = vperm.xlu0 %1048, %v1031
      %v1050 = vpop.permute.xlu0 %1049
      %v1052 = vmul.f32 %v1019, %v1035
      %v1053 = vmul.f32 %v1020, %v1035
      %v1054 = vmul.f32 %v1021, %v1040
      %v1055 = vmul.f32 %v1022, %v1040
      %v1056 = vmul.f32 %v1023, %v1045
      %v1057 = vmul.f32 %v1024, %v1045
      %v1058 = vmul.f32 %v1025, %v1050
      %v1059 = vmul.f32 %v1026, %v1050
      %s1060 = scalar_lea.vmem %s4, 32
      %v1061 = vld [vmem:[%s1060] sm:$0xff]
      %v1062 = vld [vmem:[%s1060 + $0x8] sm:$0xff]
      %v1063 = vld [vmem:[%s1060 + $0x10] sm:$0xff]
      %v1064 = vld [vmem:[%s1060 + $0x18] sm:$0xff]
      %1066 = vset.pattern.permute.xlu0 0
      %1067 = vperm.xlu0 %1066, %v1061
      %v1068 = vpop.permute.xlu0 %1067
      %1071 = vset.pattern.permute.xlu0 0
      %1072 = vperm.xlu0 %1071, %v1062
      %v1073 = vpop.permute.xlu0 %1072
      %1076 = vset.pattern.permute.xlu0 0
      %1077 = vperm.xlu0 %1076, %v1063
      %v1078 = vpop.permute.xlu0 %1077
      %1081 = vset.pattern.permute.xlu0 0
      %1082 = vperm.xlu0 %1081, %v1064
      %v1083 = vpop.permute.xlu0 %1082
      %v1085 = vadd.f32 %v1052, %v1068
      %v1086 = vadd.f32 %v1053, %v1068
      %v1087 = vadd.f32 %v1054, %v1073
      %v1088 = vadd.f32 %v1055, %v1073
      %v1089 = vadd.f32 %v1056, %v1078
      %v1090 = vadd.f32 %v1057, %v1078
      %v1091 = vadd.f32 %v1058, %v1083
      %v1092 = vadd.f32 %v1059, %v1083
      %s1093 = scalar_lea.vmem %s5, 32
      %v1094 = vld [vmem:[%s1093] sm:$0xf]
      %v1095 = vld [vmem:[%s1093 + $0x4] sm:$0xf]
      %v1096 = vld [vmem:[%s1093 + $0x8] sm:$0xf]
      %v1097 = vld [vmem:[%s1093 + $0xc] sm:$0xf]
      %v1098 = vld [vmem:[%s1093 + $0x10] sm:$0xf]
      %v1099 = vld [vmem:[%s1093 + $0x14] sm:$0xf]
      %v1100 = vld [vmem:[%s1093 + $0x18] sm:$0xf]
      %v1101 = vld [vmem:[%s1093 + $0x1c] sm:$0xf]
      %v1102 = vpack.c.bf16 %v1087, %v1085
      %v1103 = vpack.c.bf16 %v1088, %v1086
      %v1104 = vpack.c.bf16 %v1091, %v1089
      %v1105 = vpack.c.bf16 %v1092, %v1090
      %s1106 = scalar_lea.vmem %s6, 64
      %v1107 = vld [vmem:[%s1106] sm:$0xff]
      %v1108 = vld [vmem:[%s1106 + $0x8] sm:$0xff]
      %v1109 = vld [vmem:[%s1106 + $0x10] sm:$0xff]
      %v1110 = vld [vmem:[%s1106 + $0x18] sm:$0xff]
      %v1111 = vld [vmem:[%s1106 + $0x20] sm:$0xff]
      %v1112 = vld [vmem:[%s1106 + $0x28] sm:$0xff]
      %v1113 = vld [vmem:[%s1106 + $0x30] sm:$0xff]
      %v1114 = vld [vmem:[%s1106 + $0x38] sm:$0xff]
      %1116 = vset.pattern.permute.xlu0 0
      %1117 = vperm.xlu0 %1116, %v1107
      %v1118 = vpop.permute.xlu0 %1117
      %1121 = vset.pattern.permute.xlu0 0
      %1122 = vperm.xlu0 %1121, %v1108
      %v1123 = vpop.permute.xlu0 %1122
      %1126 = vset.pattern.permute.xlu0 0
      %1127 = vperm.xlu0 %1126, %v1109
      %v1128 = vpop.permute.xlu0 %1127
      %1131 = vset.pattern.permute.xlu0 0
      %1132 = vperm.xlu0 %1131, %v1110
      %v1133 = vpop.permute.xlu0 %1132
      %1136 = vset.pattern.permute.xlu0 0
      %1137 = vperm.xlu0 %1136, %v1111
      %v1138 = vpop.permute.xlu0 %1137
      %1141 = vset.pattern.permute.xlu0 0
      %1142 = vperm.xlu0 %1141, %v1112
      %v1143 = vpop.permute.xlu0 %1142
      %1146 = vset.pattern.permute.xlu0 0
      %1147 = vperm.xlu0 %1146, %v1113
      %v1148 = vpop.permute.xlu0 %1147
      %1151 = vset.pattern.permute.xlu0 0
      %1152 = vperm.xlu0 %1151, %v1114
      %v1153 = vpop.permute.xlu0 %1152
      %v1163 = vunpack.c.l.b16 %v1094
      %v1164 = vunpack.c.l.b16 %v1095
      %v1165 = vunpack.c.l.b16 %v1096
      %v1166 = vunpack.c.l.b16 %v1097
      %v1167 = vunpack.c.l.b16 %v1098
      %v1168 = vunpack.c.l.b16 %v1099
      %v1169 = vunpack.c.l.b16 %v1100
      %v1170 = vunpack.c.l.b16 %v1101
      %v1171 = vpack.c.b16 %v1164, %v1163
      %v1172 = vpack.c.b16 %v1166, %v1165
      %v1173 = vpack.c.b16 %v1168, %v1167
      %v1174 = vpack.c.b16 %v1170, %v1169
      %v1176 = vsel %vm703, %v1171, 0
      %v1179 = vsel %vm703, %v1172, 0
      %v1182 = vsel %vm703, %v1173, 0
      %v1185 = vsel %vm703, %v1174, 0
      %1187 = vmatprep.subr.bf16.mxu0 0
      %1188 = vmatpush1.bf16.msra.mxu0 0
      %1189 = vmatprep.subr.bf16.mxu0 0
      %1190 = vmatpush1.bf16.msra.mxu0 0
      %1191 = vmatprep.subr.bf16.mxu0 0
      %1192 = vmatpush1.bf16.msra.mxu0 0
      %1193 = vmatprep.subr.bf16.mxu0 0
      %1194 = vmatpush1.bf16.msra.mxu0 0
      %1195 = vmatprep.subr.bf16.mxu0 0
      %1196 = vmatpush1.bf16.msra.mxu0 0
      %1197 = vmatprep.subr.bf16.mxu0 0
      %1198 = vmatpush1.bf16.msra.mxu0 0
      %1199 = vmatprep.subr.bf16.mxu0 %v1105
      %1200 = vmatpush1.bf16.msra.mxu0 %v1104
      %1201 = vmatprep.subr.bf16.mxu0 %v1103
      %1202 = vmatpush1.bf16.msra.mxu0 %v1102
      %1203 = vmatprep.subr.bf16.mxu0 0
      %1204 = vmatpush2.bf16.msra.mxu0 0
      %1205 = vmatprep.subr.bf16.mxu0 0
      %1206 = vmatpush2.bf16.msra.mxu0 0
      %1207 = vmatprep.subr.bf16.mxu0 0
      %1208 = vmatpush2.bf16.msra.mxu0 0
      %1209 = vmatprep.subr.bf16.mxu0 0
      %1210 = vmatpush2.bf16.msra.mxu0 0
      %1211 = vmatprep.subr.bf16.mxu0 0
      %1212 = vmatpush2.bf16.msra.mxu0 0
      %1213 = vmatprep.subr.bf16.mxu0 0
      %1214 = vmatpush2.bf16.msra.mxu0 0
      %1215 = vmatprep.subr.bf16.mxu0 0
      %1216 = vmatpush2.bf16.msra.mxu0 0
      %1217 = vmatprep.subr.bf16.mxu0 0
      %1218 = vmatpush2.bf16.msra.mxu0 0
      %1219 = vmatprep.mubr.bf16.mxu0 0
      %1220 = vmatmul.mubr.bf16.gmra.mxu0 %v1176
      %v1221 = vpop.f32.mrf.mxu0
      %v1222 = vadd.f32 %v1118, %v1221
      %v1223 = vpop.f32.mrf.mxu0
      %v1224 = vadd.f32 %v1118, %v1223
      %v1225 = vpop.f32.mrf.mxu0
      %v1226 = vadd.f32 %v1123, %v1225
      %v1227 = vpop.f32.mrf.mxu0
      %v1228 = vadd.f32 %v1123, %v1227
      %1229 = vmatprep.mubr.bf16.mxu0 0
      %1230 = vmatmul.mubr.bf16.gmra.mxu0 %v1179
      %v1231 = vpop.f32.mrf.mxu0
      %v1232 = vadd.f32 %v1128, %v1231
      %v1233 = vpop.f32.mrf.mxu0
      %v1234 = vadd.f32 %v1128, %v1233
      %v1235 = vpop.f32.mrf.mxu0
      %v1236 = vadd.f32 %v1133, %v1235
      %v1237 = vpop.f32.mrf.mxu0
      %v1238 = vadd.f32 %v1133, %v1237
      %1239 = vmatprep.mubr.bf16.mxu0 0
      %1240 = vmatmul.mubr.bf16.gmra.mxu0 %v1182
      %v1241 = vpop.f32.mrf.mxu0
      %v1242 = vadd.f32 %v1138, %v1241
      %v1243 = vpop.f32.mrf.mxu0
      %v1244 = vadd.f32 %v1138, %v1243
      %v1245 = vpop.f32.mrf.mxu0
      %v1246 = vadd.f32 %v1143, %v1245
      %v1247 = vpop.f32.mrf.mxu0
      %v1248 = vadd.f32 %v1143, %v1247
      %1249 = vmatprep.mubr.bf16.mxu0 0
      %1250 = vmatmul.mubr.bf16.gmra.mxu0 %v1185
      %v1251 = vpop.f32.mrf.mxu0
      %v1252 = vadd.f32 %v1148, %v1251
      %v1253 = vpop.f32.mrf.mxu0
      %v1254 = vadd.f32 %v1148, %v1253
      %v1255 = vpop.f32.mrf.mxu0
      %v1256 = vadd.f32 %v1153, %v1255
      %v1257 = vpop.f32.mrf.mxu0
      %v1258 = vadd.f32 %v1153, %v1257
      %1259 = vdwg.mxu0
      %vm1260 = vcmp.ge.f32.partialorder %v1222, 0.0
      %vm1261 = vcmp.ge.f32.partialorder %v1224, 0.0
      %vm1262 = vcmp.ge.f32.partialorder %v1226, 0.0
      %vm1263 = vcmp.ge.f32.partialorder %v1228, 0.0
      %vm1264 = vcmp.ge.f32.partialorder %v1232, 0.0
      %vm1265 = vcmp.ge.f32.partialorder %v1234, 0.0
      %vm1266 = vcmp.ge.f32.partialorder %v1236, 0.0
      %vm1267 = vcmp.ge.f32.partialorder %v1238, 0.0
      %vm1268 = vcmp.ge.f32.partialorder %v1242, 0.0
      %vm1269 = vcmp.ge.f32.partialorder %v1244, 0.0
      %vm1270 = vcmp.ge.f32.partialorder %v1246, 0.0
      %vm1271 = vcmp.ge.f32.partialorder %v1248, 0.0
      %vm1272 = vcmp.ge.f32.partialorder %v1252, 0.0
      %vm1273 = vcmp.ge.f32.partialorder %v1254, 0.0
      %vm1274 = vcmp.ge.f32.partialorder %v1256, 0.0
      %vm1275 = vcmp.ge.f32.partialorder %v1258, 0.0
      %v1276 = vmul.f32 %v1222, 0.01
      %v1277 = vmul.f32 %v1224, 0.01
      %v1278 = vmul.f32 %v1226, 0.01
      %v1279 = vmul.f32 %v1228, 0.01
      %v1280 = vmul.f32 %v1232, 0.01
      %v1281 = vmul.f32 %v1234, 0.01
      %v1282 = vmul.f32 %v1236, 0.01
      %v1283 = vmul.f32 %v1238, 0.01
      %v1284 = vmul.f32 %v1242, 0.01
      %v1285 = vmul.f32 %v1244, 0.01
      %v1286 = vmul.f32 %v1246, 0.01
      %v1287 = vmul.f32 %v1248, 0.01
      %v1288 = vmul.f32 %v1252, 0.01
      %v1289 = vmul.f32 %v1254, 0.01
      %v1290 = vmul.f32 %v1256, 0.01
      %v1291 = vmul.f32 %v1258, 0.01
      %v1292 = vsel %vm1260, %v1222, %v1276
      %v1293 = vsel %vm1261, %v1224, %v1277
      %v1294 = vsel %vm1262, %v1226, %v1278
      %v1295 = vsel %vm1263, %v1228, %v1279
      %v1296 = vsel %vm1264, %v1232, %v1280
      %v1297 = vsel %vm1265, %v1234, %v1281
      %v1298 = vsel %vm1266, %v1236, %v1282
      %v1299 = vsel %vm1267, %v1238, %v1283
      %v1300 = vsel %vm1268, %v1242, %v1284
      %v1301 = vsel %vm1269, %v1244, %v1285
      %v1302 = vsel %vm1270, %v1246, %v1286
      %v1303 = vsel %vm1271, %v1248, %v1287
      %v1304 = vsel %vm1272, %v1252, %v1288
      %v1305 = vsel %vm1273, %v1254, %v1289
      %v1306 = vsel %vm1274, %v1256, %v1290
      %v1307 = vsel %vm1275, %v1258, %v1291
      %s1308 = scalar_lea.vmem %s7, 16
      %v1309 = vld [vmem:[%s1308] sm:$0xf]
      %v1310 = vld [vmem:[%s1308 + $0x4] sm:$0xf]
      %v1311 = vld [vmem:[%s1308 + $0x8] sm:$0xf]
      %v1312 = vld [vmem:[%s1308 + $0xc] sm:$0xf]
      %v1313 = vpack.c.bf16 %v1294, %v1292
      %v1314 = vpack.c.bf16 %v1295, %v1293
      %v1315 = vpack.c.bf16 %v1298, %v1296
      %v1316 = vpack.c.bf16 %v1299, %v1297
      %v1317 = vpack.c.bf16 %v1302, %v1300
      %v1318 = vpack.c.bf16 %v1303, %v1301
      %v1319 = vpack.c.bf16 %v1306, %v1304
      %v1320 = vpack.c.bf16 %v1307, %v1305
      %s1321 = scalar_lea.vmem %s8, 32
      %v1322 = vld [vmem:[%s1321] sm:$0xff]
      %v1323 = vld [vmem:[%s1321 + $0x8] sm:$0xff]
      %v1324 = vld [vmem:[%s1321 + $0x10] sm:$0xff]
      %v1325 = vld [vmem:[%s1321 + $0x18] sm:$0xff]
      %1327 = vset.pattern.permute.xlu0 0
      %1328 = vperm.xlu0 %1327, %v1322
      %v1329 = vpop.permute.xlu0 %1328
      %1332 = vset.pattern.permute.xlu0 0
      %1333 = vperm.xlu0 %1332, %v1323
      %v1334 = vpop.permute.xlu0 %1333
      %1337 = vset.pattern.permute.xlu0 0
      %1338 = vperm.xlu0 %1337, %v1324
      %v1339 = vpop.permute.xlu0 %1338
      %1342 = vset.pattern.permute.xlu0 0
      %1343 = vperm.xlu0 %1342, %v1325
      %v1344 = vpop.permute.xlu0 %1343
      %v1350 = vunpack.c.l.b16 %v1309
      %v1351 = vunpack.c.l.b16 %v1310
      %v1352 = vunpack.c.l.b16 %v1311
      %v1353 = vunpack.c.l.b16 %v1312
      %v1354 = vpack.c.b16 %v1351, %v1350
      %v1355 = vpack.c.b16 %v1353, %v1352
      %v1357 = vsel %vm883, %v1354, 0
      %v1360 = vsel %vm883, %v1355, 0
      %1362 = vmatprep.subr.bf16.mxu0 0
      %1363 = vmatpush1.bf16.msra.mxu0 0
      %1364 = vmatprep.subr.bf16.mxu0 0
      %1365 = vmatpush1.bf16.msra.mxu0 0
      %1366 = vmatprep.subr.bf16.mxu0 0
      %1367 = vmatpush1.bf16.msra.mxu0 0
      %1368 = vmatprep.subr.bf16.mxu0 0
      %1369 = vmatpush1.bf16.msra.mxu0 0
      %1370 = vmatprep.subr.bf16.mxu0 %v1320
      %1371 = vmatpush1.bf16.msra.mxu0 %v1319
      %1372 = vmatprep.subr.bf16.mxu0 %v1318
      %1373 = vmatpush1.bf16.msra.mxu0 %v1317
      %1374 = vmatprep.subr.bf16.mxu0 %v1316
      %1375 = vmatpush1.bf16.msra.mxu0 %v1315
      %1376 = vmatprep.subr.bf16.mxu0 %v1314
      %1377 = vmatpush1.bf16.msra.mxu0 %v1313
      %1378 = vmatprep.subr.bf16.mxu0 0
      %1379 = vmatpush2.bf16.msra.mxu0 0
      %1380 = vmatprep.subr.bf16.mxu0 0
      %1381 = vmatpush2.bf16.msra.mxu0 0
      %1382 = vmatprep.subr.bf16.mxu0 0
      %1383 = vmatpush2.bf16.msra.mxu0 0
      %1384 = vmatprep.subr.bf16.mxu0 0
      %1385 = vmatpush2.bf16.msra.mxu0 0
      %1386 = vmatprep.subr.bf16.mxu0 0
      %1387 = vmatpush2.bf16.msra.mxu0 0
      %1388 = vmatprep.subr.bf16.mxu0 0
      %1389 = vmatpush2.bf16.msra.mxu0 0
      %1390 = vmatprep.subr.bf16.mxu0 0
      %1391 = vmatpush2.bf16.msra.mxu0 0
      %1392 = vmatprep.subr.bf16.mxu0 0
      %1393 = vmatpush2.bf16.msra.mxu0 0
      %1394 = vmatprep.mubr.bf16.mxu0 0
      %1395 = vmatmul.mubr.bf16.gmra.mxu0 %v1357
      %v1396 = vpop.f32.mrf.mxu0
      %v1397 = vadd.f32 %v1329, %v1396
      %v1398 = vpop.f32.mrf.mxu0
      %v1399 = vadd.f32 %v1329, %v1398
      %v1400 = vpop.f32.mrf.mxu0
      %v1401 = vadd.f32 %v1334, %v1400
      %v1402 = vpop.f32.mrf.mxu0
      %v1403 = vadd.f32 %v1334, %v1402
      %1404 = vmatprep.mubr.bf16.mxu0 0
      %1405 = vmatmul.mubr.bf16.gmra.mxu0 %v1360
      %v1406 = vpop.f32.mrf.mxu0
      %v1407 = vadd.f32 %v1339, %v1406
      %v1408 = vpop.f32.mrf.mxu0
      %v1409 = vadd.f32 %v1339, %v1408
      %v1410 = vpop.f32.mrf.mxu0
      %v1411 = vadd.f32 %v1344, %v1410
      %v1412 = vpop.f32.mrf.mxu0
      %v1413 = vadd.f32 %v1344, %v1412
      %1414 = vdwg.mxu0
      %v1415 = vld [vmem:[%s475] sm:$0xff]
      %v1416 = vld [vmem:[%s475 + $0x8] sm:$0xff]
      %v1417 = vld [vmem:[%s475 + $0x10] sm:$0xff]
      %v1418 = vld [vmem:[%s475 + $0x18] sm:$0xff]
      %v1419 = vld [vmem:[%s475 + $0x20] sm:$0xff]
      %v1420 = vld [vmem:[%s475 + $0x28] sm:$0xff]
      %v1421 = vld [vmem:[%s475 + $0x30] sm:$0xff]
      %v1422 = vld [vmem:[%s475 + $0x38] sm:$0xff]
      %v1423 = vadd.f32 %v1415, %v1417
      %v1424 = vadd.f32 %v1423, %v1419
      %v1425 = vadd.f32 %v1424, %v1421
      %v1426 = vrot.slane %v1425, 4
      %v1427 = vadd.f32 %v1425, %v1426
      %v1428 = vrot.slane %v1427, 2
      %v1429 = vadd.f32 %v1427, %v1428
      %v1430 = vrot.slane %v1429, 1
      %v1431 = vadd.f32 %v1429, %v1430
      %v1432 = vadd.f32 %v1416, %v1418
      %v1433 = vadd.f32 %v1432, %v1420
      %v1434 = vadd.f32 %v1433, %v1422
      %v1435 = vrot.slane %v1434, 4
      %v1436 = vadd.f32 %v1434, %v1435
      %v1437 = vrot.slane %v1436, 2
      %v1438 = vadd.f32 %v1436, %v1437
      %v1439 = vrot.slane %v1438, 1
      %v1440 = vadd.f32 %v1438, %v1439
      %v1441 = vmul.f32 %v1431, %v508
      %v1442 = vmul.f32 %v1440, %v508
      %v1443 = vsub.f32 %v1415, %v1441
      %v1444 = vsub.f32 %v1416, %v1442
      %v1445 = vsub.f32 %v1417, %v1441
      %v1446 = vsub.f32 %v1418, %v1442
      %v1447 = vsub.f32 %v1419, %v1441
      %v1448 = vsub.f32 %v1420, %v1442
      %v1449 = vsub.f32 %v1421, %v1441
      %v1450 = vsub.f32 %v1422, %v1442
      %v1451 = vmul.f32 %v1443, %v1443
      %v1452 = vmul.f32 %v1444, %v1444
      %v1453 = vmul.f32 %v1445, %v1445
      %v1454 = vmul.f32 %v1446, %v1446
      %v1455 = vmul.f32 %v1447, %v1447
      %v1456 = vmul.f32 %v1448, %v1448
      %v1457 = vmul.f32 %v1449, %v1449
      %v1458 = vmul.f32 %v1450, %v1450
      %v1459 = vadd.f32 %v1451, %v1453
      %v1460 = vadd.f32 %v1459, %v1455
      %v1461 = vadd.f32 %v1460, %v1457
      %v1462 = vrot.slane %v1461, 4
      %v1463 = vadd.f32 %v1461, %v1462
      %v1464 = vrot.slane %v1463, 2
      %v1465 = vadd.f32 %v1463, %v1464
      %v1466 = vrot.slane %v1465, 1
      %v1467 = vadd.f32 %v1465, %v1466
      %v1468 = vadd.f32 %v1452, %v1454
      %v1469 = vadd.f32 %v1468, %v1456
      %v1470 = vadd.f32 %v1469, %v1458
      %v1471 = vrot.slane %v1470, 4
      %v1472 = vadd.f32 %v1470, %v1471
      %v1473 = vrot.slane %v1472, 2
      %v1474 = vadd.f32 %v1472, %v1473
      %v1475 = vrot.slane %v1474, 1
      %v1476 = vadd.f32 %v1474, %v1475
      %v1477 = vmul.f32 %v1467, %v508
      %v1478 = vmul.f32 %v1476, %v508
      %v1479 = vadd.f32 %v1477, 1e-05
      %v1480 = vadd.f32 %v1478, 1e-05
      %v1481 = vrsqrt.pop %v1479
      %v1482 = vrsqrt.pop %v1480
      %v1483 = vmul.f32 %v1443, %v1481
      %v1484 = vmul.f32 %v1444, %v1482
      %v1485 = vmul.f32 %v1445, %v1481
      %v1486 = vmul.f32 %v1446, %v1482
      %v1487 = vmul.f32 %v1447, %v1481
      %v1488 = vmul.f32 %v1448, %v1482
      %v1489 = vmul.f32 %v1449, %v1481
      %v1490 = vmul.f32 %v1450, %v1482
      %s1491 = scalar_lea.vmem %s3, 64
      %v1492 = vld [vmem:[%s1491] sm:$0xff]
      %v1493 = vld [vmem:[%s1491 + $0x8] sm:$0xff]
      %v1494 = vld [vmem:[%s1491 + $0x10] sm:$0xff]
      %v1495 = vld [vmem:[%s1491 + $0x18] sm:$0xff]
      %1497 = vset.pattern.permute.xlu0 0
      %1498 = vperm.xlu0 %1497, %v1492
      %v1499 = vpop.permute.xlu0 %1498
      %1502 = vset.pattern.permute.xlu0 0
      %1503 = vperm.xlu0 %1502, %v1493
      %v1504 = vpop.permute.xlu0 %1503
      %1507 = vset.pattern.permute.xlu0 0
      %1508 = vperm.xlu0 %1507, %v1494
      %v1509 = vpop.permute.xlu0 %1508
      %1512 = vset.pattern.permute.xlu0 0
      %1513 = vperm.xlu0 %1512, %v1495
      %v1514 = vpop.permute.xlu0 %1513
      %v1516 = vmul.f32 %v1483, %v1499
      %v1517 = vmul.f32 %v1484, %v1499
      %v1518 = vmul.f32 %v1485, %v1504
      %v1519 = vmul.f32 %v1486, %v1504
      %v1520 = vmul.f32 %v1487, %v1509
      %v1521 = vmul.f32 %v1488, %v1509
      %v1522 = vmul.f32 %v1489, %v1514
      %v1523 = vmul.f32 %v1490, %v1514
      %s1524 = scalar_lea.vmem %s4, 64
      %v1525 = vld [vmem:[%s1524] sm:$0xff]
      %v1526 = vld [vmem:[%s1524 + $0x8] sm:$0xff]
      %v1527 = vld [vmem:[%s1524 + $0x10] sm:$0xff]
      %v1528 = vld [vmem:[%s1524 + $0x18] sm:$0xff]
      %1530 = vset.pattern.permute.xlu0 0
      %1531 = vperm.xlu0 %1530, %v1525
      %v1532 = vpop.permute.xlu0 %1531
      %1535 = vset.pattern.permute.xlu0 0
      %1536 = vperm.xlu0 %1535, %v1526
      %v1537 = vpop.permute.xlu0 %1536
      %1540 = vset.pattern.permute.xlu0 0
      %1541 = vperm.xlu0 %1540, %v1527
      %v1542 = vpop.permute.xlu0 %1541
      %1545 = vset.pattern.permute.xlu0 0
      %1546 = vperm.xlu0 %1545, %v1528
      %v1547 = vpop.permute.xlu0 %1546
      %v1549 = vadd.f32 %v1516, %v1532
      %v1550 = vadd.f32 %v1517, %v1532
      %v1551 = vadd.f32 %v1518, %v1537
      %v1552 = vadd.f32 %v1519, %v1537
      %v1553 = vadd.f32 %v1520, %v1542
      %v1554 = vadd.f32 %v1521, %v1542
      %v1555 = vadd.f32 %v1522, %v1547
      %v1556 = vadd.f32 %v1523, %v1547
      %s1557 = scalar_lea.vmem %s5, 64
      %v1558 = vld [vmem:[%s1557] sm:$0xf]
      %v1559 = vld [vmem:[%s1557 + $0x4] sm:$0xf]
      %v1560 = vld [vmem:[%s1557 + $0x8] sm:$0xf]
      %v1561 = vld [vmem:[%s1557 + $0xc] sm:$0xf]
      %v1562 = vld [vmem:[%s1557 + $0x10] sm:$0xf]
      %v1563 = vld [vmem:[%s1557 + $0x14] sm:$0xf]
      %v1564 = vld [vmem:[%s1557 + $0x18] sm:$0xf]
      %v1565 = vld [vmem:[%s1557 + $0x1c] sm:$0xf]
      %v1566 = vpack.c.bf16 %v1551, %v1549
      %v1567 = vpack.c.bf16 %v1552, %v1550
      %v1568 = vpack.c.bf16 %v1555, %v1553
      %v1569 = vpack.c.bf16 %v1556, %v1554
      %s1570 = scalar_lea.vmem %s6, 128
      %v1571 = vld [vmem:[%s1570] sm:$0xff]
      %v1572 = vld [vmem:[%s1570 + $0x8] sm:$0xff]
      %v1573 = vld [vmem:[%s1570 + $0x10] sm:$0xff]
      %v1574 = vld [vmem:[%s1570 + $0x18] sm:$0xff]
      %v1575 = vld [vmem:[%s1570 + $0x20] sm:$0xff]
      %v1576 = vld [vmem:[%s1570 + $0x28] sm:$0xff]
      %v1577 = vld [vmem:[%s1570 + $0x30] sm:$0xff]
      %v1578 = vld [vmem:[%s1570 + $0x38] sm:$0xff]
      %1580 = vset.pattern.permute.xlu0 0
      %1581 = vperm.xlu0 %1580, %v1571
      %v1582 = vpop.permute.xlu0 %1581
      %1585 = vset.pattern.permute.xlu0 0
      %1586 = vperm.xlu0 %1585, %v1572
      %v1587 = vpop.permute.xlu0 %1586
      %1590 = vset.pattern.permute.xlu0 0
      %1591 = vperm.xlu0 %1590, %v1573
      %v1592 = vpop.permute.xlu0 %1591
      %1595 = vset.pattern.permute.xlu0 0
      %1596 = vperm.xlu0 %1595, %v1574
      %v1597 = vpop.permute.xlu0 %1596
      %1600 = vset.pattern.permute.xlu0 0
      %1601 = vperm.xlu0 %1600, %v1575
      %v1602 = vpop.permute.xlu0 %1601
      %1605 = vset.pattern.permute.xlu0 0
      %1606 = vperm.xlu0 %1605, %v1576
      %v1607 = vpop.permute.xlu0 %1606
      %1610 = vset.pattern.permute.xlu0 0
      %1611 = vperm.xlu0 %1610, %v1577
      %v1612 = vpop.permute.xlu0 %1611
      %1615 = vset.pattern.permute.xlu0 0
      %1616 = vperm.xlu0 %1615, %v1578
      %v1617 = vpop.permute.xlu0 %1616
      %v1627 = vunpack.c.l.b16 %v1558
      %v1628 = vunpack.c.l.b16 %v1559
      %v1629 = vunpack.c.l.b16 %v1560
      %v1630 = vunpack.c.l.b16 %v1561
      %v1631 = vunpack.c.l.b16 %v1562
      %v1632 = vunpack.c.l.b16 %v1563
      %v1633 = vunpack.c.l.b16 %v1564
      %v1634 = vunpack.c.l.b16 %v1565
      %v1635 = vpack.c.b16 %v1628, %v1627
      %v1636 = vpack.c.b16 %v1630, %v1629
      %v1637 = vpack.c.b16 %v1632, %v1631
      %v1638 = vpack.c.b16 %v1634, %v1633
      %v1640 = vsel %vm703, %v1635, 0
      %v1643 = vsel %vm703, %v1636, 0
      %v1646 = vsel %vm703, %v1637, 0
      %v1649 = vsel %vm703, %v1638, 0
      %1651 = vmatprep.subr.bf16.mxu0 0
      %1652 = vmatpush1.bf16.msra.mxu0 0
      %1653 = vmatprep.subr.bf16.mxu0 0
      %1654 = vmatpush1.bf16.msra.mxu0 0
      %1655 = vmatprep.subr.bf16.mxu0 0
      %1656 = vmatpush1.bf16.msra.mxu0 0
      %1657 = vmatprep.subr.bf16.mxu0 0
      %1658 = vmatpush1.bf16.msra.mxu0 0
      %1659 = vmatprep.subr.bf16.mxu0 0
      %1660 = vmatpush1.bf16.msra.mxu0 0
      %1661 = vmatprep.subr.bf16.mxu0 0
      %1662 = vmatpush1.bf16.msra.mxu0 0
      %1663 = vmatprep.subr.bf16.mxu0 %v1569
      %1664 = vmatpush1.bf16.msra.mxu0 %v1568
      %1665 = vmatprep.subr.bf16.mxu0 %v1567
      %1666 = vmatpush1.bf16.msra.mxu0 %v1566
      %1667 = vmatprep.subr.bf16.mxu0 0
      %1668 = vmatpush2.bf16.msra.mxu0 0
      %1669 = vmatprep.subr.bf16.mxu0 0
      %1670 = vmatpush2.bf16.msra.mxu0 0
      %1671 = vmatprep.subr.bf16.mxu0 0
      %1672 = vmatpush2.bf16.msra.mxu0 0
      %1673 = vmatprep.subr.bf16.mxu0 0
      %1674 = vmatpush2.bf16.msra.mxu0 0
      %1675 = vmatprep.subr.bf16.mxu0 0
      %1676 = vmatpush2.bf16.msra.mxu0 0
      %1677 = vmatprep.subr.bf16.mxu0 0
      %1678 = vmatpush2.bf16.msra.mxu0 0
      %1679 = vmatprep.subr.bf16.mxu0 0
      %1680 = vmatpush2.bf16.msra.mxu0 0
      %1681 = vmatprep.subr.bf16.mxu0 0
      %1682 = vmatpush2.bf16.msra.mxu0 0
      %1683 = vmatprep.mubr.bf16.mxu0 0
      %1684 = vmatmul.mubr.bf16.gmra.mxu0 %v1640
      %v1685 = vpop.f32.mrf.mxu0
      %v1686 = vadd.f32 %v1582, %v1685
      %v1687 = vpop.f32.mrf.mxu0
      %v1688 = vadd.f32 %v1582, %v1687
      %v1689 = vpop.f32.mrf.mxu0
      %v1690 = vadd.f32 %v1587, %v1689
      %v1691 = vpop.f32.mrf.mxu0
      %v1692 = vadd.f32 %v1587, %v1691
      %1693 = vmatprep.mubr.bf16.mxu0 0
      %1694 = vmatmul.mubr.bf16.gmra.mxu0 %v1643
      %v1695 = vpop.f32.mrf.mxu0
      %v1696 = vadd.f32 %v1592, %v1695
      %v1697 = vpop.f32.mrf.mxu0
      %v1698 = vadd.f32 %v1592, %v1697
      %v1699 = vpop.f32.mrf.mxu0
      %v1700 = vadd.f32 %v1597, %v1699
      %v1701 = vpop.f32.mrf.mxu0
      %v1702 = vadd.f32 %v1597, %v1701
      %1703 = vmatprep.mubr.bf16.mxu0 0
      %1704 = vmatmul.mubr.bf16.gmra.mxu0 %v1646
      %v1705 = vpop.f32.mrf.mxu0
      %v1706 = vadd.f32 %v1602, %v1705
      %v1707 = vpop.f32.mrf.mxu0
      %v1708 = vadd.f32 %v1602, %v1707
      %v1709 = vpop.f32.mrf.mxu0
      %v1710 = vadd.f32 %v1607, %v1709
      %v1711 = vpop.f32.mrf.mxu0
      %v1712 = vadd.f32 %v1607, %v1711
      %1713 = vmatprep.mubr.bf16.mxu0 0
      %1714 = vmatmul.mubr.bf16.gmra.mxu0 %v1649
      %v1715 = vpop.f32.mrf.mxu0
      %v1716 = vadd.f32 %v1612, %v1715
      %v1717 = vpop.f32.mrf.mxu0
      %v1718 = vadd.f32 %v1612, %v1717
      %v1719 = vpop.f32.mrf.mxu0
      %v1720 = vadd.f32 %v1617, %v1719
      %v1721 = vpop.f32.mrf.mxu0
      %v1722 = vadd.f32 %v1617, %v1721
      %1723 = vdwg.mxu0
      %vm1724 = vcmp.ge.f32.partialorder %v1686, 0.0
      %vm1725 = vcmp.ge.f32.partialorder %v1688, 0.0
      %vm1726 = vcmp.ge.f32.partialorder %v1690, 0.0
      %vm1727 = vcmp.ge.f32.partialorder %v1692, 0.0
      %vm1728 = vcmp.ge.f32.partialorder %v1696, 0.0
      %vm1729 = vcmp.ge.f32.partialorder %v1698, 0.0
      %vm1730 = vcmp.ge.f32.partialorder %v1700, 0.0
      %vm1731 = vcmp.ge.f32.partialorder %v1702, 0.0
      %vm1732 = vcmp.ge.f32.partialorder %v1706, 0.0
      %vm1733 = vcmp.ge.f32.partialorder %v1708, 0.0
      %vm1734 = vcmp.ge.f32.partialorder %v1710, 0.0
      %vm1735 = vcmp.ge.f32.partialorder %v1712, 0.0
      %vm1736 = vcmp.ge.f32.partialorder %v1716, 0.0
      %vm1737 = vcmp.ge.f32.partialorder %v1718, 0.0
      %vm1738 = vcmp.ge.f32.partialorder %v1720, 0.0
      %vm1739 = vcmp.ge.f32.partialorder %v1722, 0.0
      %v1740 = vmul.f32 %v1686, 0.01
      %v1741 = vmul.f32 %v1688, 0.01
      %v1742 = vmul.f32 %v1690, 0.01
      %v1743 = vmul.f32 %v1692, 0.01
      %v1744 = vmul.f32 %v1696, 0.01
      %v1745 = vmul.f32 %v1698, 0.01
      %v1746 = vmul.f32 %v1700, 0.01
      %v1747 = vmul.f32 %v1702, 0.01
      %v1748 = vmul.f32 %v1706, 0.01
      %v1749 = vmul.f32 %v1708, 0.01
      %v1750 = vmul.f32 %v1710, 0.01
      %v1751 = vmul.f32 %v1712, 0.01
      %v1752 = vmul.f32 %v1716, 0.01
      %v1753 = vmul.f32 %v1718, 0.01
      %v1754 = vmul.f32 %v1720, 0.01
      %v1755 = vmul.f32 %v1722, 0.01
      %v1756 = vsel %vm1724, %v1686, %v1740
      %v1757 = vsel %vm1725, %v1688, %v1741
      %v1758 = vsel %vm1726, %v1690, %v1742
      %v1759 = vsel %vm1727, %v1692, %v1743
      %v1760 = vsel %vm1728, %v1696, %v1744
      %v1761 = vsel %vm1729, %v1698, %v1745
      %v1762 = vsel %vm1730, %v1700, %v1746
      %v1763 = vsel %vm1731, %v1702, %v1747
      %v1764 = vsel %vm1732, %v1706, %v1748
      %v1765 = vsel %vm1733, %v1708, %v1749
      %v1766 = vsel %vm1734, %v1710, %v1750
      %v1767 = vsel %vm1735, %v1712, %v1751
      %v1768 = vsel %vm1736, %v1716, %v1752
      %v1769 = vsel %vm1737, %v1718, %v1753
      %v1770 = vsel %vm1738, %v1720, %v1754
      %v1771 = vsel %vm1739, %v1722, %v1755
      %s1772 = scalar_lea.vmem %s7, 32
      %v1773 = vld [vmem:[%s1772] sm:$0xf]
      %v1774 = vld [vmem:[%s1772 + $0x4] sm:$0xf]
      %v1775 = vld [vmem:[%s1772 + $0x8] sm:$0xf]
      %v1776 = vld [vmem:[%s1772 + $0xc] sm:$0xf]
      %v1777 = vpack.c.bf16 %v1758, %v1756
      %v1778 = vpack.c.bf16 %v1759, %v1757
      %v1779 = vpack.c.bf16 %v1762, %v1760
      %v1780 = vpack.c.bf16 %v1763, %v1761
      %v1781 = vpack.c.bf16 %v1766, %v1764
      %v1782 = vpack.c.bf16 %v1767, %v1765
      %v1783 = vpack.c.bf16 %v1770, %v1768
      %v1784 = vpack.c.bf16 %v1771, %v1769
      %s1785 = scalar_lea.vmem %s8, 64
      %v1786 = vld [vmem:[%s1785] sm:$0xff]
      %v1787 = vld [vmem:[%s1785 + $0x8] sm:$0xff]
      %v1788 = vld [vmem:[%s1785 + $0x10] sm:$0xff]
      %v1789 = vld [vmem:[%s1785 + $0x18] sm:$0xff]
      %1791 = vset.pattern.permute.xlu0 0
      %1792 = vperm.xlu0 %1791, %v1786
      %v1793 = vpop.permute.xlu0 %1792
      %1796 = vset.pattern.permute.xlu0 0
      %1797 = vperm.xlu0 %1796, %v1787
      %v1798 = vpop.permute.xlu0 %1797
      %1801 = vset.pattern.permute.xlu0 0
      %1802 = vperm.xlu0 %1801, %v1788
      %v1803 = vpop.permute.xlu0 %1802
      %1806 = vset.pattern.permute.xlu0 0
      %1807 = vperm.xlu0 %1806, %v1789
      %v1808 = vpop.permute.xlu0 %1807
      %v1814 = vunpack.c.l.b16 %v1773
      %v1815 = vunpack.c.l.b16 %v1774
      %v1816 = vunpack.c.l.b16 %v1775
      %v1817 = vunpack.c.l.b16 %v1776
      %v1818 = vpack.c.b16 %v1815, %v1814
      %v1819 = vpack.c.b16 %v1817, %v1816
      %v1821 = vsel %vm883, %v1818, 0
      %v1824 = vsel %vm883, %v1819, 0
      %1826 = vmatprep.subr.bf16.mxu0 0
      %1827 = vmatpush1.bf16.msra.mxu0 0
      %1828 = vmatprep.subr.bf16.mxu0 0
      %1829 = vmatpush1.bf16.msra.mxu0 0
      %1830 = vmatprep.subr.bf16.mxu0 0
      %1831 = vmatpush1.bf16.msra.mxu0 0
      %1832 = vmatprep.subr.bf16.mxu0 0
      %1833 = vmatpush1.bf16.msra.mxu0 0
      %1834 = vmatprep.subr.bf16.mxu0 %v1784
      %1835 = vmatpush1.bf16.msra.mxu0 %v1783
      %1836 = vmatprep.subr.bf16.mxu0 %v1782
      %1837 = vmatpush1.bf16.msra.mxu0 %v1781
      %1838 = vmatprep.subr.bf16.mxu0 %v1780
      %1839 = vmatpush1.bf16.msra.mxu0 %v1779
      %1840 = vmatprep.subr.bf16.mxu0 %v1778
      %1841 = vmatpush1.bf16.msra.mxu0 %v1777
      %1842 = vmatprep.subr.bf16.mxu0 0
      %1843 = vmatpush2.bf16.msra.mxu0 0
      %1844 = vmatprep.subr.bf16.mxu0 0
      %1845 = vmatpush2.bf16.msra.mxu0 0
      %1846 = vmatprep.subr.bf16.mxu0 0
      %1847 = vmatpush2.bf16.msra.mxu0 0
      %1848 = vmatprep.subr.bf16.mxu0 0
      %1849 = vmatpush2.bf16.msra.mxu0 0
      %1850 = vmatprep.subr.bf16.mxu0 0
      %1851 = vmatpush2.bf16.msra.mxu0 0
      %1852 = vmatprep.subr.bf16.mxu0 0
      %1853 = vmatpush2.bf16.msra.mxu0 0
      %1854 = vmatprep.subr.bf16.mxu0 0
      %1855 = vmatpush2.bf16.msra.mxu0 0
      %1856 = vmatprep.subr.bf16.mxu0 0
      %1857 = vmatpush2.bf16.msra.mxu0 0
      %1858 = vmatprep.mubr.bf16.mxu0 0
      %1859 = vmatmul.mubr.bf16.gmra.mxu0 %v1821
      %v1860 = vpop.f32.mrf.mxu0
      %v1861 = vadd.f32 %v1793, %v1860
      %v1862 = vpop.f32.mrf.mxu0
      %v1863 = vadd.f32 %v1793, %v1862
      %v1864 = vpop.f32.mrf.mxu0
      %v1865 = vadd.f32 %v1798, %v1864
      %v1866 = vpop.f32.mrf.mxu0
      %v1867 = vadd.f32 %v1798, %v1866
      %1868 = vmatprep.mubr.bf16.mxu0 0
      %1869 = vmatmul.mubr.bf16.gmra.mxu0 %v1824
      %v1870 = vpop.f32.mrf.mxu0
      %v1871 = vadd.f32 %v1803, %v1870
      %v1872 = vpop.f32.mrf.mxu0
      %v1873 = vadd.f32 %v1803, %v1872
      %v1874 = vpop.f32.mrf.mxu0
      %v1875 = vadd.f32 %v1808, %v1874
      %v1876 = vpop.f32.mrf.mxu0
      %v1877 = vadd.f32 %v1808, %v1876
      %1878 = vdwg.mxu0
      %1879 = vst [vmem:[#allocation2] sm:$0xff] %v943
      %1880 = vst [vmem:[#allocation2 + $0x8] sm:$0xff] %v944
      %1881 = vst [vmem:[#allocation2 + $0x10] sm:$0xff] %v945
      %1882 = vst [vmem:[#allocation2 + $0x18] sm:$0xff] %v946
      %1883 = vst [vmem:[#allocation2 + $0x20] sm:$0xff] %v947
      %1884 = vst [vmem:[#allocation2 + $0x28] sm:$0xff] %v948
      %1885 = vst [vmem:[#allocation2 + $0x30] sm:$0xff] %v949
      %1886 = vst [vmem:[#allocation2 + $0x38] sm:$0xff] %v950
      %1887 = vst [vmem:[#allocation3] sm:$0xff] %v1397
      %1888 = vst [vmem:[#allocation3 + $0x8] sm:$0xff] %v1399
      %1889 = vst [vmem:[#allocation3 + $0x10] sm:$0xff] %v1401
      %1890 = vst [vmem:[#allocation3 + $0x18] sm:$0xff] %v1403
      %1891 = vst [vmem:[#allocation3 + $0x20] sm:$0xff] %v1407
      %1892 = vst [vmem:[#allocation3 + $0x28] sm:$0xff] %v1409
      %1893 = vst [vmem:[#allocation3 + $0x30] sm:$0xff] %v1411
      %1894 = vst [vmem:[#allocation3 + $0x38] sm:$0xff] %v1413
      %1895 = vst [vmem:[#allocation4] sm:$0xff] %v1861
      %1896 = vst [vmem:[#allocation4 + $0x8] sm:$0xff] %v1863
      %1897 = vst [vmem:[#allocation4 + $0x10] sm:$0xff] %v1865
      %1898 = vst [vmem:[#allocation4 + $0x18] sm:$0xff] %v1867
      %1899 = vst [vmem:[#allocation4 + $0x20] sm:$0xff] %v1871
      %1900 = vst [vmem:[#allocation4 + $0x28] sm:$0xff] %v1873
      %1901 = vst [vmem:[#allocation4 + $0x30] sm:$0xff] %v1875
      %1902 = vst [vmem:[#allocation4 + $0x38] sm:$0xff] %v1877
      %v1903 = vld [vmem:[#allocation2] sm:$0xff]
      %v1904 = vld [vmem:[#allocation2 + $0x8] sm:$0xff]
      %v1905 = vpack.c.bf16 %v1903, %v1903
      %v1906 = vpack.c.bf16 %v1904, %v1904
      %v1907 = vld [vmem:[#allocation3] sm:$0xff]
      %v1908 = vld [vmem:[#allocation3 + $0x8] sm:$0xff]
      %v1909 = vpack.c.bf16 %v1907, %v1907
      %v1910 = vpack.c.bf16 %v1908, %v1908
      %v1911 = vld [vmem:[#allocation4] sm:$0xff]
      %v1912 = vld [vmem:[#allocation4 + $0x8] sm:$0xff]
      %v1913 = vpack.c.bf16 %v1911, %v1911
      %v1914 = vpack.c.bf16 %v1912, %v1912
      %1915 = vxpose.xlu0.c.b16.start [1/8] %v1909, 128
      %1916 = vxpose.xlu0.c.b16.cont [2/8] 0, 128
      %1917 = vxpose.xlu0.c.b16.cont [3/8] 0, 128
      %1918 = vxpose.xlu0.c.b16.cont [4/8] 0, 128
      %1919 = vxpose.xlu0.c.b16.cont [5/8] 0, 128
      %1920 = vxpose.xlu0.c.b16.cont [6/8] 0, 128
      %1921 = vxpose.xlu0.c.b16.cont [7/8] 0, 128
      %1922 = vxpose.xlu0.c.b16.end [8/8] 0, 128
      %v1923 = vpop.trf.xlu0
      %v1924 = vpop.trf.xlu0
      %v1925 = vpop.trf.xlu0
      %v1926 = vpop.trf.xlu0
      %v1927 = vpop.trf.xlu0
      %v1928 = vpop.trf.xlu0
      %v1929 = vpop.trf.xlu0
      %v1930 = vpop.trf.xlu0
      %1931 = vxpose.xlu0.c.b16.start [1/8] %v1910, 128
      %1932 = vxpose.xlu0.c.b16.cont [2/8] 0, 128
      %1933 = vxpose.xlu0.c.b16.cont [3/8] 0, 128
      %1934 = vxpose.xlu0.c.b16.cont [4/8] 0, 128
      %1935 = vxpose.xlu0.c.b16.cont [5/8] 0, 128
      %1936 = vxpose.xlu0.c.b16.cont [6/8] 0, 128
      %1937 = vxpose.xlu0.c.b16.cont [7/8] 0, 128
      %1938 = vxpose.xlu0.c.b16.end [8/8] 0, 128
      %v1939 = vpop.trf.xlu0
      %v1940 = vpop.trf.xlu0
      %v1941 = vpop.trf.xlu0
      %v1942 = vpop.trf.xlu0
      %v1943 = vpop.trf.xlu0
      %v1944 = vpop.trf.xlu0
      %v1945 = vpop.trf.xlu0
      %v1946 = vpop.trf.xlu0
      %vm1947 = vcmask 64512
      %v1949 = vsel %vm1947, %v1923, 0
      %v1952 = vsel %vm1947, %v1924, 0
      %v1955 = vsel %vm1947, %v1925, 0
      %v1958 = vsel %vm1947, %v1926, 0
      %v1961 = vsel %vm1947, %v1927, 0
      %v1964 = vsel %vm1947, %v1928, 0
      %v1967 = vsel %vm1947, %v1929, 0
      %v1970 = vsel %vm1947, %v1930, 0
      %v1973 = vsel %vm1947, %v1939, 0
      %v1976 = vsel %vm1947, %v1940, 0
      %v1979 = vsel %vm1947, %v1941, 0
      %v1982 = vsel %vm1947, %v1942, 0
      %v1985 = vsel %vm1947, %v1943, 0
      %v1988 = vsel %vm1947, %v1944, 0
      %v1991 = vsel %vm1947, %v1945, 0
      %v1994 = vsel %vm1947, %v1946, 0
      %vm1996 = vcmask 1043456
      %v1998 = vsel %vm1996, %v1905, 0
      %v2001 = vsel %vm1996, %v1906, 0
      %2003 = vmatprep.subr.bf16.mxu0 0
      %2004 = vmatpush1.bf16.msra.mxu0 0
      %2005 = vmatprep.subr.bf16.mxu0 0
      %2006 = vmatpush1.bf16.msra.mxu0 0
      %2007 = vmatprep.subr.bf16.mxu0 0
      %2008 = vmatpush1.bf16.msra.mxu0 0
      %2009 = vmatprep.subr.bf16.mxu0 0
      %2010 = vmatpush1.bf16.msra.mxu0 0
      %2011 = vmatprep.subr.bf16.mxu0 0
      %2012 = vmatpush1.bf16.msra.mxu0 0
      %2013 = vmatprep.subr.bf16.mxu0 0
      %2014 = vmatpush1.bf16.msra.mxu0 0
      %2015 = vmatprep.subr.bf16.mxu0 0
      %2016 = vmatpush1.bf16.msra.mxu0 0
      %2017 = vmatprep.subr.bf16.mxu0 %v2001
      %2018 = vmatpush1.bf16.msra.mxu0 %v1998
      %2019 = vmatprep.subr.bf16.mxu0 0
      %2020 = vmatpush2.bf16.msra.mxu0 0
      %2021 = vmatprep.subr.bf16.mxu0 0
      %2022 = vmatpush2.bf16.msra.mxu0 0
      %2023 = vmatprep.subr.bf16.mxu0 0
      %2024 = vmatpush2.bf16.msra.mxu0 0
      %2025 = vmatprep.subr.bf16.mxu0 0
      %2026 = vmatpush2.bf16.msra.mxu0 0
      %2027 = vmatprep.subr.bf16.mxu0 0
      %2028 = vmatpush2.bf16.msra.mxu0 0
      %2029 = vmatprep.subr.bf16.mxu0 0
      %2030 = vmatpush2.bf16.msra.mxu0 0
      %2031 = vmatprep.subr.bf16.mxu0 0
      %2032 = vmatpush2.bf16.msra.mxu0 0
      %2033 = vmatprep.subr.bf16.mxu0 0
      %2034 = vmatpush2.bf16.msra.mxu0 0
      %2035 = vmatprep.mubr.bf16.mxu0 0
      %2036 = vmatmul.mubr.bf16.gmra.mxu0 %v1949
      %v2037 = vpop.f32.mrf.mxu0
      %v2038 = vadd.f32 0.0, %v2037
      %v2039 = vpop.f32.mrf.mxu0
      %v2040 = vadd.f32 0.0, %v2039
      %v2041 = vpop.f32.mrf.mxu0
      %v2042 = vadd.f32 0.0, %v2041
      %v2043 = vpop.f32.mrf.mxu0
      %v2044 = vadd.f32 0.0, %v2043
      %2045 = vmatprep.mubr.bf16.mxu0 0
      %2046 = vmatmul.mubr.bf16.gmra.mxu0 %v1952
      %v2047 = vpop.f32.mrf.mxu0
      %v2048 = vadd.f32 0.0, %v2047
      %v2049 = vpop.f32.mrf.mxu0
      %v2050 = vadd.f32 0.0, %v2049
      %v2051 = vpop.f32.mrf.mxu0
      %v2052 = vadd.f32 0.0, %v2051
      %v2053 = vpop.f32.mrf.mxu0
      %v2054 = vadd.f32 0.0, %v2053
      %2055 = vmatprep.mubr.bf16.mxu0 0
      %2056 = vmatmul.mubr.bf16.gmra.mxu0 %v1955
      %v2057 = vpop.f32.mrf.mxu0
      %v2058 = vadd.f32 0.0, %v2057
      %v2059 = vpop.f32.mrf.mxu0
      %v2060 = vadd.f32 0.0, %v2059
      %v2061 = vpop.f32.mrf.mxu0
      %v2062 = vadd.f32 0.0, %v2061
      %v2063 = vpop.f32.mrf.mxu0
      %v2064 = vadd.f32 0.0, %v2063
      %2065 = vmatprep.mubr.bf16.mxu0 0
      %2066 = vmatmul.mubr.bf16.gmra.mxu0 %v1958
      %v2067 = vpop.f32.mrf.mxu0
      %v2068 = vadd.f32 0.0, %v2067
      %v2069 = vpop.f32.mrf.mxu0
      %v2070 = vadd.f32 0.0, %v2069
      %v2071 = vpop.f32.mrf.mxu0
      %v2072 = vadd.f32 0.0, %v2071
      %v2073 = vpop.f32.mrf.mxu0
      %v2074 = vadd.f32 0.0, %v2073
      %2075 = vmatprep.mubr.bf16.mxu0 0
      %2076 = vmatmul.mubr.bf16.gmra.mxu0 %v1961
      %v2077 = vpop.f32.mrf.mxu0
      %v2078 = vadd.f32 0.0, %v2077
      %v2079 = vpop.f32.mrf.mxu0
      %v2080 = vadd.f32 0.0, %v2079
      %v2081 = vpop.f32.mrf.mxu0
      %v2082 = vadd.f32 0.0, %v2081
      %v2083 = vpop.f32.mrf.mxu0
      %v2084 = vadd.f32 0.0, %v2083
      %2085 = vmatprep.mubr.bf16.mxu0 0
      %2086 = vmatmul.mubr.bf16.gmra.mxu0 %v1964
      %v2087 = vpop.f32.mrf.mxu0
      %v2088 = vadd.f32 0.0, %v2087
      %v2089 = vpop.f32.mrf.mxu0
      %v2090 = vadd.f32 0.0, %v2089
      %v2091 = vpop.f32.mrf.mxu0
      %v2092 = vadd.f32 0.0, %v2091
      %v2093 = vpop.f32.mrf.mxu0
      %v2094 = vadd.f32 0.0, %v2093
      %2095 = vmatprep.mubr.bf16.mxu0 0
      %2096 = vmatmul.mubr.bf16.gmra.mxu0 %v1967
      %v2097 = vpop.f32.mrf.mxu0
      %v2098 = vadd.f32 0.0, %v2097
      %v2099 = vpop.f32.mrf.mxu0
      %v2100 = vadd.f32 0.0, %v2099
      %v2101 = vpop.f32.mrf.mxu0
      %v2102 = vadd.f32 0.0, %v2101
      %v2103 = vpop.f32.mrf.mxu0
      %v2104 = vadd.f32 0.0, %v2103
      %2105 = vmatprep.mubr.bf16.mxu0 0
      %2106 = vmatmul.mubr.bf16.gmra.mxu0 %v1970
      %v2107 = vpop.f32.mrf.mxu0
      %v2108 = vadd.f32 0.0, %v2107
      %v2109 = vpop.f32.mrf.mxu0
      %v2110 = vadd.f32 0.0, %v2109
      %v2111 = vpop.f32.mrf.mxu0
      %v2112 = vadd.f32 0.0, %v2111
      %v2113 = vpop.f32.mrf.mxu0
      %v2114 = vadd.f32 0.0, %v2113
      %2115 = vmatprep.mubr.bf16.mxu0 0
      %2116 = vmatmul.mubr.bf16.gmra.mxu0 %v1973
      %v2117 = vpop.f32.mrf.mxu0
      %v2118 = vadd.f32 0.0, %v2117
      %v2119 = vpop.f32.mrf.mxu0
      %v2120 = vadd.f32 0.0, %v2119
      %v2121 = vpop.f32.mrf.mxu0
      %v2122 = vadd.f32 0.0, %v2121
      %v2123 = vpop.f32.mrf.mxu0
      %v2124 = vadd.f32 0.0, %v2123
      %2125 = vmatprep.mubr.bf16.mxu0 0
      %2126 = vmatmul.mubr.bf16.gmra.mxu0 %v1976
      %v2127 = vpop.f32.mrf.mxu0
      %v2128 = vadd.f32 0.0, %v2127
      %v2129 = vpop.f32.mrf.mxu0
      %v2130 = vadd.f32 0.0, %v2129
      %v2131 = vpop.f32.mrf.mxu0
      %v2132 = vadd.f32 0.0, %v2131
      %v2133 = vpop.f32.mrf.mxu0
      %v2134 = vadd.f32 0.0, %v2133
      %2135 = vmatprep.mubr.bf16.mxu0 0
      %2136 = vmatmul.mubr.bf16.gmra.mxu0 %v1979
      %v2137 = vpop.f32.mrf.mxu0
      %v2138 = vadd.f32 0.0, %v2137
      %v2139 = vpop.f32.mrf.mxu0
      %v2140 = vadd.f32 0.0, %v2139
      %v2141 = vpop.f32.mrf.mxu0
      %v2142 = vadd.f32 0.0, %v2141
      %v2143 = vpop.f32.mrf.mxu0
      %v2144 = vadd.f32 0.0, %v2143
      %2145 = vmatprep.mubr.bf16.mxu0 0
      %2146 = vmatmul.mubr.bf16.gmra.mxu0 %v1982
      %v2147 = vpop.f32.mrf.mxu0
      %v2148 = vadd.f32 0.0, %v2147
      %v2149 = vpop.f32.mrf.mxu0
      %v2150 = vadd.f32 0.0, %v2149
      %v2151 = vpop.f32.mrf.mxu0
      %v2152 = vadd.f32 0.0, %v2151
      %v2153 = vpop.f32.mrf.mxu0
      %v2154 = vadd.f32 0.0, %v2153
      %2155 = vmatprep.mubr.bf16.mxu0 0
      %2156 = vmatmul.mubr.bf16.gmra.mxu0 %v1985
      %v2157 = vpop.f32.mrf.mxu0
      %v2158 = vadd.f32 0.0, %v2157
      %v2159 = vpop.f32.mrf.mxu0
      %v2160 = vadd.f32 0.0, %v2159
      %v2161 = vpop.f32.mrf.mxu0
      %v2162 = vadd.f32 0.0, %v2161
      %v2163 = vpop.f32.mrf.mxu0
      %v2164 = vadd.f32 0.0, %v2163
      %2165 = vmatprep.mubr.bf16.mxu0 0
      %2166 = vmatmul.mubr.bf16.gmra.mxu0 %v1988
      %v2167 = vpop.f32.mrf.mxu0
      %v2168 = vadd.f32 0.0, %v2167
      %v2169 = vpop.f32.mrf.mxu0
      %v2170 = vadd.f32 0.0, %v2169
      %v2171 = vpop.f32.mrf.mxu0
      %v2172 = vadd.f32 0.0, %v2171
      %v2173 = vpop.f32.mrf.mxu0
      %v2174 = vadd.f32 0.0, %v2173
      %2175 = vmatprep.mubr.bf16.mxu0 0
      %2176 = vmatmul.mubr.bf16.gmra.mxu0 %v1991
      %v2177 = vpop.f32.mrf.mxu0
      %v2178 = vadd.f32 0.0, %v2177
      %v2179 = vpop.f32.mrf.mxu0
      %v2180 = vadd.f32 0.0, %v2179
      %v2181 = vpop.f32.mrf.mxu0
      %v2182 = vadd.f32 0.0, %v2181
      %v2183 = vpop.f32.mrf.mxu0
      %v2184 = vadd.f32 0.0, %v2183
      %2185 = vmatprep.mubr.bf16.mxu0 0
      %2186 = vmatmul.mubr.bf16.gmra.mxu0 %v1994
      %v2187 = vpop.f32.mrf.mxu0
      %v2188 = vadd.f32 0.0, %v2187
      %v2189 = vpop.f32.mrf.mxu0
      %v2190 = vadd.f32 0.0, %v2189
      %v2191 = vpop.f32.mrf.mxu0
      %v2192 = vadd.f32 0.0, %v2191
      %v2193 = vpop.f32.mrf.mxu0
      %v2194 = vadd.f32 0.0, %v2193
      %2195 = vdwg.mxu0
      %v2196 = vmax.f32 %v2038, %v2048
      %v2197 = vmax.f32 %v2042, %v2052
      %v2198 = vmax.f32 %v2196, %v2058
      %v2199 = vmax.f32 %v2197, %v2062
      %v2200 = vmax.f32 %v2198, %v2068
      %v2201 = vmax.f32 %v2199, %v2072
      %v2202 = vmax.f32 %v2200, %v2078
      %v2203 = vmax.f32 %v2201, %v2082
      %v2204 = vmax.f32 %v2202, %v2088
      %v2205 = vmax.f32 %v2203, %v2092
      %v2206 = vmax.f32 %v2204, %v2098
      %v2207 = vmax.f32 %v2205, %v2102
      %v2208 = vmax.f32 %v2206, %v2108
      %v2209 = vmax.f32 %v2207, %v2112
      %v2210 = vmax.f32 %v2208, %v2118
      %v2211 = vmax.f32 %v2209, %v2122
      %v2212 = vmax.f32 %v2210, %v2128
      %v2213 = vmax.f32 %v2211, %v2132
      %v2214 = vmax.f32 %v2212, %v2138
      %v2215 = vmax.f32 %v2213, %v2142
      %v2216 = vmax.f32 %v2214, %v2148
      %v2217 = vmax.f32 %v2215, %v2152
      %v2218 = vmax.f32 %v2216, %v2158
      %v2219 = vmax.f32 %v2217, %v2162
      %v2220 = vmax.f32 %v2218, %v2168
      %v2221 = vmax.f32 %v2219, %v2172
      %v2222 = vmax.f32 %v2220, %v2178
      %v2223 = vmax.f32 %v2221, %v2182
      %v2224 = vmax.f32 %v2222, %v2188
      %v2225 = vmax.f32 %v2223, %v2192
      %v2226 = vmax.f32 %v2224, %v2225
      %v2227 = vrot.slane %v2226, 4
      %v2228 = vmax.f32 %v2226, %v2227
      %v2229 = vrot.slane %v2228, 2
      %v2230 = vmax.f32 %v2228, %v2229
      %v2231 = vrot.slane %v2230, 1
      %v2232 = vmax.f32 %v2230, %v2231
      %v2233 = vmax.f32 %v2040, %v2050
      %v2234 = vmax.f32 %v2044, %v2054
      %v2235 = vmax.f32 %v2233, %v2060
      %v2236 = vmax.f32 %v2234, %v2064
      %v2237 = vmax.f32 %v2235, %v2070
      %v2238 = vmax.f32 %v2236, %v2074
      %v2239 = vmax.f32 %v2237, %v2080
      %v2240 = vmax.f32 %v2238, %v2084
      %v2241 = vmax.f32 %v2239, %v2090
      %v2242 = vmax.f32 %v2240, %v2094
      %v2243 = vmax.f32 %v2241, %v2100
      %v2244 = vmax.f32 %v2242, %v2104
      %v2245 = vmax.f32 %v2243, %v2110
      %v2246 = vmax.f32 %v2244, %v2114
      %v2247 = vmax.f32 %v2245, %v2120
      %v2248 = vmax.f32 %v2246, %v2124
      %v2249 = vmax.f32 %v2247, %v2130
      %v2250 = vmax.f32 %v2248, %v2134
      %v2251 = vmax.f32 %v2249, %v2140
      %v2252 = vmax.f32 %v2250, %v2144
      %v2253 = vmax.f32 %v2251, %v2150
      %v2254 = vmax.f32 %v2252, %v2154
      %v2255 = vmax.f32 %v2253, %v2160
      %v2256 = vmax.f32 %v2254, %v2164
      %v2257 = vmax.f32 %v2255, %v2170
      %v2258 = vmax.f32 %v2256, %v2174
      %v2259 = vmax.f32 %v2257, %v2180
      %v2260 = vmax.f32 %v2258, %v2184
      %v2261 = vmax.f32 %v2259, %v2190
      %v2262 = vmax.f32 %v2260, %v2194
      %v2263 = vmax.f32 %v2261, %v2262
      %v2264 = vrot.slane %v2263, 4
      %v2265 = vmax.f32 %v2263, %v2264
      %v2266 = vrot.slane %v2265, 2
      %v2267 = vmax.f32 %v2265, %v2266
      %v2268 = vrot.slane %v2267, 1
      %v2269 = vmax.f32 %v2267, %v2268
      %v2270 = vsub.f32 %v2038, %v2232
      %v2271 = vsub.f32 %v2040, %v2269
      %v2272 = vsub.f32 %v2042, %v2232
      %v2273 = vsub.f32 %v2044, %v2269
      %v2274 = vsub.f32 %v2048, %v2232
      %v2275 = vsub.f32 %v2050, %v2269
      %v2276 = vsub.f32 %v2052, %v2232
      %v2277 = vsub.f32 %v2054, %v2269
      %v2278 = vsub.f32 %v2058, %v2232
      %v2279 = vsub.f32 %v2060, %v2269
      %v2280 = vsub.f32 %v2062, %v2232
      %v2281 = vsub.f32 %v2064, %v2269
      %v2282 = vsub.f32 %v2068, %v2232
      %v2283 = vsub.f32 %v2070, %v2269
      %v2284 = vsub.f32 %v2072, %v2232
      %v2285 = vsub.f32 %v2074, %v2269
      %v2286 = vsub.f32 %v2078, %v2232
      %v2287 = vsub.f32 %v2080, %v2269
      %v2288 = vsub.f32 %v2082, %v2232
      %v2289 = vsub.f32 %v2084, %v2269
      %v2290 = vsub.f32 %v2088, %v2232
      %v2291 = vsub.f32 %v2090, %v2269
      %v2292 = vsub.f32 %v2092, %v2232
      %v2293 = vsub.f32 %v2094, %v2269
      %v2294 = vsub.f32 %v2098, %v2232
      %v2295 = vsub.f32 %v2100, %v2269
      %v2296 = vsub.f32 %v2102, %v2232
      %v2297 = vsub.f32 %v2104, %v2269
      %v2298 = vsub.f32 %v2108, %v2232
      %v2299 = vsub.f32 %v2110, %v2269
      %v2300 = vsub.f32 %v2112, %v2232
      %v2301 = vsub.f32 %v2114, %v2269
      %v2302 = vsub.f32 %v2118, %v2232
      %v2303 = vsub.f32 %v2120, %v2269
      %v2304 = vsub.f32 %v2122, %v2232
      %v2305 = vsub.f32 %v2124, %v2269
      %v2306 = vsub.f32 %v2128, %v2232
      %v2307 = vsub.f32 %v2130, %v2269
      %v2308 = vsub.f32 %v2132, %v2232
      %v2309 = vsub.f32 %v2134, %v2269
      %v2310 = vsub.f32 %v2138, %v2232
      %v2311 = vsub.f32 %v2140, %v2269
      %v2312 = vsub.f32 %v2142, %v2232
      %v2313 = vsub.f32 %v2144, %v2269
      %v2314 = vsub.f32 %v2148, %v2232
      %v2315 = vsub.f32 %v2150, %v2269
      %v2316 = vsub.f32 %v2152, %v2232
      %v2317 = vsub.f32 %v2154, %v2269
      %v2318 = vsub.f32 %v2158, %v2232
      %v2319 = vsub.f32 %v2160, %v2269
      %v2320 = vsub.f32 %v2162, %v2232
      %v2321 = vsub.f32 %v2164, %v2269
      %v2322 = vsub.f32 %v2168, %v2232
      %v2323 = vsub.f32 %v2170, %v2269
      %v2324 = vsub.f32 %v2172, %v2232
      %v2325 = vsub.f32 %v2174, %v2269
      %v2326 = vsub.f32 %v2178, %v2232
      %v2327 = vsub.f32 %v2180, %v2269
      %v2328 = vsub.f32 %v2182, %v2232
      %v2329 = vsub.f32 %v2184, %v2269
      %v2330 = vsub.f32 %v2188, %v2232
      %v2331 = vsub.f32 %v2190, %v2269
      %v2332 = vsub.f32 %v2192, %v2232
      %v2333 = vsub.f32 %v2194, %v2269
      %v2334 = vmul.f32 %v2270, 1.442695
      %v2335 = vpow.pop %v2334
      %v2336 = vmul.f32 %v2271, 1.442695
      %v2337 = vpow.pop %v2336
      %v2338 = vmul.f32 %v2272, 1.442695
      %v2339 = vpow.pop %v2338
      %v2340 = vmul.f32 %v2273, 1.442695
      %v2341 = vpow.pop %v2340
      %v2342 = vmul.f32 %v2274, 1.442695
      %v2343 = vpow.pop %v2342
      %v2344 = vmul.f32 %v2275, 1.442695
      %v2345 = vpow.pop %v2344
      %v2346 = vmul.f32 %v2276, 1.442695
      %v2347 = vpow.pop %v2346
      %v2348 = vmul.f32 %v2277, 1.442695
      %v2349 = vpow.pop %v2348
      %v2350 = vmul.f32 %v2278, 1.442695
      %v2351 = vpow.pop %v2350
      %v2352 = vmul.f32 %v2279, 1.442695
      %v2353 = vpow.pop %v2352
      %v2354 = vmul.f32 %v2280, 1.442695
      %v2355 = vpow.pop %v2354
      %v2356 = vmul.f32 %v2281, 1.442695
      %v2357 = vpow.pop %v2356
      %v2358 = vmul.f32 %v2282, 1.442695
      %v2359 = vpow.pop %v2358
      %v2360 = vmul.f32 %v2283, 1.442695
      %v2361 = vpow.pop %v2360
      %v2362 = vmul.f32 %v2284, 1.442695
      %v2363 = vpow.pop %v2362
      %v2364 = vmul.f32 %v2285, 1.442695
      %v2365 = vpow.pop %v2364
      %v2366 = vmul.f32 %v2286, 1.442695
      %v2367 = vpow.pop %v2366
      %v2368 = vmul.f32 %v2287, 1.442695
      %v2369 = vpow.pop %v2368
      %v2370 = vmul.f32 %v2288, 1.442695
      %v2371 = vpow.pop %v2370
      %v2372 = vmul.f32 %v2289, 1.442695
      %v2373 = vpow.pop %v2372
      %v2374 = vmul.f32 %v2290, 1.442695
      %v2375 = vpow.pop %v2374
      %v2376 = vmul.f32 %v2291, 1.442695
      %v2377 = vpow.pop %v2376
      %v2378 = vmul.f32 %v2292, 1.442695
      %v2379 = vpow.pop %v2378
      %v2380 = vmul.f32 %v2293, 1.442695
      %v2381 = vpow.pop %v2380
      %v2382 = vmul.f32 %v2294, 1.442695
      %v2383 = vpow.pop %v2382
      %v2384 = vmul.f32 %v2295, 1.442695
      %v2385 = vpow.pop %v2384
      %v2386 = vmul.f32 %v2296, 1.442695
      %v2387 = vpow.pop %v2386
      %v2388 = vmul.f32 %v2297, 1.442695
      %v2389 = vpow.pop %v2388
      %v2390 = vmul.f32 %v2298, 1.442695
      %v2391 = vpow.pop %v2390
      %v2392 = vmul.f32 %v2299, 1.442695
      %v2393 = vpow.pop %v2392
      %v2394 = vmul.f32 %v2300, 1.442695
      %v2395 = vpow.pop %v2394
      %v2396 = vmul.f32 %v2301, 1.442695
      %v2397 = vpow.pop %v2396
      %v2398 = vmul.f32 %v2302, 1.442695
      %v2399 = vpow.pop %v2398
      %v2400 = vmul.f32 %v2303, 1.442695
      %v2401 = vpow.pop %v2400
      %v2402 = vmul.f32 %v2304, 1.442695
      %v2403 = vpow.pop %v2402
      %v2404 = vmul.f32 %v2305, 1.442695
      %v2405 = vpow.pop %v2404
      %v2406 = vmul.f32 %v2306, 1.442695
      %v2407 = vpow.pop %v2406
      %v2408 = vmul.f32 %v2307, 1.442695
      %v2409 = vpow.pop %v2408
      %v2410 = vmul.f32 %v2308, 1.442695
      %v2411 = vpow.pop %v2410
      %v2412 = vmul.f32 %v2309, 1.442695
      %v2413 = vpow.pop %v2412
      %v2414 = vmul.f32 %v2310, 1.442695
      %v2415 = vpow.pop %v2414
      %v2416 = vmul.f32 %v2311, 1.442695
      %v2417 = vpow.pop %v2416
      %v2418 = vmul.f32 %v2312, 1.442695
      %v2419 = vpow.pop %v2418
      %v2420 = vmul.f32 %v2313, 1.442695
      %v2421 = vpow.pop %v2420
      %v2422 = vmul.f32 %v2314, 1.442695
      %v2423 = vpow.pop %v2422
      %v2424 = vmul.f32 %v2315, 1.442695
      %v2425 = vpow.pop %v2424
      %v2426 = vmul.f32 %v2316, 1.442695
      %v2427 = vpow.pop %v2426
      %v2428 = vmul.f32 %v2317, 1.442695
      %v2429 = vpow.pop %v2428
      %v2430 = vmul.f32 %v2318, 1.442695
      %v2431 = vpow.pop %v2430
      %v2432 = vmul.f32 %v2319, 1.442695
      %v2433 = vpow.pop %v2432
      %v2434 = vmul.f32 %v2320, 1.442695
      %v2435 = vpow.pop %v2434
      %v2436 = vmul.f32 %v2321, 1.442695
      %v2437 = vpow.pop %v2436
      %v2438 = vmul.f32 %v2322, 1.442695
      %v2439 = vpow.pop %v2438
      %v2440 = vmul.f32 %v2323, 1.442695
      %v2441 = vpow.pop %v2440
      %v2442 = vmul.f32 %v2324, 1.442695
      %v2443 = vpow.pop %v2442
      %v2444 = vmul.f32 %v2325, 1.442695
      %v2445 = vpow.pop %v2444
      %v2446 = vmul.f32 %v2326, 1.442695
      %v2447 = vpow.pop %v2446
      %v2448 = vmul.f32 %v2327, 1.442695
      %v2449 = vpow.pop %v2448
      %v2450 = vmul.f32 %v2328, 1.442695
      %v2451 = vpow.pop %v2450
      %v2452 = vmul.f32 %v2329, 1.442695
      %v2453 = vpow.pop %v2452
      %v2454 = vmul.f32 %v2330, 1.442695
      %v2455 = vpow.pop %v2454
      %v2456 = vmul.f32 %v2331, 1.442695
      %v2457 = vpow.pop %v2456
      %v2458 = vmul.f32 %v2332, 1.442695
      %v2459 = vpow.pop %v2458
      %v2460 = vmul.f32 %v2333, 1.442695
      %v2461 = vpow.pop %v2460
      %v2462 = vadd.f32 %v2335, %v2339
      %v2463 = vadd.f32 %v2462, %v2343
      %v2464 = vadd.f32 %v2463, %v2347
      %v2465 = vadd.f32 %v2464, %v2351
      %v2466 = vadd.f32 %v2465, %v2355
      %v2467 = vadd.f32 %v2466, %v2359
      %v2468 = vadd.f32 %v2467, %v2363
      %v2469 = vadd.f32 %v2468, %v2367
      %v2470 = vadd.f32 %v2469, %v2371
      %v2471 = vadd.f32 %v2470, %v2375
      %v2472 = vadd.f32 %v2471, %v2379
      %v2473 = vadd.f32 %v2472, %v2383
      %v2474 = vadd.f32 %v2473, %v2387
      %v2475 = vadd.f32 %v2474, %v2391
      %v2476 = vadd.f32 %v2475, %v2395
      %v2477 = vadd.f32 %v2476, %v2399
      %v2478 = vadd.f32 %v2477, %v2403
      %v2479 = vadd.f32 %v2478, %v2407
      %v2480 = vadd.f32 %v2479, %v2411
      %v2481 = vadd.f32 %v2480, %v2415
      %v2482 = vadd.f32 %v2481, %v2419
      %v2483 = vadd.f32 %v2482, %v2423
      %v2484 = vadd.f32 %v2483, %v2427
      %v2485 = vadd.f32 %v2484, %v2431
      %v2486 = vadd.f32 %v2485, %v2435
      %v2487 = vadd.f32 %v2486, %v2439
      %v2488 = vadd.f32 %v2487, %v2443
      %v2489 = vadd.f32 %v2488, %v2447
      %v2490 = vadd.f32 %v2489, %v2451
      %v2491 = vadd.f32 %v2490, %v2455
      %v2492 = vadd.f32 %v2491, %v2459
      %v2493 = vrot.slane %v2492, 4
      %v2494 = vadd.f32 %v2492, %v2493
      %v2495 = vrot.slane %v2494, 2
      %v2496 = vadd.f32 %v2494, %v2495
      %v2497 = vrot.slane %v2496, 1
      %v2498 = vadd.f32 %v2496, %v2497
      %v2499 = vadd.f32 %v2337, %v2341
      %v2500 = vadd.f32 %v2499, %v2345
      %v2501 = vadd.f32 %v2500, %v2349
      %v2502 = vadd.f32 %v2501, %v2353
      %v2503 = vadd.f32 %v2502, %v2357
      %v2504 = vadd.f32 %v2503, %v2361
      %v2505 = vadd.f32 %v2504, %v2365
      %v2506 = vadd.f32 %v2505, %v2369
      %v2507 = vadd.f32 %v2506, %v2373
      %v2508 = vadd.f32 %v2507, %v2377
      %v2509 = vadd.f32 %v2508, %v2381
      %v2510 = vadd.f32 %v2509, %v2385
      %v2511 = vadd.f32 %v2510, %v2389
      %v2512 = vadd.f32 %v2511, %v2393
      %v2513 = vadd.f32 %v2512, %v2397
      %v2514 = vadd.f32 %v2513, %v2401
      %v2515 = vadd.f32 %v2514, %v2405
      %v2516 = vadd.f32 %v2515, %v2409
      %v2517 = vadd.f32 %v2516, %v2413
      %v2518 = vadd.f32 %v2517, %v2417
      %v2519 = vadd.f32 %v2518, %v2421
      %v2520 = vadd.f32 %v2519, %v2425
      %v2521 = vadd.f32 %v2520, %v2429
      %v2522 = vadd.f32 %v2521, %v2433
      %v2523 = vadd.f32 %v2522, %v2437
      %v2524 = vadd.f32 %v2523, %v2441
      %v2525 = vadd.f32 %v2524, %v2445
      %v2526 = vadd.f32 %v2525, %v2449
      %v2527 = vadd.f32 %v2526, %v2453
      %v2528 = vadd.f32 %v2527, %v2457
      %v2529 = vadd.f32 %v2528, %v2461
      %v2530 = vrot.slane %v2529, 4
      %v2531 = vadd.f32 %v2529, %v2530
      %v2532 = vrot.slane %v2531, 2
      %v2533 = vadd.f32 %v2531, %v2532
      %v2534 = vrot.slane %v2533, 1
      %v2535 = vadd.f32 %v2533, %v2534
      %v2536 = vpack.c.bf16 %v2339, %v2335
      %v2537 = vpack.c.bf16 %v2341, %v2337
      %v2538 = vpack.c.bf16 %v2347, %v2343
      %v2539 = vpack.c.bf16 %v2349, %v2345
      %v2540 = vpack.c.bf16 %v2355, %v2351
      %v2541 = vpack.c.bf16 %v2357, %v2353
      %v2542 = vpack.c.bf16 %v2363, %v2359
      %v2543 = vpack.c.bf16 %v2365, %v2361
      %v2544 = vpack.c.bf16 %v2371, %v2367
      %v2545 = vpack.c.bf16 %v2373, %v2369
      %v2546 = vpack.c.bf16 %v2379, %v2375
      %v2547 = vpack.c.bf16 %v2381, %v2377
      %v2548 = vpack.c.bf16 %v2387, %v2383
      %v2549 = vpack.c.bf16 %v2389, %v2385
      %v2550 = vpack.c.bf16 %v2395, %v2391
      %v2551 = vpack.c.bf16 %v2397, %v2393
      %v2552 = vpack.c.bf16 %v2403, %v2399
      %v2553 = vpack.c.bf16 %v2405, %v2401
      %v2554 = vpack.c.bf16 %v2411, %v2407
      %v2555 = vpack.c.bf16 %v2413, %v2409
      %v2556 = vpack.c.bf16 %v2419, %v2415
      %v2557 = vpack.c.bf16 %v2421, %v2417
      %v2558 = vpack.c.bf16 %v2427, %v2423
      %v2559 = vpack.c.bf16 %v2429, %v2425
      %v2560 = vpack.c.bf16 %v2435, %v2431
      %v2561 = vpack.c.bf16 %v2437, %v2433
      %v2562 = vpack.c.bf16 %v2443, %v2439
      %v2563 = vpack.c.bf16 %v2445, %v2441
      %v2564 = vpack.c.bf16 %v2451, %v2447
      %v2565 = vpack.c.bf16 %v2453, %v2449
      %v2566 = vpack.c.bf16 %v2459, %v2455
      %v2567 = vpack.c.bf16 %v2461, %v2457
      %2568 = vmatprep.subr.bf16.mxu0 %v2551
      %2569 = vmatpush1.bf16.msra.mxu0 %v2550
      %2570 = vmatprep.subr.bf16.mxu0 %v2549
      %2571 = vmatpush1.bf16.msra.mxu0 %v2548
      %2572 = vmatprep.subr.bf16.mxu0 %v2547
      %2573 = vmatpush1.bf16.msra.mxu0 %v2546
      %2574 = vmatprep.subr.bf16.mxu0 %v2545
      %2575 = vmatpush1.bf16.msra.mxu0 %v2544
      %2576 = vmatprep.subr.bf16.mxu0 %v2543
      %2577 = vmatpush1.bf16.msra.mxu0 %v2542
      %2578 = vmatprep.subr.bf16.mxu0 %v2541
      %2579 = vmatpush1.bf16.msra.mxu0 %v2540
      %2580 = vmatprep.subr.bf16.mxu0 %v2539
      %2581 = vmatpush1.bf16.msra.mxu0 %v2538
      %2582 = vmatprep.subr.bf16.mxu0 %v2537
      %2583 = vmatpush1.bf16.msra.mxu0 %v2536
      %2584 = vmatprep.subr.bf16.mxu0 %v2567
      %2585 = vmatpush2.bf16.msra.mxu0 %v2566
      %2586 = vmatprep.subr.bf16.mxu0 %v2565
      %2587 = vmatpush2.bf16.msra.mxu0 %v2564
      %2588 = vmatprep.subr.bf16.mxu0 %v2563
      %2589 = vmatpush2.bf16.msra.mxu0 %v2562
      %2590 = vmatprep.subr.bf16.mxu0 %v2561
      %2591 = vmatpush2.bf16.msra.mxu0 %v2560
      %2592 = vmatprep.subr.bf16.mxu0 %v2559
      %2593 = vmatpush2.bf16.msra.mxu0 %v2558
      %2594 = vmatprep.subr.bf16.mxu0 %v2557
      %2595 = vmatpush2.bf16.msra.mxu0 %v2556
      %2596 = vmatprep.subr.bf16.mxu0 %v2555
      %2597 = vmatpush2.bf16.msra.mxu0 %v2554
      %2598 = vmatprep.subr.bf16.mxu0 %v2553
      %2599 = vmatpush2.bf16.msra.mxu0 %v2552
      %2600 = vmatprep.mubr.bf16.mxu0 %v1914
      %2601 = vmatmul.mubr.bf16.gmra.mxu0 %v1913
      %v2602 = vpop.f32.mrf.mxu0
      %v2603 = vadd.f32 0.0, %v2602
      %v2604 = vpop.f32.mrf.mxu0
      %v2605 = vadd.f32 0.0, %v2604
      %v2606 = vpop.f32.mrf.mxu0
      %v2607 = vpop.f32.mrf.mxu0
      %2608 = vdwg.mxu0
      %v2609 = vrcp.pop %v2498
      %v2610 = vrcp.pop %v2535
      %v2611 = vmul.f32 %v2603, %v2609
      %v2612 = vmul.f32 %v2605, %v2610
      %2613 = vst [vmem:[#allocation5] sm:$0xff] %v2611
      %2614 = vst [vmem:[#allocation5 + $0x8] sm:$0xff] %v2612
      %s2615 = scalar_lea.vmem [#allocation2], 16
      %v2616 = vld [vmem:[%s2615] sm:$0xff]
      %v2617 = vld [vmem:[%s2615 + $0x8] sm:$0xff]
      %v2618 = vpack.c.bf16 %v2616, %v2616
      %v2619 = vpack.c.bf16 %v2617, %v2617
      %s2620 = scalar_lea.vmem [#allocation3], 16
      %v2621 = vld [vmem:[%s2620] sm:$0xff]
      %v2622 = vld [vmem:[%s2620 + $0x8] sm:$0xff]
      %v2623 = vpack.c.bf16 %v2621, %v2621
      %v2624 = vpack.c.bf16 %v2622, %v2622
      %s2625 = scalar_lea.vmem [#allocation4], 16
      %v2626 = vld [vmem:[%s2625] sm:$0xff]
      %v2627 = vld [vmem:[%s2625 + $0x8] sm:$0xff]
      %v2628 = vpack.c.bf16 %v2626, %v2626
      %v2629 = vpack.c.bf16 %v2627, %v2627
      %2630 = vxpose.xlu0.c.b16.start [1/8] %v2623, 128
      %2631 = vxpose.xlu0.c.b16.cont [2/8] 0, 128
      %2632 = vxpose.xlu0.c.b16.cont [3/8] 0, 128
      %2633 = vxpose.xlu0.c.b16.cont [4/8] 0, 128
      %2634 = vxpose.xlu0.c.b16.cont [5/8] 0, 128
      %2635 = vxpose.xlu0.c.b16.cont [6/8] 0, 128
      %2636 = vxpose.xlu0.c.b16.cont [7/8] 0, 128
      %2637 = vxpose.xlu0.c.b16.end [8/8] 0, 128
      %v2638 = vpop.trf.xlu0
      %v2639 = vpop.trf.xlu0
      %v2640 = vpop.trf.xlu0
      %v2641 = vpop.trf.xlu0
      %v2642 = vpop.trf.xlu0
      %v2643 = vpop.trf.xlu0
      %v2644 = vpop.trf.xlu0
      %v2645 = vpop.trf.xlu0
      %2646 = vxpose.xlu0.c.b16.start [1/8] %v2624, 128
      %2647 = vxpose.xlu0.c.b16.cont [2/8] 0, 128
      %2648 = vxpose.xlu0.c.b16.cont [3/8] 0, 128
      %2649 = vxpose.xlu0.c.b16.cont [4/8] 0, 128
      %2650 = vxpose.xlu0.c.b16.cont [5/8] 0, 128
      %2651 = vxpose.xlu0.c.b16.cont [6/8] 0, 128
      %2652 = vxpose.xlu0.c.b16.cont [7/8] 0, 128
      %2653 = vxpose.xlu0.c.b16.end [8/8] 0, 128
      %v2654 = vpop.trf.xlu0
      %v2655 = vpop.trf.xlu0
      %v2656 = vpop.trf.xlu0
      %v2657 = vpop.trf.xlu0
      %v2658 = vpop.trf.xlu0
      %v2659 = vpop.trf.xlu0
      %v2660 = vpop.trf.xlu0
      %v2661 = vpop.trf.xlu0
      %v2663 = vsel %vm1947, %v2638, 0
      %v2666 = vsel %vm1947, %v2639, 0
      %v2669 = vsel %vm1947, %v2640, 0
      %v2672 = vsel %vm1947, %v2641, 0
      %v2675 = vsel %vm1947, %v2642, 0
      %v2678 = vsel %vm1947, %v2643, 0
      %v2681 = vsel %vm1947, %v2644, 0
      %v2684 = vsel %vm1947, %v2645, 0
      %v2687 = vsel %vm1947, %v2654, 0
      %v2690 = vsel %vm1947, %v2655, 0
      %v2693 = vsel %vm1947, %v2656, 0
      %v2696 = vsel %vm1947, %v2657, 0
      %v2699 = vsel %vm1947, %v2658, 0
      %v2702 = vsel %vm1947, %v2659, 0
      %v2705 = vsel %vm1947, %v2660, 0
      %v2708 = vsel %vm1947, %v2661, 0
      %v2711 = vsel %vm1996, %v2618, 0
      %v2714 = vsel %vm1996, %v2619, 0
      %2716 = vmatprep.subr.bf16.mxu0 0
      %2717 = vmatpush1.bf16.msra.mxu0 0
      %2718 = vmatprep.subr.bf16.mxu0 0
      %2719 = vmatpush1.bf16.msra.mxu0 0
      %2720 = vmatprep.subr.bf16.mxu0 0
      %2721 = vmatpush1.bf16.msra.mxu0 0
      %2722 = vmatprep.subr.bf16.mxu0 0
      %2723 = vmatpush1.bf16.msra.mxu0 0
      %2724 = vmatprep.subr.bf16.mxu0 0
      %2725 = vmatpush1.bf16.msra.mxu0 0
      %2726 = vmatprep.subr.bf16.mxu0 0
      %2727 = vmatpush1.bf16.msra.mxu0 0
      %2728 = vmatprep.subr.bf16.mxu0 0
      %2729 = vmatpush1.bf16.msra.mxu0 0
      %2730 = vmatprep.subr.bf16.mxu0 %v2714
      %2731 = vmatpush1.bf16.msra.mxu0 %v2711
      %2732 = vmatprep.subr.bf16.mxu0 0
      %2733 = vmatpush2.bf16.msra.mxu0 0
      %2734 = vmatprep.subr.bf16.mxu0 0
      %2735 = vmatpush2.bf16.msra.mxu0 0
      %2736 = vmatprep.subr.bf16.mxu0 0
      %2737 = vmatpush2.bf16.msra.mxu0 0
      %2738 = vmatprep.subr.bf16.mxu0 0
      %2739 = vmatpush2.bf16.msra.mxu0 0
      %2740 = vmatprep.subr.bf16.mxu0 0
      %2741 = vmatpush2.bf16.msra.mxu0 0
      %2742 = vmatprep.subr.bf16.mxu0 0
      %2743 = vmatpush2.bf16.msra.mxu0 0
      %2744 = vmatprep.subr.bf16.mxu0 0
      %2745 = vmatpush2.bf16.msra.mxu0 0
      %2746 = vmatprep.subr.bf16.mxu0 0
      %2747 = vmatpush2.bf16.msra.mxu0 0
      %2748 = vmatprep.mubr.bf16.mxu0 0
      %2749 = vmatmul.mubr.bf16.gmra.mxu0 %v2663
      %v2750 = vpop.f32.mrf.mxu0
      %v2751 = vadd.f32 0.0, %v2750
      %v2752 = vpop.f32.mrf.mxu0
      %v2753 = vadd.f32 0.0, %v2752
      %v2754 = vpop.f32.mrf.mxu0
      %v2755 = vadd.f32 0.0, %v2754
      %v2756 = vpop.f32.mrf.mxu0
      %v2757 = vadd.f32 0.0, %v2756
      %2758 = vmatprep.mubr.bf16.mxu0 0
      %2759 = vmatmul.mubr.bf16.gmra.mxu0 %v2666
      %v2760 = vpop.f32.mrf.mxu0
      %v2761 = vadd.f32 0.0, %v2760
      %v2762 = vpop.f32.mrf.mxu0
      %v2763 = vadd.f32 0.0, %v2762
      %v2764 = vpop.f32.mrf.mxu0
      %v2765 = vadd.f32 0.0, %v2764
      %v2766 = vpop.f32.mrf.mxu0
      %v2767 = vadd.f32 0.0, %v2766
      %2768 = vmatprep.mubr.bf16.mxu0 0
      %2769 = vmatmul.mubr.bf16.gmra.mxu0 %v2669
      %v2770 = vpop.f32.mrf.mxu0
      %v2771 = vadd.f32 0.0, %v2770
      %v2772 = vpop.f32.mrf.mxu0
      %v2773 = vadd.f32 0.0, %v2772
      %v2774 = vpop.f32.mrf.mxu0
      %v2775 = vadd.f32 0.0, %v2774
      %v2776 = vpop.f32.mrf.mxu0
      %v2777 = vadd.f32 0.0, %v2776
      %2778 = vmatprep.mubr.bf16.mxu0 0
      %2779 = vmatmul.mubr.bf16.gmra.mxu0 %v2672
      %v2780 = vpop.f32.mrf.mxu0
      %v2781 = vadd.f32 0.0, %v2780
      %v2782 = vpop.f32.mrf.mxu0
      %v2783 = vadd.f32 0.0, %v2782
      %v2784 = vpop.f32.mrf.mxu0
      %v2785 = vadd.f32 0.0, %v2784
      %v2786 = vpop.f32.mrf.mxu0
      %v2787 = vadd.f32 0.0, %v2786
      %2788 = vmatprep.mubr.bf16.mxu0 0
      %2789 = vmatmul.mubr.bf16.gmra.mxu0 %v2675
      %v2790 = vpop.f32.mrf.mxu0
      %v2791 = vadd.f32 0.0, %v2790
      %v2792 = vpop.f32.mrf.mxu0
      %v2793 = vadd.f32 0.0, %v2792
      %v2794 = vpop.f32.mrf.mxu0
      %v2795 = vadd.f32 0.0, %v2794
      %v2796 = vpop.f32.mrf.mxu0
      %v2797 = vadd.f32 0.0, %v2796
      %2798 = vmatprep.mubr.bf16.mxu0 0
      %2799 = vmatmul.mubr.bf16.gmra.mxu0 %v2678
      %v2800 = vpop.f32.mrf.mxu0
      %v2801 = vadd.f32 0.0, %v2800
      %v2802 = vpop.f32.mrf.mxu0
      %v2803 = vadd.f32 0.0, %v2802
      %v2804 = vpop.f32.mrf.mxu0
      %v2805 = vadd.f32 0.0, %v2804
      %v2806 = vpop.f32.mrf.mxu0
      %v2807 = vadd.f32 0.0, %v2806
      %2808 = vmatprep.mubr.bf16.mxu0 0
      %2809 = vmatmul.mubr.bf16.gmra.mxu0 %v2681
      %v2810 = vpop.f32.mrf.mxu0
      %v2811 = vadd.f32 0.0, %v2810
      %v2812 = vpop.f32.mrf.mxu0
      %v2813 = vadd.f32 0.0, %v2812
      %v2814 = vpop.f32.mrf.mxu0
      %v2815 = vadd.f32 0.0, %v2814
      %v2816 = vpop.f32.mrf.mxu0
      %v2817 = vadd.f32 0.0, %v2816
      %2818 = vmatprep.mubr.bf16.mxu0 0
      %2819 = vmatmul.mubr.bf16.gmra.mxu0 %v2684
      %v2820 = vpop.f32.mrf.mxu0
      %v2821 = vadd.f32 0.0, %v2820
      %v2822 = vpop.f32.mrf.mxu0
      %v2823 = vadd.f32 0.0, %v2822
      %v2824 = vpop.f32.mrf.mxu0
      %v2825 = vadd.f32 0.0, %v2824
      %v2826 = vpop.f32.mrf.mxu0
      %v2827 = vadd.f32 0.0, %v2826
      %2828 = vmatprep.mubr.bf16.mxu0 0
      %2829 = vmatmul.mubr.bf16.gmra.mxu0 %v2687
      %v2830 = vpop.f32.mrf.mxu0
      %v2831 = vadd.f32 0.0, %v2830
      %v2832 = vpop.f32.mrf.mxu0
      %v2833 = vadd.f32 0.0, %v2832
      %v2834 = vpop.f32.mrf.mxu0
      %v2835 = vadd.f32 0.0, %v2834
      %v2836 = vpop.f32.mrf.mxu0
      %v2837 = vadd.f32 0.0, %v2836
      %2838 = vmatprep.mubr.bf16.mxu0 0
      %2839 = vmatmul.mubr.bf16.gmra.mxu0 %v2690
      %v2840 = vpop.f32.mrf.mxu0
      %v2841 = vadd.f32 0.0, %v2840
      %v2842 = vpop.f32.mrf.mxu0
      %v2843 = vadd.f32 0.0, %v2842
      %v2844 = vpop.f32.mrf.mxu0
      %v2845 = vadd.f32 0.0, %v2844
      %v2846 = vpop.f32.mrf.mxu0
      %v2847 = vadd.f32 0.0, %v2846
      %2848 = vmatprep.mubr.bf16.mxu0 0
      %2849 = vmatmul.mubr.bf16.gmra.mxu0 %v2693
      %v2850 = vpop.f32.mrf.mxu0
      %v2851 = vadd.f32 0.0, %v2850
      %v2852 = vpop.f32.mrf.mxu0
      %v2853 = vadd.f32 0.0, %v2852
      %v2854 = vpop.f32.mrf.mxu0
      %v2855 = vadd.f32 0.0, %v2854
      %v2856 = vpop.f32.mrf.mxu0
      %v2857 = vadd.f32 0.0, %v2856
      %2858 = vmatprep.mubr.bf16.mxu0 0
      %2859 = vmatmul.mubr.bf16.gmra.mxu0 %v2696
      %v2860 = vpop.f32.mrf.mxu0
      %v2861 = vadd.f32 0.0, %v2860
      %v2862 = vpop.f32.mrf.mxu0
      %v2863 = vadd.f32 0.0, %v2862
      %v2864 = vpop.f32.mrf.mxu0
      %v2865 = vadd.f32 0.0, %v2864
      %v2866 = vpop.f32.mrf.mxu0
      %v2867 = vadd.f32 0.0, %v2866
      %2868 = vmatprep.mubr.bf16.mxu0 0
      %2869 = vmatmul.mubr.bf16.gmra.mxu0 %v2699
      %v2870 = vpop.f32.mrf.mxu0
      %v2871 = vadd.f32 0.0, %v2870
      %v2872 = vpop.f32.mrf.mxu0
      %v2873 = vadd.f32 0.0, %v2872
      %v2874 = vpop.f32.mrf.mxu0
      %v2875 = vadd.f32 0.0, %v2874
      %v2876 = vpop.f32.mrf.mxu0
      %v2877 = vadd.f32 0.0, %v2876
      %2878 = vmatprep.mubr.bf16.mxu0 0
      %2879 = vmatmul.mubr.bf16.gmra.mxu0 %v2702
      %v2880 = vpop.f32.mrf.mxu0
      %v2881 = vadd.f32 0.0, %v2880
      %v2882 = vpop.f32.mrf.mxu0
      %v2883 = vadd.f32 0.0, %v2882
      %v2884 = vpop.f32.mrf.mxu0
      %v2885 = vadd.f32 0.0, %v2884
      %v2886 = vpop.f32.mrf.mxu0
      %v2887 = vadd.f32 0.0, %v2886
      %2888 = vmatprep.mubr.bf16.mxu0 0
      %2889 = vmatmul.mubr.bf16.gmra.mxu0 %v2705
      %v2890 = vpop.f32.mrf.mxu0
      %v2891 = vadd.f32 0.0, %v2890
      %v2892 = vpop.f32.mrf.mxu0
      %v2893 = vadd.f32 0.0, %v2892
      %v2894 = vpop.f32.mrf.mxu0
      %v2895 = vadd.f32 0.0, %v2894
      %v2896 = vpop.f32.mrf.mxu0
      %v2897 = vadd.f32 0.0, %v2896
      %2898 = vmatprep.mubr.bf16.mxu0 0
      %2899 = vmatmul.mubr.bf16.gmra.mxu0 %v2708
      %v2900 = vpop.f32.mrf.mxu0
      %v2901 = vadd.f32 0.0, %v2900
      %v2902 = vpop.f32.mrf.mxu0
      %v2903 = vadd.f32 0.0, %v2902
      %v2904 = vpop.f32.mrf.mxu0
      %v2905 = vadd.f32 0.0, %v2904
      %v2906 = vpop.f32.mrf.mxu0
      %v2907 = vadd.f32 0.0, %v2906
      %2908 = vdwg.mxu0
      %v2909 = vmax.f32 %v2751, %v2761
      %v2910 = vmax.f32 %v2755, %v2765
      %v2911 = vmax.f32 %v2909, %v2771
      %v2912 = vmax.f32 %v2910, %v2775
      %v2913 = vmax.f32 %v2911, %v2781
      %v2914 = vmax.f32 %v2912, %v2785
      %v2915 = vmax.f32 %v2913, %v2791
      %v2916 = vmax.f32 %v2914, %v2795
      %v2917 = vmax.f32 %v2915, %v2801
      %v2918 = vmax.f32 %v2916, %v2805
      %v2919 = vmax.f32 %v2917, %v2811
      %v2920 = vmax.f32 %v2918, %v2815
      %v2921 = vmax.f32 %v2919, %v2821
      %v2922 = vmax.f32 %v2920, %v2825
      %v2923 = vmax.f32 %v2921, %v2831
      %v2924 = vmax.f32 %v2922, %v2835
      %v2925 = vmax.f32 %v2923, %v2841
      %v2926 = vmax.f32 %v2924, %v2845
      %v2927 = vmax.f32 %v2925, %v2851
      %v2928 = vmax.f32 %v2926, %v2855
      %v2929 = vmax.f32 %v2927, %v2861
      %v2930 = vmax.f32 %v2928, %v2865
      %v2931 = vmax.f32 %v2929, %v2871
      %v2932 = vmax.f32 %v2930, %v2875
      %v2933 = vmax.f32 %v2931, %v2881
      %v2934 = vmax.f32 %v2932, %v2885
      %v2935 = vmax.f32 %v2933, %v2891
      %v2936 = vmax.f32 %v2934, %v2895
      %v2937 = vmax.f32 %v2935, %v2901
      %v2938 = vmax.f32 %v2936, %v2905
      %v2939 = vmax.f32 %v2937, %v2938
      %v2940 = vrot.slane %v2939, 4
      %v2941 = vmax.f32 %v2939, %v2940
      %v2942 = vrot.slane %v2941, 2
      %v2943 = vmax.f32 %v2941, %v2942
      %v2944 = vrot.slane %v2943, 1
      %v2945 = vmax.f32 %v2943, %v2944
      %v2946 = vmax.f32 %v2753, %v2763
      %v2947 = vmax.f32 %v2757, %v2767
      %v2948 = vmax.f32 %v2946, %v2773
      %v2949 = vmax.f32 %v2947, %v2777
      %v2950 = vmax.f32 %v2948, %v2783
      %v2951 = vmax.f32 %v2949, %v2787
      %v2952 = vmax.f32 %v2950, %v2793
      %v2953 = vmax.f32 %v2951, %v2797
      %v2954 = vmax.f32 %v2952, %v2803
      %v2955 = vmax.f32 %v2953, %v2807
      %v2956 = vmax.f32 %v2954, %v2813
      %v2957 = vmax.f32 %v2955, %v2817
      %v2958 = vmax.f32 %v2956, %v2823
      %v2959 = vmax.f32 %v2957, %v2827
      %v2960 = vmax.f32 %v2958, %v2833
      %v2961 = vmax.f32 %v2959, %v2837
      %v2962 = vmax.f32 %v2960, %v2843
      %v2963 = vmax.f32 %v2961, %v2847
      %v2964 = vmax.f32 %v2962, %v2853
      %v2965 = vmax.f32 %v2963, %v2857
      %v2966 = vmax.f32 %v2964, %v2863
      %v2967 = vmax.f32 %v2965, %v2867
      %v2968 = vmax.f32 %v2966, %v2873
      %v2969 = vmax.f32 %v2967, %v2877
      %v2970 = vmax.f32 %v2968, %v2883
      %v2971 = vmax.f32 %v2969, %v2887
      %v2972 = vmax.f32 %v2970, %v2893
      %v2973 = vmax.f32 %v2971, %v2897
      %v2974 = vmax.f32 %v2972, %v2903
      %v2975 = vmax.f32 %v2973, %v2907
      %v2976 = vmax.f32 %v2974, %v2975
      %v2977 = vrot.slane %v2976, 4
      %v2978 = vmax.f32 %v2976, %v2977
      %v2979 = vrot.slane %v2978, 2
      %v2980 = vmax.f32 %v2978, %v2979
      %v2981 = vrot.slane %v2980, 1
      %v2982 = vmax.f32 %v2980, %v2981
      %v2983 = vsub.f32 %v2751, %v2945
      %v2984 = vsub.f32 %v2753, %v2982
      %v2985 = vsub.f32 %v2755, %v2945
      %v2986 = vsub.f32 %v2757, %v2982
      %v2987 = vsub.f32 %v2761, %v2945
      %v2988 = vsub.f32 %v2763, %v2982
      %v2989 = vsub.f32 %v2765, %v2945
      %v2990 = vsub.f32 %v2767, %v2982
      %v2991 = vsub.f32 %v2771, %v2945
      %v2992 = vsub.f32 %v2773, %v2982
      %v2993 = vsub.f32 %v2775, %v2945
      %v2994 = vsub.f32 %v2777, %v2982
      %v2995 = vsub.f32 %v2781, %v2945
      %v2996 = vsub.f32 %v2783, %v2982
      %v2997 = vsub.f32 %v2785, %v2945
      %v2998 = vsub.f32 %v2787, %v2982
      %v2999 = vsub.f32 %v2791, %v2945
      %v3000 = vsub.f32 %v2793, %v2982
      %v3001 = vsub.f32 %v2795, %v2945
      %v3002 = vsub.f32 %v2797, %v2982
      %v3003 = vsub.f32 %v2801, %v2945
      %v3004 = vsub.f32 %v2803, %v2982
      %v3005 = vsub.f32 %v2805, %v2945
      %v3006 = vsub.f32 %v2807, %v2982
      %v3007 = vsub.f32 %v2811, %v2945
      %v3008 = vsub.f32 %v2813, %v2982
      %v3009 = vsub.f32 %v2815, %v2945
      %v3010 = vsub.f32 %v2817, %v2982
      %v3011 = vsub.f32 %v2821, %v2945
      %v3012 = vsub.f32 %v2823, %v2982
      %v3013 = vsub.f32 %v2825, %v2945
      %v3014 = vsub.f32 %v2827, %v2982
      %v3015 = vsub.f32 %v2831, %v2945
      %v3016 = vsub.f32 %v2833, %v2982
      %v3017 = vsub.f32 %v2835, %v2945
      %v3018 = vsub.f32 %v2837, %v2982
      %v3019 = vsub.f32 %v2841, %v2945
      %v3020 = vsub.f32 %v2843, %v2982
      %v3021 = vsub.f32 %v2845, %v2945
      %v3022 = vsub.f32 %v2847, %v2982
      %v3023 = vsub.f32 %v2851, %v2945
      %v3024 = vsub.f32 %v2853, %v2982
      %v3025 = vsub.f32 %v2855, %v2945
      %v3026 = vsub.f32 %v2857, %v2982
      %v3027 = vsub.f32 %v2861, %v2945
      %v3028 = vsub.f32 %v2863, %v2982
      %v3029 = vsub.f32 %v2865, %v2945
      %v3030 = vsub.f32 %v2867, %v2982
      %v3031 = vsub.f32 %v2871, %v2945
      %v3032 = vsub.f32 %v2873, %v2982
      %v3033 = vsub.f32 %v2875, %v2945
      %v3034 = vsub.f32 %v2877, %v2982
      %v3035 = vsub.f32 %v2881, %v2945
      %v3036 = vsub.f32 %v2883, %v2982
      %v3037 = vsub.f32 %v2885, %v2945
      %v3038 = vsub.f32 %v2887, %v2982
      %v3039 = vsub.f32 %v2891, %v2945
      %v3040 = vsub.f32 %v2893, %v2982
      %v3041 = vsub.f32 %v2895, %v2945
      %v3042 = vsub.f32 %v2897, %v2982
      %v3043 = vsub.f32 %v2901, %v2945
      %v3044 = vsub.f32 %v2903, %v2982
      %v3045 = vsub.f32 %v2905, %v2945
      %v3046 = vsub.f32 %v2907, %v2982
      %v3047 = vmul.f32 %v2983, 1.442695
      %v3048 = vpow.pop %v3047
      %v3049 = vmul.f32 %v2984, 1.442695
      %v3050 = vpow.pop %v3049
      %v3051 = vmul.f32 %v2985, 1.442695
      %v3052 = vpow.pop %v3051
      %v3053 = vmul.f32 %v2986, 1.442695
      %v3054 = vpow.pop %v3053
      %v3055 = vmul.f32 %v2987, 1.442695
      %v3056 = vpow.pop %v3055
      %v3057 = vmul.f32 %v2988, 1.442695
      %v3058 = vpow.pop %v3057
      %v3059 = vmul.f32 %v2989, 1.442695
      %v3060 = vpow.pop %v3059
      %v3061 = vmul.f32 %v2990, 1.442695
      %v3062 = vpow.pop %v3061
      %v3063 = vmul.f32 %v2991, 1.442695
      %v3064 = vpow.pop %v3063
      %v3065 = vmul.f32 %v2992, 1.442695
      %v3066 = vpow.pop %v3065
      %v3067 = vmul.f32 %v2993, 1.442695
      %v3068 = vpow.pop %v3067
      %v3069 = vmul.f32 %v2994, 1.442695
      %v3070 = vpow.pop %v3069
      %v3071 = vmul.f32 %v2995, 1.442695
      %v3072 = vpow.pop %v3071
      %v3073 = vmul.f32 %v2996, 1.442695
      %v3074 = vpow.pop %v3073
      %v3075 = vmul.f32 %v2997, 1.442695
      %v3076 = vpow.pop %v3075
      %v3077 = vmul.f32 %v2998, 1.442695
      %v3078 = vpow.pop %v3077
      %v3079 = vmul.f32 %v2999, 1.442695
      %v3080 = vpow.pop %v3079
      %v3081 = vmul.f32 %v3000, 1.442695
      %v3082 = vpow.pop %v3081
      %v3083 = vmul.f32 %v3001, 1.442695
      %v3084 = vpow.pop %v3083
      %v3085 = vmul.f32 %v3002, 1.442695
      %v3086 = vpow.pop %v3085
      %v3087 = vmul.f32 %v3003, 1.442695
      %v3088 = vpow.pop %v3087
      %v3089 = vmul.f32 %v3004, 1.442695
      %v3090 = vpow.pop %v3089
      %v3091 = vmul.f32 %v3005, 1.442695
      %v3092 = vpow.pop %v3091
      %v3093 = vmul.f32 %v3006, 1.442695
      %v3094 = vpow.pop %v3093
      %v3095 = vmul.f32 %v3007, 1.442695
      %v3096 = vpow.pop %v3095
      %v3097 = vmul.f32 %v3008, 1.442695
      %v3098 = vpow.pop %v3097
      %v3099 = vmul.f32 %v3009, 1.442695
      %v3100 = vpow.pop %v3099
      %v3101 = vmul.f32 %v3010, 1.442695
      %v3102 = vpow.pop %v3101
      %v3103 = vmul.f32 %v3011, 1.442695
      %v3104 = vpow.pop %v3103
      %v3105 = vmul.f32 %v3012, 1.442695
      %v3106 = vpow.pop %v3105
      %v3107 = vmul.f32 %v3013, 1.442695
      %v3108 = vpow.pop %v3107
      %v3109 = vmul.f32 %v3014, 1.442695
      %v3110 = vpow.pop %v3109
      %v3111 = vmul.f32 %v3015, 1.442695
      %v3112 = vpow.pop %v3111
      %v3113 = vmul.f32 %v3016, 1.442695
      %v3114 = vpow.pop %v3113
      %v3115 = vmul.f32 %v3017, 1.442695
      %v3116 = vpow.pop %v3115
      %v3117 = vmul.f32 %v3018, 1.442695
      %v3118 = vpow.pop %v3117
      %v3119 = vmul.f32 %v3019, 1.442695
      %v3120 = vpow.pop %v3119
      %v3121 = vmul.f32 %v3020, 1.442695
      %v3122 = vpow.pop %v3121
      %v3123 = vmul.f32 %v3021, 1.442695
      %v3124 = vpow.pop %v3123
      %v3125 = vmul.f32 %v3022, 1.442695
      %v3126 = vpow.pop %v3125
      %v3127 = vmul.f32 %v3023, 1.442695
      %v3128 = vpow.pop %v3127
      %v3129 = vmul.f32 %v3024, 1.442695
      %v3130 = vpow.pop %v3129
      %v3131 = vmul.f32 %v3025, 1.442695
      %v3132 = vpow.pop %v3131
      %v3133 = vmul.f32 %v3026, 1.442695
      %v3134 = vpow.pop %v3133
      %v3135 = vmul.f32 %v3027, 1.442695
      %v3136 = vpow.pop %v3135
      %v3137 = vmul.f32 %v3028, 1.442695
      %v3138 = vpow.pop %v3137
      %v3139 = vmul.f32 %v3029, 1.442695
      %v3140 = vpow.pop %v3139
      %v3141 = vmul.f32 %v3030, 1.442695
      %v3142 = vpow.pop %v3141
      %v3143 = vmul.f32 %v3031, 1.442695
      %v3144 = vpow.pop %v3143
      %v3145 = vmul.f32 %v3032, 1.442695
      %v3146 = vpow.pop %v3145
      %v3147 = vmul.f32 %v3033, 1.442695
      %v3148 = vpow.pop %v3147
      %v3149 = vmul.f32 %v3034, 1.442695
      %v3150 = vpow.pop %v3149
      %v3151 = vmul.f32 %v3035, 1.442695
      %v3152 = vpow.pop %v3151
      %v3153 = vmul.f32 %v3036, 1.442695
      %v3154 = vpow.pop %v3153
      %v3155 = vmul.f32 %v3037, 1.442695
      %v3156 = vpow.pop %v3155
      %v3157 = vmul.f32 %v3038, 1.442695
      %v3158 = vpow.pop %v3157
      %v3159 = vmul.f32 %v3039, 1.442695
      %v3160 = vpow.pop %v3159
      %v3161 = vmul.f32 %v3040, 1.442695
      %v3162 = vpow.pop %v3161
      %v3163 = vmul.f32 %v3041, 1.442695
      %v3164 = vpow.pop %v3163
      %v3165 = vmul.f32 %v3042, 1.442695
      %v3166 = vpow.pop %v3165
      %v3167 = vmul.f32 %v3043, 1.442695
      %v3168 = vpow.pop %v3167
      %v3169 = vmul.f32 %v3044, 1.442695
      %v3170 = vpow.pop %v3169
      %v3171 = vmul.f32 %v3045, 1.442695
      %v3172 = vpow.pop %v3171
      %v3173 = vmul.f32 %v3046, 1.442695
      %v3174 = vpow.pop %v3173
      %v3175 = vadd.f32 %v3048, %v3052
      %v3176 = vadd.f32 %v3175, %v3056
      %v3177 = vadd.f32 %v3176, %v3060
      %v3178 = vadd.f32 %v3177, %v3064
      %v3179 = vadd.f32 %v3178, %v3068
      %v3180 = vadd.f32 %v3179, %v3072
      %v3181 = vadd.f32 %v3180, %v3076
      %v3182 = vadd.f32 %v3181, %v3080
      %v3183 = vadd.f32 %v3182, %v3084
      %v3184 = vadd.f32 %v3183, %v3088
      %v3185 = vadd.f32 %v3184, %v3092
      %v3186 = vadd.f32 %v3185, %v3096
      %v3187 = vadd.f32 %v3186, %v3100
      %v3188 = vadd.f32 %v3187, %v3104
      %v3189 = vadd.f32 %v3188, %v3108
      %v3190 = vadd.f32 %v3189, %v3112
      %v3191 = vadd.f32 %v3190, %v3116
      %v3192 = vadd.f32 %v3191, %v3120
      %v3193 = vadd.f32 %v3192, %v3124
      %v3194 = vadd.f32 %v3193, %v3128
      %v3195 = vadd.f32 %v3194, %v3132
      %v3196 = vadd.f32 %v3195, %v3136
      %v3197 = vadd.f32 %v3196, %v3140
      %v3198 = vadd.f32 %v3197, %v3144
      %v3199 = vadd.f32 %v3198, %v3148
      %v3200 = vadd.f32 %v3199, %v3152
      %v3201 = vadd.f32 %v3200, %v3156
      %v3202 = vadd.f32 %v3201, %v3160
      %v3203 = vadd.f32 %v3202, %v3164
      %v3204 = vadd.f32 %v3203, %v3168
      %v3205 = vadd.f32 %v3204, %v3172
      %v3206 = vrot.slane %v3205, 4
      %v3207 = vadd.f32 %v3205, %v3206
      %v3208 = vrot.slane %v3207, 2
      %v3209 = vadd.f32 %v3207, %v3208
      %v3210 = vrot.slane %v3209, 1
      %v3211 = vadd.f32 %v3209, %v3210
      %v3212 = vadd.f32 %v3050, %v3054
      %v3213 = vadd.f32 %v3212, %v3058
      %v3214 = vadd.f32 %v3213, %v3062
      %v3215 = vadd.f32 %v3214, %v3066
      %v3216 = vadd.f32 %v3215, %v3070
      %v3217 = vadd.f32 %v3216, %v3074
      %v3218 = vadd.f32 %v3217, %v3078
      %v3219 = vadd.f32 %v3218, %v3082
      %v3220 = vadd.f32 %v3219, %v3086
      %v3221 = vadd.f32 %v3220, %v3090
      %v3222 = vadd.f32 %v3221, %v3094
      %v3223 = vadd.f32 %v3222, %v3098
      %v3224 = vadd.f32 %v3223, %v3102
      %v3225 = vadd.f32 %v3224, %v3106
      %v3226 = vadd.f32 %v3225, %v3110
      %v3227 = vadd.f32 %v3226, %v3114
      %v3228 = vadd.f32 %v3227, %v3118
      %v3229 = vadd.f32 %v3228, %v3122
      %v3230 = vadd.f32 %v3229, %v3126
      %v3231 = vadd.f32 %v3230, %v3130
      %v3232 = vadd.f32 %v3231, %v3134
      %v3233 = vadd.f32 %v3232, %v3138
      %v3234 = vadd.f32 %v3233, %v3142
      %v3235 = vadd.f32 %v3234, %v3146
      %v3236 = vadd.f32 %v3235, %v3150
      %v3237 = vadd.f32 %v3236, %v3154
      %v3238 = vadd.f32 %v3237, %v3158
      %v3239 = vadd.f32 %v3238, %v3162
      %v3240 = vadd.f32 %v3239, %v3166
      %v3241 = vadd.f32 %v3240, %v3170
      %v3242 = vadd.f32 %v3241, %v3174
      %v3243 = vrot.slane %v3242, 4
      %v3244 = vadd.f32 %v3242, %v3243
      %v3245 = vrot.slane %v3244, 2
      %v3246 = vadd.f32 %v3244, %v3245
      %v3247 = vrot.slane %v3246, 1
      %v3248 = vadd.f32 %v3246, %v3247
      %v3249 = vpack.c.bf16 %v3052, %v3048
      %v3250 = vpack.c.bf16 %v3054, %v3050
      %v3251 = vpack.c.bf16 %v3060, %v3056
      %v3252 = vpack.c.bf16 %v3062, %v3058
      %v3253 = vpack.c.bf16 %v3068, %v3064
      %v3254 = vpack.c.bf16 %v3070, %v3066
      %v3255 = vpack.c.bf16 %v3076, %v3072
      %v3256 = vpack.c.bf16 %v3078, %v3074
      %v3257 = vpack.c.bf16 %v3084, %v3080
      %v3258 = vpack.c.bf16 %v3086, %v3082
      %v3259 = vpack.c.bf16 %v3092, %v3088
      %v3260 = vpack.c.bf16 %v3094, %v3090
      %v3261 = vpack.c.bf16 %v3100, %v3096
      %v3262 = vpack.c.bf16 %v3102, %v3098
      %v3263 = vpack.c.bf16 %v3108, %v3104
      %v3264 = vpack.c.bf16 %v3110, %v3106
      %v3265 = vpack.c.bf16 %v3116, %v3112
      %v3266 = vpack.c.bf16 %v3118, %v3114
      %v3267 = vpack.c.bf16 %v3124, %v3120
      %v3268 = vpack.c.bf16 %v3126, %v3122
      %v3269 = vpack.c.bf16 %v3132, %v3128
      %v3270 = vpack.c.bf16 %v3134, %v3130
      %v3271 = vpack.c.bf16 %v3140, %v3136
      %v3272 = vpack.c.bf16 %v3142, %v3138
      %v3273 = vpack.c.bf16 %v3148, %v3144
      %v3274 = vpack.c.bf16 %v3150, %v3146
      %v3275 = vpack.c.bf16 %v3156, %v3152
      %v3276 = vpack.c.bf16 %v3158, %v3154
      %v3277 = vpack.c.bf16 %v3164, %v3160
      %v3278 = vpack.c.bf16 %v3166, %v3162
      %v3279 = vpack.c.bf16 %v3172, %v3168
      %v3280 = vpack.c.bf16 %v3174, %v3170
      %3281 = vmatprep.subr.bf16.mxu0 %v3264
      %3282 = vmatpush1.bf16.msra.mxu0 %v3263
      %3283 = vmatprep.subr.bf16.mxu0 %v3262
      %3284 = vmatpush1.bf16.msra.mxu0 %v3261
      %3285 = vmatprep.subr.bf16.mxu0 %v3260
      %3286 = vmatpush1.bf16.msra.mxu0 %v3259
      %3287 = vmatprep.subr.bf16.mxu0 %v3258
      %3288 = vmatpush1.bf16.msra.mxu0 %v3257
      %3289 = vmatprep.subr.bf16.mxu0 %v3256
      %3290 = vmatpush1.bf16.msra.mxu0 %v3255
      %3291 = vmatprep.subr.bf16.mxu0 %v3254
      %3292 = vmatpush1.bf16.msra.mxu0 %v3253
      %3293 = vmatprep.subr.bf16.mxu0 %v3252
      %3294 = vmatpush1.bf16.msra.mxu0 %v3251
      %3295 = vmatprep.subr.bf16.mxu0 %v3250
      %3296 = vmatpush1.bf16.msra.mxu0 %v3249
      %3297 = vmatprep.subr.bf16.mxu0 %v3280
      %3298 = vmatpush2.bf16.msra.mxu0 %v3279
      %3299 = vmatprep.subr.bf16.mxu0 %v3278
      %3300 = vmatpush2.bf16.msra.mxu0 %v3277
      %3301 = vmatprep.subr.bf16.mxu0 %v3276
      %3302 = vmatpush2.bf16.msra.mxu0 %v3275
      %3303 = vmatprep.subr.bf16.mxu0 %v3274
      %3304 = vmatpush2.bf16.msra.mxu0 %v3273
      %3305 = vmatprep.subr.bf16.mxu0 %v3272
      %3306 = vmatpush2.bf16.msra.mxu0 %v3271
      %3307 = vmatprep.subr.bf16.mxu0 %v3270
      %3308 = vmatpush2.bf16.msra.mxu0 %v3269
      %3309 = vmatprep.subr.bf16.mxu0 %v3268
      %3310 = vmatpush2.bf16.msra.mxu0 %v3267
      %3311 = vmatprep.subr.bf16.mxu0 %v3266
      %3312 = vmatpush2.bf16.msra.mxu0 %v3265
      %3313 = vmatprep.mubr.bf16.mxu0 %v2629
      %3314 = vmatmul.mubr.bf16.gmra.mxu0 %v2628
      %v3315 = vpop.f32.mrf.mxu0
      %v3316 = vadd.f32 0.0, %v3315
      %v3317 = vpop.f32.mrf.mxu0
      %v3318 = vadd.f32 0.0, %v3317
      %v3319 = vpop.f32.mrf.mxu0
      %v3320 = vpop.f32.mrf.mxu0
      %3321 = vdwg.mxu0
      %v3322 = vrcp.pop %v3211
      %v3323 = vrcp.pop %v3248
      %v3324 = vmul.f32 %v3316, %v3322
      %v3325 = vmul.f32 %v3318, %v3323
      %s3326 = scalar_lea.vmem [#allocation5], 16
      %3327 = vst [vmem:[%s3326] sm:$0xff] %v3324
      %3328 = vst [vmem:[%s3326 + $0x8] sm:$0xff] %v3325
      %s3329 = scalar_lea.vmem [#allocation2], 32
      %v3330 = vld [vmem:[%s3329] sm:$0xff]
      %v3331 = vld [vmem:[%s3329 + $0x8] sm:$0xff]
      %v3332 = vpack.c.bf16 %v3330, %v3330
      %v3333 = vpack.c.bf16 %v3331, %v3331
      %s3334 = scalar_lea.vmem [#allocation3], 32
      %v3335 = vld [vmem:[%s3334] sm:$0xff]
      %v3336 = vld [vmem:[%s3334 + $0x8] sm:$0xff]
      %v3337 = vpack.c.bf16 %v3335, %v3335
      %v3338 = vpack.c.bf16 %v3336, %v3336
      %s3339 = scalar_lea.vmem [#allocation4], 32
      %v3340 = vld [vmem:[%s3339] sm:$0xff]
      %v3341 = vld [vmem:[%s3339 + $0x8] sm:$0xff]
      %v3342 = vpack.c.bf16 %v3340, %v3340
      %v3343 = vpack.c.bf16 %v3341, %v3341
      %3344 = vxpose.xlu0.c.b16.start [1/8] %v3337, 128
      %3345 = vxpose.xlu0.c.b16.cont [2/8] 0, 128
      %3346 = vxpose.xlu0.c.b16.cont [3/8] 0, 128
      %3347 = vxpose.xlu0.c.b16.cont [4/8] 0, 128
      %3348 = vxpose.xlu0.c.b16.cont [5/8] 0, 128
      %3349 = vxpose.xlu0.c.b16.cont [6/8] 0, 128
      %3350 = vxpose.xlu0.c.b16.cont [7/8] 0, 128
      %3351 = vxpose.xlu0.c.b16.end [8/8] 0, 128
      %v3352 = vpop.trf.xlu0
      %v3353 = vpop.trf.xlu0
      %v3354 = vpop.trf.xlu0
      %v3355 = vpop.trf.xlu0
      %v3356 = vpop.trf.xlu0
      %v3357 = vpop.trf.xlu0
      %v3358 = vpop.trf.xlu0
      %v3359 = vpop.trf.xlu0
      %3360 = vxpose.xlu0.c.b16.start [1/8] %v3338, 128
      %3361 = vxpose.xlu0.c.b16.cont [2/8] 0, 128
      %3362 = vxpose.xlu0.c.b16.cont [3/8] 0, 128
      %3363 = vxpose.xlu0.c.b16.cont [4/8] 0, 128
      %3364 = vxpose.xlu0.c.b16.cont [5/8] 0, 128
      %3365 = vxpose.xlu0.c.b16.cont [6/8] 0, 128
      %3366 = vxpose.xlu0.c.b16.cont [7/8] 0, 128
      %3367 = vxpose.xlu0.c.b16.end [8/8] 0, 128
      %v3368 = vpop.trf.xlu0
      %v3369 = vpop.trf.xlu0
      %v3370 = vpop.trf.xlu0
      %v3371 = vpop.trf.xlu0
      %v3372 = vpop.trf.xlu0
      %v3373 = vpop.trf.xlu0
      %v3374 = vpop.trf.xlu0
      %v3375 = vpop.trf.xlu0
      %v3377 = vsel %vm1947, %v3352, 0
      %v3380 = vsel %vm1947, %v3353, 0
      %v3383 = vsel %vm1947, %v3354, 0
      %v3386 = vsel %vm1947, %v3355, 0
      %v3389 = vsel %vm1947, %v3356, 0
      %v3392 = vsel %vm1947, %v3357, 0
      %v3395 = vsel %vm1947, %v3358, 0
      %v3398 = vsel %vm1947, %v3359, 0
      %v3401 = vsel %vm1947, %v3368, 0
      %v3404 = vsel %vm1947, %v3369, 0
      %v3407 = vsel %vm1947, %v3370, 0
      %v3410 = vsel %vm1947, %v3371, 0
      %v3413 = vsel %vm1947, %v3372, 0
      %v3416 = vsel %vm1947, %v3373, 0
      %v3419 = vsel %vm1947, %v3374, 0
      %v3422 = vsel %vm1947, %v3375, 0
      %v3425 = vsel %vm1996, %v3332, 0
      %v3428 = vsel %vm1996, %v3333, 0
      %3430 = vmatprep.subr.bf16.mxu0 0
      %3431 = vmatpush1.bf16.msra.mxu0 0
      %3432 = vmatprep.subr.bf16.mxu0 0
      %3433 = vmatpush1.bf16.msra.mxu0 0
      %3434 = vmatprep.subr.bf16.mxu0 0
      %3435 = vmatpush1.bf16.msra.mxu0 0
      %3436 = vmatprep.subr.bf16.mxu0 0
      %3437 = vmatpush1.bf16.msra.mxu0 0
      %3438 = vmatprep.subr.bf16.mxu0 0
      %3439 = vmatpush1.bf16.msra.mxu0 0
      %3440 = vmatprep.subr.bf16.mxu0 0
      %3441 = vmatpush1.bf16.msra.mxu0 0
      %3442 = vmatprep.subr.bf16.mxu0 0
      %3443 = vmatpush1.bf16.msra.mxu0 0
      %3444 = vmatprep.subr.bf16.mxu0 %v3428
      %3445 = vmatpush1.bf16.msra.mxu0 %v3425
      %3446 = vmatprep.subr.bf16.mxu0 0
      %3447 = vmatpush2.bf16.msra.mxu0 0
      %3448 = vmatprep.subr.bf16.mxu0 0
      %3449 = vmatpush2.bf16.msra.mxu0 0
      %3450 = vmatprep.subr.bf16.mxu0 0
      %3451 = vmatpush2.bf16.msra.mxu0 0
      %3452 = vmatprep.subr.bf16.mxu0 0
      %3453 = vmatpush2.bf16.msra.mxu0 0
      %3454 = vmatprep.subr.bf16.mxu0 0
      %3455 = vmatpush2.bf16.msra.mxu0 0
      %3456 = vmatprep.subr.bf16.mxu0 0
      %3457 = vmatpush2.bf16.msra.mxu0 0
      %3458 = vmatprep.subr.bf16.mxu0 0
      %3459 = vmatpush2.bf16.msra.mxu0 0
      %3460 = vmatprep.subr.bf16.mxu0 0
      %3461 = vmatpush2.bf16.msra.mxu0 0
      %3462 = vmatprep.mubr.bf16.mxu0 0
      %3463 = vmatmul.mubr.bf16.gmra.mxu0 %v3377
      %v3464 = vpop.f32.mrf.mxu0
      %v3465 = vadd.f32 0.0, %v3464
      %v3466 = vpop.f32.mrf.mxu0
      %v3467 = vadd.f32 0.0, %v3466
      %v3468 = vpop.f32.mrf.mxu0
      %v3469 = vadd.f32 0.0, %v3468
      %v3470 = vpop.f32.mrf.mxu0
      %v3471 = vadd.f32 0.0, %v3470
      %3472 = vmatprep.mubr.bf16.mxu0 0
      %3473 = vmatmul.mubr.bf16.gmra.mxu0 %v3380
      %v3474 = vpop.f32.mrf.mxu0
      %v3475 = vadd.f32 0.0, %v3474
      %v3476 = vpop.f32.mrf.mxu0
      %v3477 = vadd.f32 0.0, %v3476
      %v3478 = vpop.f32.mrf.mxu0
      %v3479 = vadd.f32 0.0, %v3478
      %v3480 = vpop.f32.mrf.mxu0
      %v3481 = vadd.f32 0.0, %v3480
      %3482 = vmatprep.mubr.bf16.mxu0 0
      %3483 = vmatmul.mubr.bf16.gmra.mxu0 %v3383
      %v3484 = vpop.f32.mrf.mxu0
      %v3485 = vadd.f32 0.0, %v3484
      %v3486 = vpop.f32.mrf.mxu0
      %v3487 = vadd.f32 0.0, %v3486
      %v3488 = vpop.f32.mrf.mxu0
      %v3489 = vadd.f32 0.0, %v3488
      %v3490 = vpop.f32.mrf.mxu0
      %v3491 = vadd.f32 0.0, %v3490
      %3492 = vmatprep.mubr.bf16.mxu0 0
      %3493 = vmatmul.mubr.bf16.gmra.mxu0 %v3386
      %v3494 = vpop.f32.mrf.mxu0
      %v3495 = vadd.f32 0.0, %v3494
      %v3496 = vpop.f32.mrf.mxu0
      %v3497 = vadd.f32 0.0, %v3496
      %v3498 = vpop.f32.mrf.mxu0
      %v3499 = vadd.f32 0.0, %v3498
      %v3500 = vpop.f32.mrf.mxu0
      %v3501 = vadd.f32 0.0, %v3500
      %3502 = vmatprep.mubr.bf16.mxu0 0
      %3503 = vmatmul.mubr.bf16.gmra.mxu0 %v3389
      %v3504 = vpop.f32.mrf.mxu0
      %v3505 = vadd.f32 0.0, %v3504
      %v3506 = vpop.f32.mrf.mxu0
      %v3507 = vadd.f32 0.0, %v3506
      %v3508 = vpop.f32.mrf.mxu0
      %v3509 = vadd.f32 0.0, %v3508
      %v3510 = vpop.f32.mrf.mxu0
      %v3511 = vadd.f32 0.0, %v3510
      %3512 = vmatprep.mubr.bf16.mxu0 0
      %3513 = vmatmul.mubr.bf16.gmra.mxu0 %v3392
      %v3514 = vpop.f32.mrf.mxu0
      %v3515 = vadd.f32 0.0, %v3514
      %v3516 = vpop.f32.mrf.mxu0
      %v3517 = vadd.f32 0.0, %v3516
      %v3518 = vpop.f32.mrf.mxu0
      %v3519 = vadd.f32 0.0, %v3518
      %v3520 = vpop.f32.mrf.mxu0
      %v3521 = vadd.f32 0.0, %v3520
      %3522 = vmatprep.mubr.bf16.mxu0 0
      %3523 = vmatmul.mubr.bf16.gmra.mxu0 %v3395
      %v3524 = vpop.f32.mrf.mxu0
      %v3525 = vadd.f32 0.0, %v3524
      %v3526 = vpop.f32.mrf.mxu0
      %v3527 = vadd.f32 0.0, %v3526
      %v3528 = vpop.f32.mrf.mxu0
      %v3529 = vadd.f32 0.0, %v3528
      %v3530 = vpop.f32.mrf.mxu0
      %v3531 = vadd.f32 0.0, %v3530
      %3532 = vmatprep.mubr.bf16.mxu0 0
      %3533 = vmatmul.mubr.bf16.gmra.mxu0 %v3398
      %v3534 = vpop.f32.mrf.mxu0
      %v3535 = vadd.f32 0.0, %v3534
      %v3536 = vpop.f32.mrf.mxu0
      %v3537 = vadd.f32 0.0, %v3536
      %v3538 = vpop.f32.mrf.mxu0
      %v3539 = vadd.f32 0.0, %v3538
      %v3540 = vpop.f32.mrf.mxu0
      %v3541 = vadd.f32 0.0, %v3540
      %3542 = vmatprep.mubr.bf16.mxu0 0
      %3543 = vmatmul.mubr.bf16.gmra.mxu0 %v3401
      %v3544 = vpop.f32.mrf.mxu0
      %v3545 = vadd.f32 0.0, %v3544
      %v3546 = vpop.f32.mrf.mxu0
      %v3547 = vadd.f32 0.0, %v3546
      %v3548 = vpop.f32.mrf.mxu0
      %v3549 = vadd.f32 0.0, %v3548
      %v3550 = vpop.f32.mrf.mxu0
      %v3551 = vadd.f32 0.0, %v3550
      %3552 = vmatprep.mubr.bf16.mxu0 0
      %3553 = vmatmul.mubr.bf16.gmra.mxu0 %v3404
      %v3554 = vpop.f32.mrf.mxu0
      %v3555 = vadd.f32 0.0, %v3554
      %v3556 = vpop.f32.mrf.mxu0
      %v3557 = vadd.f32 0.0, %v3556
      %v3558 = vpop.f32.mrf.mxu0
      %v3559 = vadd.f32 0.0, %v3558
      %v3560 = vpop.f32.mrf.mxu0
      %v3561 = vadd.f32 0.0, %v3560
      %3562 = vmatprep.mubr.bf16.mxu0 0
      %3563 = vmatmul.mubr.bf16.gmra.mxu0 %v3407
      %v3564 = vpop.f32.mrf.mxu0
      %v3565 = vadd.f32 0.0, %v3564
      %v3566 = vpop.f32.mrf.mxu0
      %v3567 = vadd.f32 0.0, %v3566
      %v3568 = vpop.f32.mrf.mxu0
      %v3569 = vadd.f32 0.0, %v3568
      %v3570 = vpop.f32.mrf.mxu0
      %v3571 = vadd.f32 0.0, %v3570
      %3572 = vmatprep.mubr.bf16.mxu0 0
      %3573 = vmatmul.mubr.bf16.gmra.mxu0 %v3410
      %v3574 = vpop.f32.mrf.mxu0
      %v3575 = vadd.f32 0.0, %v3574
      %v3576 = vpop.f32.mrf.mxu0
      %v3577 = vadd.f32 0.0, %v3576
      %v3578 = vpop.f32.mrf.mxu0
      %v3579 = vadd.f32 0.0, %v3578
      %v3580 = vpop.f32.mrf.mxu0
      %v3581 = vadd.f32 0.0, %v3580
      %3582 = vmatprep.mubr.bf16.mxu0 0
      %3583 = vmatmul.mubr.bf16.gmra.mxu0 %v3413
      %v3584 = vpop.f32.mrf.mxu0
      %v3585 = vadd.f32 0.0, %v3584
      %v3586 = vpop.f32.mrf.mxu0
      %v3587 = vadd.f32 0.0, %v3586
      %v3588 = vpop.f32.mrf.mxu0
      %v3589 = vadd.f32 0.0, %v3588
      %v3590 = vpop.f32.mrf.mxu0
      %v3591 = vadd.f32 0.0, %v3590
      %3592 = vmatprep.mubr.bf16.mxu0 0
      %3593 = vmatmul.mubr.bf16.gmra.mxu0 %v3416
      %v3594 = vpop.f32.mrf.mxu0
      %v3595 = vadd.f32 0.0, %v3594
      %v3596 = vpop.f32.mrf.mxu0
      %v3597 = vadd.f32 0.0, %v3596
      %v3598 = vpop.f32.mrf.mxu0
      %v3599 = vadd.f32 0.0, %v3598
      %v3600 = vpop.f32.mrf.mxu0
      %v3601 = vadd.f32 0.0, %v3600
      %3602 = vmatprep.mubr.bf16.mxu0 0
      %3603 = vmatmul.mubr.bf16.gmra.mxu0 %v3419
      %v3604 = vpop.f32.mrf.mxu0
      %v3605 = vadd.f32 0.0, %v3604
      %v3606 = vpop.f32.mrf.mxu0
      %v3607 = vadd.f32 0.0, %v3606
      %v3608 = vpop.f32.mrf.mxu0
      %v3609 = vadd.f32 0.0, %v3608
      %v3610 = vpop.f32.mrf.mxu0
      %v3611 = vadd.f32 0.0, %v3610
      %3612 = vmatprep.mubr.bf16.mxu0 0
      %3613 = vmatmul.mubr.bf16.gmra.mxu0 %v3422
      %v3614 = vpop.f32.mrf.mxu0
      %v3615 = vadd.f32 0.0, %v3614
      %v3616 = vpop.f32.mrf.mxu0
      %v3617 = vadd.f32 0.0, %v3616
      %v3618 = vpop.f32.mrf.mxu0
      %v3619 = vadd.f32 0.0, %v3618
      %v3620 = vpop.f32.mrf.mxu0
      %v3621 = vadd.f32 0.0, %v3620
      %3622 = vdwg.mxu0
      %v3623 = vmax.f32 %v3465, %v3475
      %v3624 = vmax.f32 %v3469, %v3479
      %v3625 = vmax.f32 %v3623, %v3485
      %v3626 = vmax.f32 %v3624, %v3489
      %v3627 = vmax.f32 %v3625, %v3495
      %v3628 = vmax.f32 %v3626, %v3499
      %v3629 = vmax.f32 %v3627, %v3505
      %v3630 = vmax.f32 %v3628, %v3509
      %v3631 = vmax.f32 %v3629, %v3515
      %v3632 = vmax.f32 %v3630, %v3519
      %v3633 = vmax.f32 %v3631, %v3525
      %v3634 = vmax.f32 %v3632, %v3529
      %v3635 = vmax.f32 %v3633, %v3535
      %v3636 = vmax.f32 %v3634, %v3539
      %v3637 = vmax.f32 %v3635, %v3545
      %v3638 = vmax.f32 %v3636, %v3549
      %v3639 = vmax.f32 %v3637, %v3555
      %v3640 = vmax.f32 %v3638, %v3559
      %v3641 = vmax.f32 %v3639, %v3565
      %v3642 = vmax.f32 %v3640, %v3569
      %v3643 = vmax.f32 %v3641, %v3575
      %v3644 = vmax.f32 %v3642, %v3579
      %v3645 = vmax.f32 %v3643, %v3585
      %v3646 = vmax.f32 %v3644, %v3589
      %v3647 = vmax.f32 %v3645, %v3595
      %v3648 = vmax.f32 %v3646, %v3599
      %v3649 = vmax.f32 %v3647, %v3605
      %v3650 = vmax.f32 %v3648, %v3609
      %v3651 = vmax.f32 %v3649, %v3615
      %v3652 = vmax.f32 %v3650, %v3619
      %v3653 = vmax.f32 %v3651, %v3652
      %v3654 = vrot.slane %v3653, 4
      %v3655 = vmax.f32 %v3653, %v3654
      %v3656 = vrot.slane %v3655, 2
      %v3657 = vmax.f32 %v3655, %v3656
      %v3658 = vrot.slane %v3657, 1
      %v3659 = vmax.f32 %v3657, %v3658
      %v3660 = vmax.f32 %v3467, %v3477
      %v3661 = vmax.f32 %v3471, %v3481
      %v3662 = vmax.f32 %v3660, %v3487
      %v3663 = vmax.f32 %v3661, %v3491
      %v3664 = vmax.f32 %v3662, %v3497
      %v3665 = vmax.f32 %v3663, %v3501
      %v3666 = vmax.f32 %v3664, %v3507
      %v3667 = vmax.f32 %v3665, %v3511
      %v3668 = vmax.f32 %v3666, %v3517
      %v3669 = vmax.f32 %v3667, %v3521
      %v3670 = vmax.f32 %v3668, %v3527
      %v3671 = vmax.f32 %v3669, %v3531
      %v3672 = vmax.f32 %v3670, %v3537
      %v3673 = vmax.f32 %v3671, %v3541
      %v3674 = vmax.f32 %v3672, %v3547
      %v3675 = vmax.f32 %v3673, %v3551
      %v3676 = vmax.f32 %v3674, %v3557
      %v3677 = vmax.f32 %v3675, %v3561
      %v3678 = vmax.f32 %v3676, %v3567
      %v3679 = vmax.f32 %v3677, %v3571
      %v3680 = vmax.f32 %v3678, %v3577
      %v3681 = vmax.f32 %v3679, %v3581
      %v3682 = vmax.f32 %v3680, %v3587
      %v3683 = vmax.f32 %v3681, %v3591
      %v3684 = vmax.f32 %v3682, %v3597
      %v3685 = vmax.f32 %v3683, %v3601
      %v3686 = vmax.f32 %v3684, %v3607
      %v3687 = vmax.f32 %v3685, %v3611
      %v3688 = vmax.f32 %v3686, %v3617
      %v3689 = vmax.f32 %v3687, %v3621
      %v3690 = vmax.f32 %v3688, %v3689
      %v3691 = vrot.slane %v3690, 4
      %v3692 = vmax.f32 %v3690, %v3691
      %v3693 = vrot.slane %v3692, 2
      %v3694 = vmax.f32 %v3692, %v3693
      %v3695 = vrot.slane %v3694, 1
      %v3696 = vmax.f32 %v3694, %v3695
      %v3697 = vsub.f32 %v3465, %v3659
      %v3698 = vsub.f32 %v3467, %v3696
      %v3699 = vsub.f32 %v3469, %v3659
      %v3700 = vsub.f32 %v3471, %v3696
      %v3701 = vsub.f32 %v3475, %v3659
      %v3702 = vsub.f32 %v3477, %v3696
      %v3703 = vsub.f32 %v3479, %v3659
      %v3704 = vsub.f32 %v3481, %v3696
      %v3705 = vsub.f32 %v3485, %v3659
      %v3706 = vsub.f32 %v3487, %v3696
      %v3707 = vsub.f32 %v3489, %v3659
      %v3708 = vsub.f32 %v3491, %v3696
      %v3709 = vsub.f32 %v3495, %v3659
      %v3710 = vsub.f32 %v3497, %v3696
      %v3711 = vsub.f32 %v3499, %v3659
      %v3712 = vsub.f32 %v3501, %v3696
      %v3713 = vsub.f32 %v3505, %v3659
      %v3714 = vsub.f32 %v3507, %v3696
      %v3715 = vsub.f32 %v3509, %v3659
      %v3716 = vsub.f32 %v3511, %v3696
      %v3717 = vsub.f32 %v3515, %v3659
      %v3718 = vsub.f32 %v3517, %v3696
      %v3719 = vsub.f32 %v3519, %v3659
      %v3720 = vsub.f32 %v3521, %v3696
      %v3721 = vsub.f32 %v3525, %v3659
      %v3722 = vsub.f32 %v3527, %v3696
      %v3723 = vsub.f32 %v3529, %v3659
      %v3724 = vsub.f32 %v3531, %v3696
      %v3725 = vsub.f32 %v3535, %v3659
      %v3726 = vsub.f32 %v3537, %v3696
      %v3727 = vsub.f32 %v3539, %v3659
      %v3728 = vsub.f32 %v3541, %v3696
      %v3729 = vsub.f32 %v3545, %v3659
      %v3730 = vsub.f32 %v3547, %v3696
      %v3731 = vsub.f32 %v3549, %v3659
      %v3732 = vsub.f32 %v3551, %v3696
      %v3733 = vsub.f32 %v3555, %v3659
      %v3734 = vsub.f32 %v3557, %v3696
      %v3735 = vsub.f32 %v3559, %v3659
      %v3736 = vsub.f32 %v3561, %v3696
      %v3737 = vsub.f32 %v3565, %v3659
      %v3738 = vsub.f32 %v3567, %v3696
      %v3739 = vsub.f32 %v3569, %v3659
      %v3740 = vsub.f32 %v3571, %v3696
      %v3741 = vsub.f32 %v3575, %v3659
      %v3742 = vsub.f32 %v3577, %v3696
      %v3743 = vsub.f32 %v3579, %v3659
      %v3744 = vsub.f32 %v3581, %v3696
      %v3745 = vsub.f32 %v3585, %v3659
      %v3746 = vsub.f32 %v3587, %v3696
      %v3747 = vsub.f32 %v3589, %v3659
      %v3748 = vsub.f32 %v3591, %v3696
      %v3749 = vsub.f32 %v3595, %v3659
      %v3750 = vsub.f32 %v3597, %v3696
      %v3751 = vsub.f32 %v3599, %v3659
      %v3752 = vsub.f32 %v3601, %v3696
      %v3753 = vsub.f32 %v3605, %v3659
      %v3754 = vsub.f32 %v3607, %v3696
      %v3755 = vsub.f32 %v3609, %v3659
      %v3756 = vsub.f32 %v3611, %v3696
      %v3757 = vsub.f32 %v3615, %v3659
      %v3758 = vsub.f32 %v3617, %v3696
      %v3759 = vsub.f32 %v3619, %v3659
      %v3760 = vsub.f32 %v3621, %v3696
      %v3761 = vmul.f32 %v3697, 1.442695
      %v3762 = vpow.pop %v3761
      %v3763 = vmul.f32 %v3698, 1.442695
      %v3764 = vpow.pop %v3763
      %v3765 = vmul.f32 %v3699, 1.442695
      %v3766 = vpow.pop %v3765
      %v3767 = vmul.f32 %v3700, 1.442695
      %v3768 = vpow.pop %v3767
      %v3769 = vmul.f32 %v3701, 1.442695
      %v3770 = vpow.pop %v3769
      %v3771 = vmul.f32 %v3702, 1.442695
      %v3772 = vpow.pop %v3771
      %v3773 = vmul.f32 %v3703, 1.442695
      %v3774 = vpow.pop %v3773
      %v3775 = vmul.f32 %v3704, 1.442695
      %v3776 = vpow.pop %v3775
      %v3777 = vmul.f32 %v3705, 1.442695
      %v3778 = vpow.pop %v3777
      %v3779 = vmul.f32 %v3706, 1.442695
      %v3780 = vpow.pop %v3779
      %v3781 = vmul.f32 %v3707, 1.442695
      %v3782 = vpow.pop %v3781
      %v3783 = vmul.f32 %v3708, 1.442695
      %v3784 = vpow.pop %v3783
      %v3785 = vmul.f32 %v3709, 1.442695
      %v3786 = vpow.pop %v3785
      %v3787 = vmul.f32 %v3710, 1.442695
      %v3788 = vpow.pop %v3787
      %v3789 = vmul.f32 %v3711, 1.442695
      %v3790 = vpow.pop %v3789
      %v3791 = vmul.f32 %v3712, 1.442695
      %v3792 = vpow.pop %v3791
      %v3793 = vmul.f32 %v3713, 1.442695
      %v3794 = vpow.pop %v3793
      %v3795 = vmul.f32 %v3714, 1.442695
      %v3796 = vpow.pop %v3795
      %v3797 = vmul.f32 %v3715, 1.442695
      %v3798 = vpow.pop %v3797
      %v3799 = vmul.f32 %v3716, 1.442695
      %v3800 = vpow.pop %v3799
      %v3801 = vmul.f32 %v3717, 1.442695
      %v3802 = vpow.pop %v3801
      %v3803 = vmul.f32 %v3718, 1.442695
      %v3804 = vpow.pop %v3803
      %v3805 = vmul.f32 %v3719, 1.442695
      %v3806 = vpow.pop %v3805
      %v3807 = vmul.f32 %v3720, 1.442695
      %v3808 = vpow.pop %v3807
      %v3809 = vmul.f32 %v3721, 1.442695
      %v3810 = vpow.pop %v3809
      %v3811 = vmul.f32 %v3722, 1.442695
      %v3812 = vpow.pop %v3811
      %v3813 = vmul.f32 %v3723, 1.442695
      %v3814 = vpow.pop %v3813
      %v3815 = vmul.f32 %v3724, 1.442695
      %v3816 = vpow.pop %v3815
      %v3817 = vmul.f32 %v3725, 1.442695
      %v3818 = vpow.pop %v3817
      %v3819 = vmul.f32 %v3726, 1.442695
      %v3820 = vpow.pop %v3819
      %v3821 = vmul.f32 %v3727, 1.442695
      %v3822 = vpow.pop %v3821
      %v3823 = vmul.f32 %v3728, 1.442695
      %v3824 = vpow.pop %v3823
      %v3825 = vmul.f32 %v3729, 1.442695
      %v3826 = vpow.pop %v3825
      %v3827 = vmul.f32 %v3730, 1.442695
      %v3828 = vpow.pop %v3827
      %v3829 = vmul.f32 %v3731, 1.442695
      %v3830 = vpow.pop %v3829
      %v3831 = vmul.f32 %v3732, 1.442695
      %v3832 = vpow.pop %v3831
      %v3833 = vmul.f32 %v3733, 1.442695
      %v3834 = vpow.pop %v3833
      %v3835 = vmul.f32 %v3734, 1.442695
      %v3836 = vpow.pop %v3835
      %v3837 = vmul.f32 %v3735, 1.442695
      %v3838 = vpow.pop %v3837
      %v3839 = vmul.f32 %v3736, 1.442695
      %v3840 = vpow.pop %v3839
      %v3841 = vmul.f32 %v3737, 1.442695
      %v3842 = vpow.pop %v3841
      %v3843 = vmul.f32 %v3738, 1.442695
      %v3844 = vpow.pop %v3843
      %v3845 = vmul.f32 %v3739, 1.442695
      %v3846 = vpow.pop %v3845
      %v3847 = vmul.f32 %v3740, 1.442695
      %v3848 = vpow.pop %v3847
      %v3849 = vmul.f32 %v3741, 1.442695
      %v3850 = vpow.pop %v3849
      %v3851 = vmul.f32 %v3742, 1.442695
      %v3852 = vpow.pop %v3851
      %v3853 = vmul.f32 %v3743, 1.442695
      %v3854 = vpow.pop %v3853
      %v3855 = vmul.f32 %v3744, 1.442695
      %v3856 = vpow.pop %v3855
      %v3857 = vmul.f32 %v3745, 1.442695
      %v3858 = vpow.pop %v3857
      %v3859 = vmul.f32 %v3746, 1.442695
      %v3860 = vpow.pop %v3859
      %v3861 = vmul.f32 %v3747, 1.442695
      %v3862 = vpow.pop %v3861
      %v3863 = vmul.f32 %v3748, 1.442695
      %v3864 = vpow.pop %v3863
      %v3865 = vmul.f32 %v3749, 1.442695
      %v3866 = vpow.pop %v3865
      %v3867 = vmul.f32 %v3750, 1.442695
      %v3868 = vpow.pop %v3867
      %v3869 = vmul.f32 %v3751, 1.442695
      %v3870 = vpow.pop %v3869
      %v3871 = vmul.f32 %v3752, 1.442695
      %v3872 = vpow.pop %v3871
      %v3873 = vmul.f32 %v3753, 1.442695
      %v3874 = vpow.pop %v3873
      %v3875 = vmul.f32 %v3754, 1.442695
      %v3876 = vpow.pop %v3875
      %v3877 = vmul.f32 %v3755, 1.442695
      %v3878 = vpow.pop %v3877
      %v3879 = vmul.f32 %v3756, 1.442695
      %v3880 = vpow.pop %v3879
      %v3881 = vmul.f32 %v3757, 1.442695
      %v3882 = vpow.pop %v3881
      %v3883 = vmul.f32 %v3758, 1.442695
      %v3884 = vpow.pop %v3883
      %v3885 = vmul.f32 %v3759, 1.442695
      %v3886 = vpow.pop %v3885
      %v3887 = vmul.f32 %v3760, 1.442695
      %v3888 = vpow.pop %v3887
      %v3889 = vadd.f32 %v3762, %v3766
      %v3890 = vadd.f32 %v3889, %v3770
      %v3891 = vadd.f32 %v3890, %v3774
      %v3892 = vadd.f32 %v3891, %v3778
      %v3893 = vadd.f32 %v3892, %v3782
      %v3894 = vadd.f32 %v3893, %v3786
      %v3895 = vadd.f32 %v3894, %v3790
      %v3896 = vadd.f32 %v3895, %v3794
      %v3897 = vadd.f32 %v3896, %v3798
      %v3898 = vadd.f32 %v3897, %v3802
      %v3899 = vadd.f32 %v3898, %v3806
      %v3900 = vadd.f32 %v3899, %v3810
      %v3901 = vadd.f32 %v3900, %v3814
      %v3902 = vadd.f32 %v3901, %v3818
      %v3903 = vadd.f32 %v3902, %v3822
      %v3904 = vadd.f32 %v3903, %v3826
      %v3905 = vadd.f32 %v3904, %v3830
      %v3906 = vadd.f32 %v3905, %v3834
      %v3907 = vadd.f32 %v3906, %v3838
      %v3908 = vadd.f32 %v3907, %v3842
      %v3909 = vadd.f32 %v3908, %v3846
      %v3910 = vadd.f32 %v3909, %v3850
      %v3911 = vadd.f32 %v3910, %v3854
      %v3912 = vadd.f32 %v3911, %v3858
      %v3913 = vadd.f32 %v3912, %v3862
      %v3914 = vadd.f32 %v3913, %v3866
      %v3915 = vadd.f32 %v3914, %v3870
      %v3916 = vadd.f32 %v3915, %v3874
      %v3917 = vadd.f32 %v3916, %v3878
      %v3918 = vadd.f32 %v3917, %v3882
      %v3919 = vadd.f32 %v3918, %v3886
      %v3920 = vrot.slane %v3919, 4
      %v3921 = vadd.f32 %v3919, %v3920
      %v3922 = vrot.slane %v3921, 2
      %v3923 = vadd.f32 %v3921, %v3922
      %v3924 = vrot.slane %v3923, 1
      %v3925 = vadd.f32 %v3923, %v3924
      %v3926 = vadd.f32 %v3764, %v3768
      %v3927 = vadd.f32 %v3926, %v3772
      %v3928 = vadd.f32 %v3927, %v3776
      %v3929 = vadd.f32 %v3928, %v3780
      %v3930 = vadd.f32 %v3929, %v3784
      %v3931 = vadd.f32 %v3930, %v3788
      %v3932 = vadd.f32 %v3931, %v3792
      %v3933 = vadd.f32 %v3932, %v3796
      %v3934 = vadd.f32 %v3933, %v3800
      %v3935 = vadd.f32 %v3934, %v3804
      %v3936 = vadd.f32 %v3935, %v3808
      %v3937 = vadd.f32 %v3936, %v3812
      %v3938 = vadd.f32 %v3937, %v3816
      %v3939 = vadd.f32 %v3938, %v3820
      %v3940 = vadd.f32 %v3939, %v3824
      %v3941 = vadd.f32 %v3940, %v3828
      %v3942 = vadd.f32 %v3941, %v3832
      %v3943 = vadd.f32 %v3942, %v3836
      %v3944 = vadd.f32 %v3943, %v3840
      %v3945 = vadd.f32 %v3944, %v3844
      %v3946 = vadd.f32 %v3945, %v3848
      %v3947 = vadd.f32 %v3946, %v3852
      %v3948 = vadd.f32 %v3947, %v3856
      %v3949 = vadd.f32 %v3948, %v3860
      %v3950 = vadd.f32 %v3949, %v3864
      %v3951 = vadd.f32 %v3950, %v3868
      %v3952 = vadd.f32 %v3951, %v3872
      %v3953 = vadd.f32 %v3952, %v3876
      %v3954 = vadd.f32 %v3953, %v3880
      %v3955 = vadd.f32 %v3954, %v3884
      %v3956 = vadd.f32 %v3955, %v3888
      %v3957 = vrot.slane %v3956, 4
      %v3958 = vadd.f32 %v3956, %v3957
      %v3959 = vrot.slane %v3958, 2
      %v3960 = vadd.f32 %v3958, %v3959
      %v3961 = vrot.slane %v3960, 1
      %v3962 = vadd.f32 %v3960, %v3961
      %v3963 = vpack.c.bf16 %v3766, %v3762
      %v3964 = vpack.c.bf16 %v3768, %v3764
      %v3965 = vpack.c.bf16 %v3774, %v3770
      %v3966 = vpack.c.bf16 %v3776, %v3772
      %v3967 = vpack.c.bf16 %v3782, %v3778
      %v3968 = vpack.c.bf16 %v3784, %v3780
      %v3969 = vpack.c.bf16 %v3790, %v3786
      %v3970 = vpack.c.bf16 %v3792, %v3788
      %v3971 = vpack.c.bf16 %v3798, %v3794
      %v3972 = vpack.c.bf16 %v3800, %v3796
      %v3973 = vpack.c.bf16 %v3806, %v3802
      %v3974 = vpack.c.bf16 %v3808, %v3804
      %v3975 = vpack.c.bf16 %v3814, %v3810
      %v3976 = vpack.c.bf16 %v3816, %v3812
      %v3977 = vpack.c.bf16 %v3822, %v3818
      %v3978 = vpack.c.bf16 %v3824, %v3820
      %v3979 = vpack.c.bf16 %v3830, %v3826
      %v3980 = vpack.c.bf16 %v3832, %v3828
      %v3981 = vpack.c.bf16 %v3838, %v3834
      %v3982 = vpack.c.bf16 %v3840, %v3836
      %v3983 = vpack.c.bf16 %v3846, %v3842
      %v3984 = vpack.c.bf16 %v3848, %v3844
      %v3985 = vpack.c.bf16 %v3854, %v3850
      %v3986 = vpack.c.bf16 %v3856, %v3852
      %v3987 = vpack.c.bf16 %v3862, %v3858
      %v3988 = vpack.c.bf16 %v3864, %v3860
      %v3989 = vpack.c.bf16 %v3870, %v3866
      %v3990 = vpack.c.bf16 %v3872, %v3868
      %v3991 = vpack.c.bf16 %v3878, %v3874
      %v3992 = vpack.c.bf16 %v3880, %v3876
      %v3993 = vpack.c.bf16 %v3886, %v3882
      %v3994 = vpack.c.bf16 %v3888, %v3884
      %3995 = vmatprep.subr.bf16.mxu0 %v3978
      %3996 = vmatpush1.bf16.msra.mxu0 %v3977
      %3997 = vmatprep.subr.bf16.mxu0 %v3976
      %3998 = vmatpush1.bf16.msra.mxu0 %v3975
      %3999 = vmatprep.subr.bf16.mxu0 %v3974
      %4000 = vmatpush1.bf16.msra.mxu0 %v3973
      %4001 = vmatprep.subr.bf16.mxu0 %v3972
      %4002 = vmatpush1.bf16.msra.mxu0 %v3971
      %4003 = vmatprep.subr.bf16.mxu0 %v3970
      %4004 = vmatpush1.bf16.msra.mxu0 %v3969
      %4005 = vmatprep.subr.bf16.mxu0 %v3968
      %4006 = vmatpush1.bf16.msra.mxu0 %v3967
      %4007 = vmatprep.subr.bf16.mxu0 %v3966
      %4008 = vmatpush1.bf16.msra.mxu0 %v3965
      %4009 = vmatprep.subr.bf16.mxu0 %v3964
      %4010 = vmatpush1.bf16.msra.mxu0 %v3963
      %4011 = vmatprep.subr.bf16.mxu0 %v3994
      %4012 = vmatpush2.bf16.msra.mxu0 %v3993
      %4013 = vmatprep.subr.bf16.mxu0 %v3992
      %4014 = vmatpush2.bf16.msra.mxu0 %v3991
      %4015 = vmatprep.subr.bf16.mxu0 %v3990
      %4016 = vmatpush2.bf16.msra.mxu0 %v3989
      %4017 = vmatprep.subr.bf16.mxu0 %v3988
      %4018 = vmatpush2.bf16.msra.mxu0 %v3987
      %4019 = vmatprep.subr.bf16.mxu0 %v3986
      %4020 = vmatpush2.bf16.msra.mxu0 %v3985
      %4021 = vmatprep.subr.bf16.mxu0 %v3984
      %4022 = vmatpush2.bf16.msra.mxu0 %v3983
      %4023 = vmatprep.subr.bf16.mxu0 %v3982
      %4024 = vmatpush2.bf16.msra.mxu0 %v3981
      %4025 = vmatprep.subr.bf16.mxu0 %v3980
      %4026 = vmatpush2.bf16.msra.mxu0 %v3979
      %4027 = vmatprep.mubr.bf16.mxu0 %v3343
      %4028 = vmatmul.mubr.bf16.gmra.mxu0 %v3342
      %v4029 = vpop.f32.mrf.mxu0
      %v4030 = vadd.f32 0.0, %v4029
      %v4031 = vpop.f32.mrf.mxu0
      %v4032 = vadd.f32 0.0, %v4031
      %v4033 = vpop.f32.mrf.mxu0
      %v4034 = vpop.f32.mrf.mxu0
      %4035 = vdwg.mxu0
      %v4036 = vrcp.pop %v3925
      %v4037 = vrcp.pop %v3962
      %v4038 = vmul.f32 %v4030, %v4036
      %v4039 = vmul.f32 %v4032, %v4037
      %s4040 = scalar_lea.vmem [#allocation5], 32
      %4041 = vst [vmem:[%s4040] sm:$0xff] %v4038
      %4042 = vst [vmem:[%s4040 + $0x8] sm:$0xff] %v4039
      %s4043 = scalar_lea.vmem [#allocation2], 48
      %v4044 = vld [vmem:[%s4043] sm:$0xff]
      %v4045 = vld [vmem:[%s4043 + $0x8] sm:$0xff]
      %v4046 = vpack.c.bf16 %v4044, %v4044
      %v4047 = vpack.c.bf16 %v4045, %v4045
      %s4048 = scalar_lea.vmem [#allocation3], 48
      %v4049 = vld [vmem:[%s4048] sm:$0xff]
      %v4050 = vld [vmem:[%s4048 + $0x8] sm:$0xff]
      %v4051 = vpack.c.bf16 %v4049, %v4049
      %v4052 = vpack.c.bf16 %v4050, %v4050
      %s4053 = scalar_lea.vmem [#allocation4], 48
      %v4054 = vld [vmem:[%s4053] sm:$0xff]
      %v4055 = vld [vmem:[%s4053 + $0x8] sm:$0xff]
      %v4056 = vpack.c.bf16 %v4054, %v4054
      %v4057 = vpack.c.bf16 %v4055, %v4055
      %4058 = vxpose.xlu0.c.b16.start [1/8] %v4051, 128
      %4059 = vxpose.xlu0.c.b16.cont [2/8] 0, 128
      %4060 = vxpose.xlu0.c.b16.cont [3/8] 0, 128
      %4061 = vxpose.xlu0.c.b16.cont [4/8] 0, 128
      %4062 = vxpose.xlu0.c.b16.cont [5/8] 0, 128
      %4063 = vxpose.xlu0.c.b16.cont [6/8] 0, 128
      %4064 = vxpose.xlu0.c.b16.cont [7/8] 0, 128
      %4065 = vxpose.xlu0.c.b16.end [8/8] 0, 128
      %v4066 = vpop.trf.xlu0
      %v4067 = vpop.trf.xlu0
      %v4068 = vpop.trf.xlu0
      %v4069 = vpop.trf.xlu0
      %v4070 = vpop.trf.xlu0
      %v4071 = vpop.trf.xlu0
      %v4072 = vpop.trf.xlu0
      %v4073 = vpop.trf.xlu0
      %4074 = vxpose.xlu0.c.b16.start [1/8] %v4052, 128
      %4075 = vxpose.xlu0.c.b16.cont [2/8] 0, 128
      %4076 = vxpose.xlu0.c.b16.cont [3/8] 0, 128
      %4077 = vxpose.xlu0.c.b16.cont [4/8] 0, 128
      %4078 = vxpose.xlu0.c.b16.cont [5/8] 0, 128
      %4079 = vxpose.xlu0.c.b16.cont [6/8] 0, 128
      %4080 = vxpose.xlu0.c.b16.cont [7/8] 0, 128
      %4081 = vxpose.xlu0.c.b16.end [8/8] 0, 128
      %v4082 = vpop.trf.xlu0
      %v4083 = vpop.trf.xlu0
      %v4084 = vpop.trf.xlu0
      %v4085 = vpop.trf.xlu0
      %v4086 = vpop.trf.xlu0
      %v4087 = vpop.trf.xlu0
      %v4088 = vpop.trf.xlu0
      %v4089 = vpop.trf.xlu0
      %v4091 = vsel %vm1947, %v4066, 0
      %v4094 = vsel %vm1947, %v4067, 0
      %v4097 = vsel %vm1947, %v4068, 0
      %v4100 = vsel %vm1947, %v4069, 0
      %v4103 = vsel %vm1947, %v4070, 0
      %v4106 = vsel %vm1947, %v4071, 0
      %v4109 = vsel %vm1947, %v4072, 0
      %v4112 = vsel %vm1947, %v4073, 0
      %v4115 = vsel %vm1947, %v4082, 0
      %v4118 = vsel %vm1947, %v4083, 0
      %v4121 = vsel %vm1947, %v4084, 0
      %v4124 = vsel %vm1947, %v4085, 0
      %v4127 = vsel %vm1947, %v4086, 0
      %v4130 = vsel %vm1947, %v4087, 0
      %v4133 = vsel %vm1947, %v4088, 0
      %v4136 = vsel %vm1947, %v4089, 0
      %v4139 = vsel %vm1996, %v4046, 0
      %v4142 = vsel %vm1996, %v4047, 0
      %4144 = vmatprep.subr.bf16.mxu0 0
      %4145 = vmatpush1.bf16.msra.mxu0 0
      %4146 = vmatprep.subr.bf16.mxu0 0
      %4147 = vmatpush1.bf16.msra.mxu0 0
      %4148 = vmatprep.subr.bf16.mxu0 0
      %4149 = vmatpush1.bf16.msra.mxu0 0
      %4150 = vmatprep.subr.bf16.mxu0 0
      %4151 = vmatpush1.bf16.msra.mxu0 0
      %4152 = vmatprep.subr.bf16.mxu0 0
      %4153 = vmatpush1.bf16.msra.mxu0 0
      %4154 = vmatprep.subr.bf16.mxu0 0
      %4155 = vmatpush1.bf16.msra.mxu0 0
      %4156 = vmatprep.subr.bf16.mxu0 0
      %4157 = vmatpush1.bf16.msra.mxu0 0
      %4158 = vmatprep.subr.bf16.mxu0 %v4142
      %4159 = vmatpush1.bf16.msra.mxu0 %v4139
      %4160 = vmatprep.subr.bf16.mxu0 0
      %4161 = vmatpush2.bf16.msra.mxu0 0
      %4162 = vmatprep.subr.bf16.mxu0 0
      %4163 = vmatpush2.bf16.msra.mxu0 0
      %4164 = vmatprep.subr.bf16.mxu0 0
      %4165 = vmatpush2.bf16.msra.mxu0 0
      %4166 = vmatprep.subr.bf16.mxu0 0
      %4167 = vmatpush2.bf16.msra.mxu0 0
      %4168 = vmatprep.subr.bf16.mxu0 0
      %4169 = vmatpush2.bf16.msra.mxu0 0
      %4170 = vmatprep.subr.bf16.mxu0 0
      %4171 = vmatpush2.bf16.msra.mxu0 0
      %4172 = vmatprep.subr.bf16.mxu0 0
      %4173 = vmatpush2.bf16.msra.mxu0 0
      %4174 = vmatprep.subr.bf16.mxu0 0
      %4175 = vmatpush2.bf16.msra.mxu0 0
      %4176 = vmatprep.mubr.bf16.mxu0 0
      %4177 = vmatmul.mubr.bf16.gmra.mxu0 %v4091
      %v4178 = vpop.f32.mrf.mxu0
      %v4179 = vadd.f32 0.0, %v4178
      %v4180 = vpop.f32.mrf.mxu0
      %v4181 = vadd.f32 0.0, %v4180
      %v4182 = vpop.f32.mrf.mxu0
      %v4183 = vadd.f32 0.0, %v4182
      %v4184 = vpop.f32.mrf.mxu0
      %v4185 = vadd.f32 0.0, %v4184
      %4186 = vmatprep.mubr.bf16.mxu0 0
      %4187 = vmatmul.mubr.bf16.gmra.mxu0 %v4094
      %v4188 = vpop.f32.mrf.mxu0
      %v4189 = vadd.f32 0.0, %v4188
      %v4190 = vpop.f32.mrf.mxu0
      %v4191 = vadd.f32 0.0, %v4190
      %v4192 = vpop.f32.mrf.mxu0
      %v4193 = vadd.f32 0.0, %v4192
      %v4194 = vpop.f32.mrf.mxu0
      %v4195 = vadd.f32 0.0, %v4194
      %4196 = vmatprep.mubr.bf16.mxu0 0
      %4197 = vmatmul.mubr.bf16.gmra.mxu0 %v4097
      %v4198 = vpop.f32.mrf.mxu0
      %v4199 = vadd.f32 0.0, %v4198
      %v4200 = vpop.f32.mrf.mxu0
      %v4201 = vadd.f32 0.0, %v4200
      %v4202 = vpop.f32.mrf.mxu0
      %v4203 = vadd.f32 0.0, %v4202
      %v4204 = vpop.f32.mrf.mxu0
      %v4205 = vadd.f32 0.0, %v4204
      %4206 = vmatprep.mubr.bf16.mxu0 0
      %4207 = vmatmul.mubr.bf16.gmra.mxu0 %v4100
      %v4208 = vpop.f32.mrf.mxu0
      %v4209 = vadd.f32 0.0, %v4208
      %v4210 = vpop.f32.mrf.mxu0
      %v4211 = vadd.f32 0.0, %v4210
      %v4212 = vpop.f32.mrf.mxu0
      %v4213 = vadd.f32 0.0, %v4212
      %v4214 = vpop.f32.mrf.mxu0
      %v4215 = vadd.f32 0.0, %v4214
      %4216 = vmatprep.mubr.bf16.mxu0 0
      %4217 = vmatmul.mubr.bf16.gmra.mxu0 %v4103
      %v4218 = vpop.f32.mrf.mxu0
      %v4219 = vadd.f32 0.0, %v4218
      %v4220 = vpop.f32.mrf.mxu0
      %v4221 = vadd.f32 0.0, %v4220
      %v4222 = vpop.f32.mrf.mxu0
      %v4223 = vadd.f32 0.0, %v4222
      %v4224 = vpop.f32.mrf.mxu0
      %v4225 = vadd.f32 0.0, %v4224
      %4226 = vmatprep.mubr.bf16.mxu0 0
      %4227 = vmatmul.mubr.bf16.gmra.mxu0 %v4106
      %v4228 = vpop.f32.mrf.mxu0
      %v4229 = vadd.f32 0.0, %v4228
      %v4230 = vpop.f32.mrf.mxu0
      %v4231 = vadd.f32 0.0, %v4230
      %v4232 = vpop.f32.mrf.mxu0
      %v4233 = vadd.f32 0.0, %v4232
      %v4234 = vpop.f32.mrf.mxu0
      %v4235 = vadd.f32 0.0, %v4234
      %4236 = vmatprep.mubr.bf16.mxu0 0
      %4237 = vmatmul.mubr.bf16.gmra.mxu0 %v4109
      %v4238 = vpop.f32.mrf.mxu0
      %v4239 = vadd.f32 0.0, %v4238
      %v4240 = vpop.f32.mrf.mxu0
      %v4241 = vadd.f32 0.0, %v4240
      %v4242 = vpop.f32.mrf.mxu0
      %v4243 = vadd.f32 0.0, %v4242
      %v4244 = vpop.f32.mrf.mxu0
      %v4245 = vadd.f32 0.0, %v4244
      %4246 = vmatprep.mubr.bf16.mxu0 0
      %4247 = vmatmul.mubr.bf16.gmra.mxu0 %v4112
      %v4248 = vpop.f32.mrf.mxu0
      %v4249 = vadd.f32 0.0, %v4248
      %v4250 = vpop.f32.mrf.mxu0
      %v4251 = vadd.f32 0.0, %v4250
      %v4252 = vpop.f32.mrf.mxu0
      %v4253 = vadd.f32 0.0, %v4252
      %v4254 = vpop.f32.mrf.mxu0
      %v4255 = vadd.f32 0.0, %v4254
      %4256 = vmatprep.mubr.bf16.mxu0 0
      %4257 = vmatmul.mubr.bf16.gmra.mxu0 %v4115
      %v4258 = vpop.f32.mrf.mxu0
      %v4259 = vadd.f32 0.0, %v4258
      %v4260 = vpop.f32.mrf.mxu0
      %v4261 = vadd.f32 0.0, %v4260
      %v4262 = vpop.f32.mrf.mxu0
      %v4263 = vadd.f32 0.0, %v4262
      %v4264 = vpop.f32.mrf.mxu0
      %v4265 = vadd.f32 0.0, %v4264
      %4266 = vmatprep.mubr.bf16.mxu0 0
      %4267 = vmatmul.mubr.bf16.gmra.mxu0 %v4118
      %v4268 = vpop.f32.mrf.mxu0
      %v4269 = vadd.f32 0.0, %v4268
      %v4270 = vpop.f32.mrf.mxu0
      %v4271 = vadd.f32 0.0, %v4270
      %v4272 = vpop.f32.mrf.mxu0
      %v4273 = vadd.f32 0.0, %v4272
      %v4274 = vpop.f32.mrf.mxu0
      %v4275 = vadd.f32 0.0, %v4274
      %4276 = vmatprep.mubr.bf16.mxu0 0
      %4277 = vmatmul.mubr.bf16.gmra.mxu0 %v4121
      %v4278 = vpop.f32.mrf.mxu0
      %v4279 = vadd.f32 0.0, %v4278
      %v4280 = vpop.f32.mrf.mxu0
      %v4281 = vadd.f32 0.0, %v4280
      %v4282 = vpop.f32.mrf.mxu0
      %v4283 = vadd.f32 0.0, %v4282
      %v4284 = vpop.f32.mrf.mxu0
      %v4285 = vadd.f32 0.0, %v4284
      %4286 = vmatprep.mubr.bf16.mxu0 0
      %4287 = vmatmul.mubr.bf16.gmra.mxu0 %v4124
      %v4288 = vpop.f32.mrf.mxu0
      %v4289 = vadd.f32 0.0, %v4288
      %v4290 = vpop.f32.mrf.mxu0
      %v4291 = vadd.f32 0.0, %v4290
      %v4292 = vpop.f32.mrf.mxu0
      %v4293 = vadd.f32 0.0, %v4292
      %v4294 = vpop.f32.mrf.mxu0
      %v4295 = vadd.f32 0.0, %v4294
      %4296 = vmatprep.mubr.bf16.mxu0 0
      %4297 = vmatmul.mubr.bf16.gmra.mxu0 %v4127
      %v4298 = vpop.f32.mrf.mxu0
      %v4299 = vadd.f32 0.0, %v4298
      %v4300 = vpop.f32.mrf.mxu0
      %v4301 = vadd.f32 0.0, %v4300
      %v4302 = vpop.f32.mrf.mxu0
      %v4303 = vadd.f32 0.0, %v4302
      %v4304 = vpop.f32.mrf.mxu0
      %v4305 = vadd.f32 0.0, %v4304
      %4306 = vmatprep.mubr.bf16.mxu0 0
      %4307 = vmatmul.mubr.bf16.gmra.mxu0 %v4130
      %v4308 = vpop.f32.mrf.mxu0
      %v4309 = vadd.f32 0.0, %v4308
      %v4310 = vpop.f32.mrf.mxu0
      %v4311 = vadd.f32 0.0, %v4310
      %v4312 = vpop.f32.mrf.mxu0
      %v4313 = vadd.f32 0.0, %v4312
      %v4314 = vpop.f32.mrf.mxu0
      %v4315 = vadd.f32 0.0, %v4314
      %4316 = vmatprep.mubr.bf16.mxu0 0
      %4317 = vmatmul.mubr.bf16.gmra.mxu0 %v4133
      %v4318 = vpop.f32.mrf.mxu0
      %v4319 = vadd.f32 0.0, %v4318
      %v4320 = vpop.f32.mrf.mxu0
      %v4321 = vadd.f32 0.0, %v4320
      %v4322 = vpop.f32.mrf.mxu0
      %v4323 = vadd.f32 0.0, %v4322
      %v4324 = vpop.f32.mrf.mxu0
      %v4325 = vadd.f32 0.0, %v4324
      %4326 = vmatprep.mubr.bf16.mxu0 0
      %4327 = vmatmul.mubr.bf16.gmra.mxu0 %v4136
      %v4328 = vpop.f32.mrf.mxu0
      %v4329 = vadd.f32 0.0, %v4328
      %v4330 = vpop.f32.mrf.mxu0
      %v4331 = vadd.f32 0.0, %v4330
      %v4332 = vpop.f32.mrf.mxu0
      %v4333 = vadd.f32 0.0, %v4332
      %v4334 = vpop.f32.mrf.mxu0
      %v4335 = vadd.f32 0.0, %v4334
      %4336 = vdwg.mxu0
      %v4337 = vmax.f32 %v4179, %v4189
      %v4338 = vmax.f32 %v4183, %v4193
      %v4339 = vmax.f32 %v4337, %v4199
      %v4340 = vmax.f32 %v4338, %v4203
      %v4341 = vmax.f32 %v4339, %v4209
      %v4342 = vmax.f32 %v4340, %v4213
      %v4343 = vmax.f32 %v4341, %v4219
      %v4344 = vmax.f32 %v4342, %v4223
      %v4345 = vmax.f32 %v4343, %v4229
      %v4346 = vmax.f32 %v4344, %v4233
      %v4347 = vmax.f32 %v4345, %v4239
      %v4348 = vmax.f32 %v4346, %v4243
      %v4349 = vmax.f32 %v4347, %v4249
      %v4350 = vmax.f32 %v4348, %v4253
      %v4351 = vmax.f32 %v4349, %v4259
      %v4352 = vmax.f32 %v4350, %v4263
      %v4353 = vmax.f32 %v4351, %v4269
      %v4354 = vmax.f32 %v4352, %v4273
      %v4355 = vmax.f32 %v4353, %v4279
      %v4356 = vmax.f32 %v4354, %v4283
      %v4357 = vmax.f32 %v4355, %v4289
      %v4358 = vmax.f32 %v4356, %v4293
      %v4359 = vmax.f32 %v4357, %v4299
      %v4360 = vmax.f32 %v4358, %v4303
      %v4361 = vmax.f32 %v4359, %v4309
      %v4362 = vmax.f32 %v4360, %v4313
      %v4363 = vmax.f32 %v4361, %v4319
      %v4364 = vmax.f32 %v4362, %v4323
      %v4365 = vmax.f32 %v4363, %v4329
      %v4366 = vmax.f32 %v4364, %v4333
      %v4367 = vmax.f32 %v4365, %v4366
      %v4368 = vrot.slane %v4367, 4
      %v4369 = vmax.f32 %v4367, %v4368
      %v4370 = vrot.slane %v4369, 2
      %v4371 = vmax.f32 %v4369, %v4370
      %v4372 = vrot.slane %v4371, 1
      %v4373 = vmax.f32 %v4371, %v4372
      %v4374 = vmax.f32 %v4181, %v4191
      %v4375 = vmax.f32 %v4185, %v4195
      %v4376 = vmax.f32 %v4374, %v4201
      %v4377 = vmax.f32 %v4375, %v4205
      %v4378 = vmax.f32 %v4376, %v4211
      %v4379 = vmax.f32 %v4377, %v4215
      %v4380 = vmax.f32 %v4378, %v4221
      %v4381 = vmax.f32 %v4379, %v4225
      %v4382 = vmax.f32 %v4380, %v4231
      %v4383 = vmax.f32 %v4381, %v4235
      %v4384 = vmax.f32 %v4382, %v4241
      %v4385 = vmax.f32 %v4383, %v4245
      %v4386 = vmax.f32 %v4384, %v4251
      %v4387 = vmax.f32 %v4385, %v4255
      %v4388 = vmax.f32 %v4386, %v4261
      %v4389 = vmax.f32 %v4387, %v4265
      %v4390 = vmax.f32 %v4388, %v4271
      %v4391 = vmax.f32 %v4389, %v4275
      %v4392 = vmax.f32 %v4390, %v4281
      %v4393 = vmax.f32 %v4391, %v4285
      %v4394 = vmax.f32 %v4392, %v4291
      %v4395 = vmax.f32 %v4393, %v4295
      %v4396 = vmax.f32 %v4394, %v4301
      %v4397 = vmax.f32 %v4395, %v4305
      %v4398 = vmax.f32 %v4396, %v4311
      %v4399 = vmax.f32 %v4397, %v4315
      %v4400 = vmax.f32 %v4398, %v4321
      %v4401 = vmax.f32 %v4399, %v4325
      %v4402 = vmax.f32 %v4400, %v4331
      %v4403 = vmax.f32 %v4401, %v4335
      %v4404 = vmax.f32 %v4402, %v4403
      %v4405 = vrot.slane %v4404, 4
      %v4406 = vmax.f32 %v4404, %v4405
      %v4407 = vrot.slane %v4406, 2
      %v4408 = vmax.f32 %v4406, %v4407
      %v4409 = vrot.slane %v4408, 1
      %v4410 = vmax.f32 %v4408, %v4409
      %v4411 = vsub.f32 %v4179, %v4373
      %v4412 = vsub.f32 %v4181, %v4410
      %v4413 = vsub.f32 %v4183, %v4373
      %v4414 = vsub.f32 %v4185, %v4410
      %v4415 = vsub.f32 %v4189, %v4373
      %v4416 = vsub.f32 %v4191, %v4410
      %v4417 = vsub.f32 %v4193, %v4373
      %v4418 = vsub.f32 %v4195, %v4410
      %v4419 = vsub.f32 %v4199, %v4373
      %v4420 = vsub.f32 %v4201, %v4410
      %v4421 = vsub.f32 %v4203, %v4373
      %v4422 = vsub.f32 %v4205, %v4410
      %v4423 = vsub.f32 %v4209, %v4373
      %v4424 = vsub.f32 %v4211, %v4410
      %v4425 = vsub.f32 %v4213, %v4373
      %v4426 = vsub.f32 %v4215, %v4410
      %v4427 = vsub.f32 %v4219, %v4373
      %v4428 = vsub.f32 %v4221, %v4410
      %v4429 = vsub.f32 %v4223, %v4373
      %v4430 = vsub.f32 %v4225, %v4410
      %v4431 = vsub.f32 %v4229, %v4373
      %v4432 = vsub.f32 %v4231, %v4410
      %v4433 = vsub.f32 %v4233, %v4373
      %v4434 = vsub.f32 %v4235, %v4410
      %v4435 = vsub.f32 %v4239, %v4373
      %v4436 = vsub.f32 %v4241, %v4410
      %v4437 = vsub.f32 %v4243, %v4373
      %v4438 = vsub.f32 %v4245, %v4410
      %v4439 = vsub.f32 %v4249, %v4373
      %v4440 = vsub.f32 %v4251, %v4410
      %v4441 = vsub.f32 %v4253, %v4373
      %v4442 = vsub.f32 %v4255, %v4410
      %v4443 = vsub.f32 %v4259, %v4373
      %v4444 = vsub.f32 %v4261, %v4410
      %v4445 = vsub.f32 %v4263, %v4373
      %v4446 = vsub.f32 %v4265, %v4410
      %v4447 = vsub.f32 %v4269, %v4373
      %v4448 = vsub.f32 %v4271, %v4410
      %v4449 = vsub.f32 %v4273, %v4373
      %v4450 = vsub.f32 %v4275, %v4410
      %v4451 = vsub.f32 %v4279, %v4373
      %v4452 = vsub.f32 %v4281, %v4410
      %v4453 = vsub.f32 %v4283, %v4373
      %v4454 = vsub.f32 %v4285, %v4410
      %v4455 = vsub.f32 %v4289, %v4373
      %v4456 = vsub.f32 %v4291, %v4410
      %v4457 = vsub.f32 %v4293, %v4373
      %v4458 = vsub.f32 %v4295, %v4410
      %v4459 = vsub.f32 %v4299, %v4373
      %v4460 = vsub.f32 %v4301, %v4410
      %v4461 = vsub.f32 %v4303, %v4373
      %v4462 = vsub.f32 %v4305, %v4410
      %v4463 = vsub.f32 %v4309, %v4373
      %v4464 = vsub.f32 %v4311, %v4410
      %v4465 = vsub.f32 %v4313, %v4373
      %v4466 = vsub.f32 %v4315, %v4410
      %v4467 = vsub.f32 %v4319, %v4373
      %v4468 = vsub.f32 %v4321, %v4410
      %v4469 = vsub.f32 %v4323, %v4373
      %v4470 = vsub.f32 %v4325, %v4410
      %v4471 = vsub.f32 %v4329, %v4373
      %v4472 = vsub.f32 %v4331, %v4410
      %v4473 = vsub.f32 %v4333, %v4373
      %v4474 = vsub.f32 %v4335, %v4410
      %v4475 = vmul.f32 %v4411, 1.442695
      %v4476 = vpow.pop %v4475
      %v4477 = vmul.f32 %v4412, 1.442695
      %v4478 = vpow.pop %v4477
      %v4479 = vmul.f32 %v4413, 1.442695
      %v4480 = vpow.pop %v4479
      %v4481 = vmul.f32 %v4414, 1.442695
      %v4482 = vpow.pop %v4481
      %v4483 = vmul.f32 %v4415, 1.442695
      %v4484 = vpow.pop %v4483
      %v4485 = vmul.f32 %v4416, 1.442695
      %v4486 = vpow.pop %v4485
      %v4487 = vmul.f32 %v4417, 1.442695
      %v4488 = vpow.pop %v4487
      %v4489 = vmul.f32 %v4418, 1.442695
      %v4490 = vpow.pop %v4489
      %v4491 = vmul.f32 %v4419, 1.442695
      %v4492 = vpow.pop %v4491
      %v4493 = vmul.f32 %v4420, 1.442695
      %v4494 = vpow.pop %v4493
      %v4495 = vmul.f32 %v4421, 1.442695
      %v4496 = vpow.pop %v4495
      %v4497 = vmul.f32 %v4422, 1.442695
      %v4498 = vpow.pop %v4497
      %v4499 = vmul.f32 %v4423, 1.442695
      %v4500 = vpow.pop %v4499
      %v4501 = vmul.f32 %v4424, 1.442695
      %v4502 = vpow.pop %v4501
      %v4503 = vmul.f32 %v4425, 1.442695
      %v4504 = vpow.pop %v4503
      %v4505 = vmul.f32 %v4426, 1.442695
      %v4506 = vpow.pop %v4505
      %v4507 = vmul.f32 %v4427, 1.442695
      %v4508 = vpow.pop %v4507
      %v4509 = vmul.f32 %v4428, 1.442695
      %v4510 = vpow.pop %v4509
      %v4511 = vmul.f32 %v4429, 1.442695
      %v4512 = vpow.pop %v4511
      %v4513 = vmul.f32 %v4430, 1.442695
      %v4514 = vpow.pop %v4513
      %v4515 = vmul.f32 %v4431, 1.442695
      %v4516 = vpow.pop %v4515
      %v4517 = vmul.f32 %v4432, 1.442695
      %v4518 = vpow.pop %v4517
      %v4519 = vmul.f32 %v4433, 1.442695
      %v4520 = vpow.pop %v4519
      %v4521 = vmul.f32 %v4434, 1.442695
      %v4522 = vpow.pop %v4521
      %v4523 = vmul.f32 %v4435, 1.442695
      %v4524 = vpow.pop %v4523
      %v4525 = vmul.f32 %v4436, 1.442695
      %v4526 = vpow.pop %v4525
      %v4527 = vmul.f32 %v4437, 1.442695
      %v4528 = vpow.pop %v4527
      %v4529 = vmul.f32 %v4438, 1.442695
      %v4530 = vpow.pop %v4529
      %v4531 = vmul.f32 %v4439, 1.442695
      %v4532 = vpow.pop %v4531
      %v4533 = vmul.f32 %v4440, 1.442695
      %v4534 = vpow.pop %v4533
      %v4535 = vmul.f32 %v4441, 1.442695
      %v4536 = vpow.pop %v4535
      %v4537 = vmul.f32 %v4442, 1.442695
      %v4538 = vpow.pop %v4537
      %v4539 = vmul.f32 %v4443, 1.442695
      %v4540 = vpow.pop %v4539
      %v4541 = vmul.f32 %v4444, 1.442695
      %v4542 = vpow.pop %v4541
      %v4543 = vmul.f32 %v4445, 1.442695
      %v4544 = vpow.pop %v4543
      %v4545 = vmul.f32 %v4446, 1.442695
      %v4546 = vpow.pop %v4545
      %v4547 = vmul.f32 %v4447, 1.442695
      %v4548 = vpow.pop %v4547
      %v4549 = vmul.f32 %v4448, 1.442695
      %v4550 = vpow.pop %v4549
      %v4551 = vmul.f32 %v4449, 1.442695
      %v4552 = vpow.pop %v4551
      %v4553 = vmul.f32 %v4450, 1.442695
      %v4554 = vpow.pop %v4553
      %v4555 = vmul.f32 %v4451, 1.442695
      %v4556 = vpow.pop %v4555
      %v4557 = vmul.f32 %v4452, 1.442695
      %v4558 = vpow.pop %v4557
      %v4559 = vmul.f32 %v4453, 1.442695
      %v4560 = vpow.pop %v4559
      %v4561 = vmul.f32 %v4454, 1.442695
      %v4562 = vpow.pop %v4561
      %v4563 = vmul.f32 %v4455, 1.442695
      %v4564 = vpow.pop %v4563
      %v4565 = vmul.f32 %v4456, 1.442695
      %v4566 = vpow.pop %v4565
      %v4567 = vmul.f32 %v4457, 1.442695
      %v4568 = vpow.pop %v4567
      %v4569 = vmul.f32 %v4458, 1.442695
      %v4570 = vpow.pop %v4569
      %v4571 = vmul.f32 %v4459, 1.442695
      %v4572 = vpow.pop %v4571
      %v4573 = vmul.f32 %v4460, 1.442695
      %v4574 = vpow.pop %v4573
      %v4575 = vmul.f32 %v4461, 1.442695
      %v4576 = vpow.pop %v4575
      %v4577 = vmul.f32 %v4462, 1.442695
      %v4578 = vpow.pop %v4577
      %v4579 = vmul.f32 %v4463, 1.442695
      %v4580 = vpow.pop %v4579
      %v4581 = vmul.f32 %v4464, 1.442695
      %v4582 = vpow.pop %v4581
      %v4583 = vmul.f32 %v4465, 1.442695
      %v4584 = vpow.pop %v4583
      %v4585 = vmul.f32 %v4466, 1.442695
      %v4586 = vpow.pop %v4585
      %v4587 = vmul.f32 %v4467, 1.442695
      %v4588 = vpow.pop %v4587
      %v4589 = vmul.f32 %v4468, 1.442695
      %v4590 = vpow.pop %v4589
      %v4591 = vmul.f32 %v4469, 1.442695
      %v4592 = vpow.pop %v4591
      %v4593 = vmul.f32 %v4470, 1.442695
      %v4594 = vpow.pop %v4593
      %v4595 = vmul.f32 %v4471, 1.442695
      %v4596 = vpow.pop %v4595
      %v4597 = vmul.f32 %v4472, 1.442695
      %v4598 = vpow.pop %v4597
      %v4599 = vmul.f32 %v4473, 1.442695
      %v4600 = vpow.pop %v4599
      %v4601 = vmul.f32 %v4474, 1.442695
      %v4602 = vpow.pop %v4601
      %v4603 = vadd.f32 %v4476, %v4480
      %v4604 = vadd.f32 %v4603, %v4484
      %v4605 = vadd.f32 %v4604, %v4488
      %v4606 = vadd.f32 %v4605, %v4492
      %v4607 = vadd.f32 %v4606, %v4496
      %v4608 = vadd.f32 %v4607, %v4500
      %v4609 = vadd.f32 %v4608, %v4504
      %v4610 = vadd.f32 %v4609, %v4508
      %v4611 = vadd.f32 %v4610, %v4512
      %v4612 = vadd.f32 %v4611, %v4516
      %v4613 = vadd.f32 %v4612, %v4520
      %v4614 = vadd.f32 %v4613, %v4524
      %v4615 = vadd.f32 %v4614, %v4528
      %v4616 = vadd.f32 %v4615, %v4532
      %v4617 = vadd.f32 %v4616, %v4536
      %v4618 = vadd.f32 %v4617, %v4540
      %v4619 = vadd.f32 %v4618, %v4544
      %v4620 = vadd.f32 %v4619, %v4548
      %v4621 = vadd.f32 %v4620, %v4552
      %v4622 = vadd.f32 %v4621, %v4556
      %v4623 = vadd.f32 %v4622, %v4560
      %v4624 = vadd.f32 %v4623, %v4564
      %v4625 = vadd.f32 %v4624, %v4568
      %v4626 = vadd.f32 %v4625, %v4572
      %v4627 = vadd.f32 %v4626, %v4576
      %v4628 = vadd.f32 %v4627, %v4580
      %v4629 = vadd.f32 %v4628, %v4584
      %v4630 = vadd.f32 %v4629, %v4588
      %v4631 = vadd.f32 %v4630, %v4592
      %v4632 = vadd.f32 %v4631, %v4596
      %v4633 = vadd.f32 %v4632, %v4600
      %v4634 = vrot.slane %v4633, 4
      %v4635 = vadd.f32 %v4633, %v4634
      %v4636 = vrot.slane %v4635, 2
      %v4637 = vadd.f32 %v4635, %v4636
      %v4638 = vrot.slane %v4637, 1
      %v4639 = vadd.f32 %v4637, %v4638
      %v4640 = vadd.f32 %v4478, %v4482
      %v4641 = vadd.f32 %v4640, %v4486
      %v4642 = vadd.f32 %v4641, %v4490
      %v4643 = vadd.f32 %v4642, %v4494
      %v4644 = vadd.f32 %v4643, %v4498
      %v4645 = vadd.f32 %v4644, %v4502
      %v4646 = vadd.f32 %v4645, %v4506
      %v4647 = vadd.f32 %v4646, %v4510
      %v4648 = vadd.f32 %v4647, %v4514
      %v4649 = vadd.f32 %v4648, %v4518
      %v4650 = vadd.f32 %v4649, %v4522
      %v4651 = vadd.f32 %v4650, %v4526
      %v4652 = vadd.f32 %v4651, %v4530
      %v4653 = vadd.f32 %v4652, %v4534
      %v4654 = vadd.f32 %v4653, %v4538
      %v4655 = vadd.f32 %v4654, %v4542
      %v4656 = vadd.f32 %v4655, %v4546
      %v4657 = vadd.f32 %v4656, %v4550
      %v4658 = vadd.f32 %v4657, %v4554
      %v4659 = vadd.f32 %v4658, %v4558
      %v4660 = vadd.f32 %v4659, %v4562
      %v4661 = vadd.f32 %v4660, %v4566
      %v4662 = vadd.f32 %v4661, %v4570
      %v4663 = vadd.f32 %v4662, %v4574
      %v4664 = vadd.f32 %v4663, %v4578
      %v4665 = vadd.f32 %v4664, %v4582
      %v4666 = vadd.f32 %v4665, %v4586
      %v4667 = vadd.f32 %v4666, %v4590
      %v4668 = vadd.f32 %v4667, %v4594
      %v4669 = vadd.f32 %v4668, %v4598
      %v4670 = vadd.f32 %v4669, %v4602
      %v4671 = vrot.slane %v4670, 4
      %v4672 = vadd.f32 %v4670, %v4671
      %v4673 = vrot.slane %v4672, 2
      %v4674 = vadd.f32 %v4672, %v4673
      %v4675 = vrot.slane %v4674, 1
      %v4676 = vadd.f32 %v4674, %v4675
      %v4677 = vpack.c.bf16 %v4480, %v4476
      %v4678 = vpack.c.bf16 %v4482, %v4478
      %v4679 = vpack.c.bf16 %v4488, %v4484
      %v4680 = vpack.c.bf16 %v4490, %v4486
      %v4681 = vpack.c.bf16 %v4496, %v4492
      %v4682 = vpack.c.bf16 %v4498, %v4494
      %v4683 = vpack.c.bf16 %v4504, %v4500
      %v4684 = vpack.c.bf16 %v4506, %v4502
      %v4685 = vpack.c.bf16 %v4512, %v4508
      %v4686 = vpack.c.bf16 %v4514, %v4510
      %v4687 = vpack.c.bf16 %v4520, %v4516
      %v4688 = vpack.c.bf16 %v4522, %v4518
      %v4689 = vpack.c.bf16 %v4528, %v4524
      %v4690 = vpack.c.bf16 %v4530, %v4526
      %v4691 = vpack.c.bf16 %v4536, %v4532
      %v4692 = vpack.c.bf16 %v4538, %v4534
      %v4693 = vpack.c.bf16 %v4544, %v4540
      %v4694 = vpack.c.bf16 %v4546, %v4542
      %v4695 = vpack.c.bf16 %v4552, %v4548
      %v4696 = vpack.c.bf16 %v4554, %v4550
      %v4697 = vpack.c.bf16 %v4560, %v4556
      %v4698 = vpack.c.bf16 %v4562, %v4558
      %v4699 = vpack.c.bf16 %v4568, %v4564
      %v4700 = vpack.c.bf16 %v4570, %v4566
      %v4701 = vpack.c.bf16 %v4576, %v4572
      %v4702 = vpack.c.bf16 %v4578, %v4574
      %v4703 = vpack.c.bf16 %v4584, %v4580
      %v4704 = vpack.c.bf16 %v4586, %v4582
      %v4705 = vpack.c.bf16 %v4592, %v4588
      %v4706 = vpack.c.bf16 %v4594, %v4590
      %v4707 = vpack.c.bf16 %v4600, %v4596
      %v4708 = vpack.c.bf16 %v4602, %v4598
      %4709 = vmatprep.subr.bf16.mxu0 %v4692
      %4710 = vmatpush1.bf16.msra.mxu0 %v4691
      %4711 = vmatprep.subr.bf16.mxu0 %v4690
      %4712 = vmatpush1.bf16.msra.mxu0 %v4689
      %4713 = vmatprep.subr.bf16.mxu0 %v4688
      %4714 = vmatpush1.bf16.msra.mxu0 %v4687
      %4715 = vmatprep.subr.bf16.mxu0 %v4686
      %4716 = vmatpush1.bf16.msra.mxu0 %v4685
      %4717 = vmatprep.subr.bf16.mxu0 %v4684
      %4718 = vmatpush1.bf16.msra.mxu0 %v4683
      %4719 = vmatprep.subr.bf16.mxu0 %v4682
      %4720 = vmatpush1.bf16.msra.mxu0 %v4681
      %4721 = vmatprep.subr.bf16.mxu0 %v4680
      %4722 = vmatpush1.bf16.msra.mxu0 %v4679
      %4723 = vmatprep.subr.bf16.mxu0 %v4678
      %4724 = vmatpush1.bf16.msra.mxu0 %v4677
      %4725 = vmatprep.subr.bf16.mxu0 %v4708
      %4726 = vmatpush2.bf16.msra.mxu0 %v4707
      %4727 = vmatprep.subr.bf16.mxu0 %v4706
      %4728 = vmatpush2.bf16.msra.mxu0 %v4705
      %4729 = vmatprep.subr.bf16.mxu0 %v4704
      %4730 = vmatpush2.bf16.msra.mxu0 %v4703
      %4731 = vmatprep.subr.bf16.mxu0 %v4702
      %4732 = vmatpush2.bf16.msra.mxu0 %v4701
      %4733 = vmatprep.subr.bf16.mxu0 %v4700
      %4734 = vmatpush2.bf16.msra.mxu0 %v4699
      %4735 = vmatprep.subr.bf16.mxu0 %v4698
      %4736 = vmatpush2.bf16.msra.mxu0 %v4697
      %4737 = vmatprep.subr.bf16.mxu0 %v4696
      %4738 = vmatpush2.bf16.msra.mxu0 %v4695
      %4739 = vmatprep.subr.bf16.mxu0 %v4694
      %4740 = vmatpush2.bf16.msra.mxu0 %v4693
      %4741 = vmatprep.mubr.bf16.mxu0 %v4057
      %4742 = vmatmul.mubr.bf16.gmra.mxu0 %v4056
      %v4743 = vpop.f32.mrf.mxu0
      %v4744 = vadd.f32 0.0, %v4743
      %v4745 = vpop.f32.mrf.mxu0
      %v4746 = vadd.f32 0.0, %v4745
      %v4747 = vpop.f32.mrf.mxu0
      %v4748 = vpop.f32.mrf.mxu0
      %4749 = vdwg.mxu0
      %v4750 = vrcp.pop %v4639
      %v4751 = vrcp.pop %v4676
      %v4752 = vmul.f32 %v4744, %v4750
      %v4753 = vmul.f32 %v4746, %v4751
      %s4754 = scalar_lea.vmem [#allocation5], 48
      %4755 = vst [vmem:[%s4754] sm:$0xff] %v4752
      %4756 = vst [vmem:[%s4754 + $0x8] sm:$0xff] %v4753
      %v4757 = vld [vmem:[#allocation5] sm:$0xff]
      %v4758 = vld [vmem:[#allocation5 + $0x8] sm:$0xff]
      %v4759 = vld [vmem:[#allocation5 + $0x10] sm:$0xff]
      %v4760 = vld [vmem:[#allocation5 + $0x18] sm:$0xff]
      %v4761 = vld [vmem:[#allocation5 + $0x20] sm:$0xff]
      %v4762 = vld [vmem:[#allocation5 + $0x28] sm:$0xff]
      %v4763 = vld [vmem:[#allocation5 + $0x30] sm:$0xff]
      %v4764 = vld [vmem:[#allocation5 + $0x38] sm:$0xff]
      %v4765 = vld [vmem:[%s9] sm:$0xf]
      %v4766 = vld [vmem:[%s9 + $0x4] sm:$0xf]
      %v4767 = vld [vmem:[%s9 + $0x8] sm:$0xf]
      %v4768 = vld [vmem:[%s9 + $0xc] sm:$0xf]
      %v4769 = vld [vmem:[%s9 + $0x10] sm:$0xf]
      %v4770 = vld [vmem:[%s9 + $0x14] sm:$0xf]
      %v4771 = vld [vmem:[%s9 + $0x18] sm:$0xf]
      %v4772 = vld [vmem:[%s9 + $0x1c] sm:$0xf]
      %v4773 = vpack.c.bf16 %v4759, %v4757
      %v4774 = vpack.c.bf16 %v4760, %v4758
      %v4775 = vpack.c.bf16 %v4763, %v4761
      %v4776 = vpack.c.bf16 %v4764, %v4762
      %v4777 = vld [vmem:[%s10] sm:$0xff]
      %v4778 = vld [vmem:[%s10 + $0x8] sm:$0xff]
      %v4779 = vld [vmem:[%s10 + $0x10] sm:$0xff]
      %v4780 = vld [vmem:[%s10 + $0x18] sm:$0xff]
      %v4781 = vld [vmem:[%s10 + $0x20] sm:$0xff]
      %v4782 = vld [vmem:[%s10 + $0x28] sm:$0xff]
      %v4783 = vld [vmem:[%s10 + $0x30] sm:$0xff]
      %v4784 = vld [vmem:[%s10 + $0x38] sm:$0xff]
      %4786 = vset.pattern.permute.xlu0 0
      %4787 = vperm.xlu0 %4786, %v4777
      %v4788 = vpop.permute.xlu0 %4787
      %4791 = vset.pattern.permute.xlu0 0
      %4792 = vperm.xlu0 %4791, %v4778
      %v4793 = vpop.permute.xlu0 %4792
      %4796 = vset.pattern.permute.xlu0 0
      %4797 = vperm.xlu0 %4796, %v4779
      %v4798 = vpop.permute.xlu0 %4797
      %4801 = vset.pattern.permute.xlu0 0
      %4802 = vperm.xlu0 %4801, %v4780
      %v4803 = vpop.permute.xlu0 %4802
      %4806 = vset.pattern.permute.xlu0 0
      %4807 = vperm.xlu0 %4806, %v4781
      %v4808 = vpop.permute.xlu0 %4807
      %4811 = vset.pattern.permute.xlu0 0
      %4812 = vperm.xlu0 %4811, %v4782
      %v4813 = vpop.permute.xlu0 %4812
      %4816 = vset.pattern.permute.xlu0 0
      %4817 = vperm.xlu0 %4816, %v4783
      %v4818 = vpop.permute.xlu0 %4817
      %4821 = vset.pattern.permute.xlu0 0
      %4822 = vperm.xlu0 %4821, %v4784
      %v4823 = vpop.permute.xlu0 %4822
      %v4833 = vunpack.c.l.b16 %v4765
      %v4834 = vunpack.c.l.b16 %v4766
      %v4835 = vunpack.c.l.b16 %v4767
      %v4836 = vunpack.c.l.b16 %v4768
      %v4837 = vunpack.c.l.b16 %v4769
      %v4838 = vunpack.c.l.b16 %v4770
      %v4839 = vunpack.c.l.b16 %v4771
      %v4840 = vunpack.c.l.b16 %v4772
      %v4841 = vpack.c.b16 %v4834, %v4833
      %v4842 = vpack.c.b16 %v4836, %v4835
      %v4843 = vpack.c.b16 %v4838, %v4837
      %v4844 = vpack.c.b16 %v4840, %v4839
      %v4846 = vsel %vm703, %v4841, 0
      %v4849 = vsel %vm703, %v4842, 0
      %v4852 = vsel %vm703, %v4843, 0
      %v4855 = vsel %vm703, %v4844, 0
      %4857 = vmatprep.subr.bf16.mxu0 0
      %4858 = vmatpush1.bf16.msra.mxu0 0
      %4859 = vmatprep.subr.bf16.mxu0 0
      %4860 = vmatpush1.bf16.msra.mxu0 0
      %4861 = vmatprep.subr.bf16.mxu0 0
      %4862 = vmatpush1.bf16.msra.mxu0 0
      %4863 = vmatprep.subr.bf16.mxu0 0
      %4864 = vmatpush1.bf16.msra.mxu0 0
      %4865 = vmatprep.subr.bf16.mxu0 0
      %4866 = vmatpush1.bf16.msra.mxu0 0
      %4867 = vmatprep.subr.bf16.mxu0 0
      %4868 = vmatpush1.bf16.msra.mxu0 0
      %4869 = vmatprep.subr.bf16.mxu0 %v4776
      %4870 = vmatpush1.bf16.msra.mxu0 %v4775
      %4871 = vmatprep.subr.bf16.mxu0 %v4774
      %4872 = vmatpush1.bf16.msra.mxu0 %v4773
      %4873 = vmatprep.subr.bf16.mxu0 0
      %4874 = vmatpush2.bf16.msra.mxu0 0
      %4875 = vmatprep.subr.bf16.mxu0 0
      %4876 = vmatpush2.bf16.msra.mxu0 0
      %4877 = vmatprep.subr.bf16.mxu0 0
      %4878 = vmatpush2.bf16.msra.mxu0 0
      %4879 = vmatprep.subr.bf16.mxu0 0
      %4880 = vmatpush2.bf16.msra.mxu0 0
      %4881 = vmatprep.subr.bf16.mxu0 0
      %4882 = vmatpush2.bf16.msra.mxu0 0
      %4883 = vmatprep.subr.bf16.mxu0 0
      %4884 = vmatpush2.bf16.msra.mxu0 0
      %4885 = vmatprep.subr.bf16.mxu0 0
      %4886 = vmatpush2.bf16.msra.mxu0 0
      %4887 = vmatprep.subr.bf16.mxu0 0
      %4888 = vmatpush2.bf16.msra.mxu0 0
      %4889 = vmatprep.mubr.bf16.mxu0 0
      %4890 = vmatmul.mubr.bf16.gmra.mxu0 %v4846
      %v4891 = vpop.f32.mrf.mxu0
      %v4892 = vadd.f32 %v4788, %v4891
      %v4893 = vpop.f32.mrf.mxu0
      %v4894 = vadd.f32 %v4788, %v4893
      %v4895 = vpop.f32.mrf.mxu0
      %v4896 = vadd.f32 %v4793, %v4895
      %v4897 = vpop.f32.mrf.mxu0
      %v4898 = vadd.f32 %v4793, %v4897
      %4899 = vmatprep.mubr.bf16.mxu0 0
      %4900 = vmatmul.mubr.bf16.gmra.mxu0 %v4849
      %v4901 = vpop.f32.mrf.mxu0
      %v4902 = vadd.f32 %v4798, %v4901
      %v4903 = vpop.f32.mrf.mxu0
      %v4904 = vadd.f32 %v4798, %v4903
      %v4905 = vpop.f32.mrf.mxu0
      %v4906 = vadd.f32 %v4803, %v4905
      %v4907 = vpop.f32.mrf.mxu0
      %v4908 = vadd.f32 %v4803, %v4907
      %4909 = vmatprep.mubr.bf16.mxu0 0
      %4910 = vmatmul.mubr.bf16.gmra.mxu0 %v4852
      %v4911 = vpop.f32.mrf.mxu0
      %v4912 = vadd.f32 %v4808, %v4911
      %v4913 = vpop.f32.mrf.mxu0
      %v4914 = vadd.f32 %v4808, %v4913
      %v4915 = vpop.f32.mrf.mxu0
      %v4916 = vadd.f32 %v4813, %v4915
      %v4917 = vpop.f32.mrf.mxu0
      %v4918 = vadd.f32 %v4813, %v4917
      %4919 = vmatprep.mubr.bf16.mxu0 0
      %4920 = vmatmul.mubr.bf16.gmra.mxu0 %v4855
      %v4921 = vpop.f32.mrf.mxu0
      %v4922 = vadd.f32 %v4818, %v4921
      %v4923 = vpop.f32.mrf.mxu0
      %v4924 = vadd.f32 %v4818, %v4923
      %v4925 = vpop.f32.mrf.mxu0
      %v4926 = vadd.f32 %v4823, %v4925
      %v4927 = vpop.f32.mrf.mxu0
      %v4928 = vadd.f32 %v4823, %v4927
      %4929 = vdwg.mxu0
      %vm4930 = vcmp.ge.f32.partialorder %v4892, 0.0
      %vm4931 = vcmp.ge.f32.partialorder %v4894, 0.0
      %vm4932 = vcmp.ge.f32.partialorder %v4896, 0.0
      %vm4933 = vcmp.ge.f32.partialorder %v4898, 0.0
      %vm4934 = vcmp.ge.f32.partialorder %v4902, 0.0
      %vm4935 = vcmp.ge.f32.partialorder %v4904, 0.0
      %vm4936 = vcmp.ge.f32.partialorder %v4906, 0.0
      %vm4937 = vcmp.ge.f32.partialorder %v4908, 0.0
      %vm4938 = vcmp.ge.f32.partialorder %v4912, 0.0
      %vm4939 = vcmp.ge.f32.partialorder %v4914, 0.0
      %vm4940 = vcmp.ge.f32.partialorder %v4916, 0.0
      %vm4941 = vcmp.ge.f32.partialorder %v4918, 0.0
      %vm4942 = vcmp.ge.f32.partialorder %v4922, 0.0
      %vm4943 = vcmp.ge.f32.partialorder %v4924, 0.0
      %vm4944 = vcmp.ge.f32.partialorder %v4926, 0.0
      %vm4945 = vcmp.ge.f32.partialorder %v4928, 0.0
      %v4946 = vmul.f32 %v4892, 0.01
      %v4947 = vmul.f32 %v4894, 0.01
      %v4948 = vmul.f32 %v4896, 0.01
      %v4949 = vmul.f32 %v4898, 0.01
      %v4950 = vmul.f32 %v4902, 0.01
      %v4951 = vmul.f32 %v4904, 0.01
      %v4952 = vmul.f32 %v4906, 0.01
      %v4953 = vmul.f32 %v4908, 0.01
      %v4954 = vmul.f32 %v4912, 0.01
      %v4955 = vmul.f32 %v4914, 0.01
      %v4956 = vmul.f32 %v4916, 0.01
      %v4957 = vmul.f32 %v4918, 0.01
      %v4958 = vmul.f32 %v4922, 0.01
      %v4959 = vmul.f32 %v4924, 0.01
      %v4960 = vmul.f32 %v4926, 0.01
      %v4961 = vmul.f32 %v4928, 0.01
      %v4962 = vsel %vm4930, %v4892, %v4946
      %v4963 = vsel %vm4931, %v4894, %v4947
      %v4964 = vsel %vm4932, %v4896, %v4948
      %v4965 = vsel %vm4933, %v4898, %v4949
      %v4966 = vsel %vm4934, %v4902, %v4950
      %v4967 = vsel %vm4935, %v4904, %v4951
      %v4968 = vsel %vm4936, %v4906, %v4952
      %v4969 = vsel %vm4937, %v4908, %v4953
      %v4970 = vsel %vm4938, %v4912, %v4954
      %v4971 = vsel %vm4939, %v4914, %v4955
      %v4972 = vsel %vm4940, %v4916, %v4956
      %v4973 = vsel %vm4941, %v4918, %v4957
      %v4974 = vsel %vm4942, %v4922, %v4958
      %v4975 = vsel %vm4943, %v4924, %v4959
      %v4976 = vsel %vm4944, %v4926, %v4960
      %v4977 = vsel %vm4945, %v4928, %v4961
      %v4978 = vld [vmem:[%s11] sm:$0xf]
      %v4979 = vld [vmem:[%s11 + $0x4] sm:$0xf]
      %v4980 = vld [vmem:[%s11 + $0x8] sm:$0xf]
      %v4981 = vld [vmem:[%s11 + $0xc] sm:$0xf]
      %v4982 = vpack.c.bf16 %v4964, %v4962
      %v4983 = vpack.c.bf16 %v4965, %v4963
      %v4984 = vpack.c.bf16 %v4968, %v4966
      %v4985 = vpack.c.bf16 %v4969, %v4967
      %v4986 = vpack.c.bf16 %v4972, %v4970
      %v4987 = vpack.c.bf16 %v4973, %v4971
      %v4988 = vpack.c.bf16 %v4976, %v4974
      %v4989 = vpack.c.bf16 %v4977, %v4975
      %v4990 = vld [vmem:[%s12] sm:$0xff]
      %v4991 = vld [vmem:[%s12 + $0x8] sm:$0xff]
      %v4992 = vld [vmem:[%s12 + $0x10] sm:$0xff]
      %v4993 = vld [vmem:[%s12 + $0x18] sm:$0xff]
      %4995 = vset.pattern.permute.xlu0 0
      %4996 = vperm.xlu0 %4995, %v4990
      %v4997 = vpop.permute.xlu0 %4996
      %5000 = vset.pattern.permute.xlu0 0
      %5001 = vperm.xlu0 %5000, %v4991
      %v5002 = vpop.permute.xlu0 %5001
      %5005 = vset.pattern.permute.xlu0 0
      %5006 = vperm.xlu0 %5005, %v4992
      %v5007 = vpop.permute.xlu0 %5006
      %5010 = vset.pattern.permute.xlu0 0
      %5011 = vperm.xlu0 %5010, %v4993
      %v5012 = vpop.permute.xlu0 %5011
      %v5018 = vunpack.c.l.b16 %v4978
      %v5019 = vunpack.c.l.b16 %v4979
      %v5020 = vunpack.c.l.b16 %v4980
      %v5021 = vunpack.c.l.b16 %v4981
      %v5022 = vpack.c.b16 %v5019, %v5018
      %v5023 = vpack.c.b16 %v5021, %v5020
      %v5025 = vsel %vm883, %v5022, 0
      %v5028 = vsel %vm883, %v5023, 0
      %5030 = vmatprep.subr.bf16.mxu0 0
      %5031 = vmatpush1.bf16.msra.mxu0 0
      %5032 = vmatprep.subr.bf16.mxu0 0
      %5033 = vmatpush1.bf16.msra.mxu0 0
      %5034 = vmatprep.subr.bf16.mxu0 0
      %5035 = vmatpush1.bf16.msra.mxu0 0
      %5036 = vmatprep.subr.bf16.mxu0 0
      %5037 = vmatpush1.bf16.msra.mxu0 0
      %5038 = vmatprep.subr.bf16.mxu0 %v4989
      %5039 = vmatpush1.bf16.msra.mxu0 %v4988
      %5040 = vmatprep.subr.bf16.mxu0 %v4987
      %5041 = vmatpush1.bf16.msra.mxu0 %v4986
      %5042 = vmatprep.subr.bf16.mxu0 %v4985
      %5043 = vmatpush1.bf16.msra.mxu0 %v4984
      %5044 = vmatprep.subr.bf16.mxu0 %v4983
      %5045 = vmatpush1.bf16.msra.mxu0 %v4982
      %5046 = vmatprep.subr.bf16.mxu0 0
      %5047 = vmatpush2.bf16.msra.mxu0 0
      %5048 = vmatprep.subr.bf16.mxu0 0
      %5049 = vmatpush2.bf16.msra.mxu0 0
      %5050 = vmatprep.subr.bf16.mxu0 0
      %5051 = vmatpush2.bf16.msra.mxu0 0
      %5052 = vmatprep.subr.bf16.mxu0 0
      %5053 = vmatpush2.bf16.msra.mxu0 0
      %5054 = vmatprep.subr.bf16.mxu0 0
      %5055 = vmatpush2.bf16.msra.mxu0 0
      %5056 = vmatprep.subr.bf16.mxu0 0
      %5057 = vmatpush2.bf16.msra.mxu0 0
      %5058 = vmatprep.subr.bf16.mxu0 0
      %5059 = vmatpush2.bf16.msra.mxu0 0
      %5060 = vmatprep.subr.bf16.mxu0 0
      %5061 = vmatpush2.bf16.msra.mxu0 0
      %5062 = vmatprep.mubr.bf16.mxu0 0
      %5063 = vmatmul.mubr.bf16.gmra.mxu0 %v5025
      %v5064 = vpop.f32.mrf.mxu0
      %v5065 = vadd.f32 %v4997, %v5064
      %v5066 = vpop.f32.mrf.mxu0
      %v5067 = vadd.f32 %v4997, %v5066
      %v5068 = vpop.f32.mrf.mxu0
      %v5069 = vadd.f32 %v5002, %v5068
      %v5070 = vpop.f32.mrf.mxu0
      %v5071 = vadd.f32 %v5002, %v5070
      %5072 = vmatprep.mubr.bf16.mxu0 0
      %5073 = vmatmul.mubr.bf16.gmra.mxu0 %v5028
      %v5074 = vpop.f32.mrf.mxu0
      %v5075 = vadd.f32 %v5007, %v5074
      %v5076 = vpop.f32.mrf.mxu0
      %v5077 = vadd.f32 %v5007, %v5076
      %v5078 = vpop.f32.mrf.mxu0
      %v5079 = vadd.f32 %v5012, %v5078
      %v5080 = vpop.f32.mrf.mxu0
      %v5081 = vadd.f32 %v5012, %v5080
      %5082 = vdwg.mxu0
      %v5083 = vadd.f32 %v1861, %v5065
      %v5084 = vadd.f32 %v1863, %v5067
      %v5085 = vadd.f32 %v1865, %v5069
      %v5086 = vadd.f32 %v1867, %v5071
      %v5087 = vadd.f32 %v1871, %v5075
      %v5088 = vadd.f32 %v1873, %v5077
      %v5089 = vadd.f32 %v1875, %v5079
      %v5090 = vadd.f32 %v1877, %v5081
      %s5091 = scalar_lea.vmem %s9, 32
      %v5092 = vld [vmem:[%s5091] sm:$0xf]
      %v5093 = vld [vmem:[%s5091 + $0x4] sm:$0xf]
      %v5094 = vld [vmem:[%s5091 + $0x8] sm:$0xf]
      %v5095 = vld [vmem:[%s5091 + $0xc] sm:$0xf]
      %v5096 = vld [vmem:[%s5091 + $0x10] sm:$0xf]
      %v5097 = vld [vmem:[%s5091 + $0x14] sm:$0xf]
      %v5098 = vld [vmem:[%s5091 + $0x18] sm:$0xf]
      %v5099 = vld [vmem:[%s5091 + $0x1c] sm:$0xf]
      %v5100 = vpack.c.bf16 %v5085, %v5083
      %v5101 = vpack.c.bf16 %v5086, %v5084
      %v5102 = vpack.c.bf16 %v5089, %v5087
      %v5103 = vpack.c.bf16 %v5090, %v5088
      %s5104 = scalar_lea.vmem %s10, 64
      %v5105 = vld [vmem:[%s5104] sm:$0xff]
      %v5106 = vld [vmem:[%s5104 + $0x8] sm:$0xff]
      %v5107 = vld [vmem:[%s5104 + $0x10] sm:$0xff]
      %v5108 = vld [vmem:[%s5104 + $0x18] sm:$0xff]
      %v5109 = vld [vmem:[%s5104 + $0x20] sm:$0xff]
      %v5110 = vld [vmem:[%s5104 + $0x28] sm:$0xff]
      %v5111 = vld [vmem:[%s5104 + $0x30] sm:$0xff]
      %v5112 = vld [vmem:[%s5104 + $0x38] sm:$0xff]
      %5114 = vset.pattern.permute.xlu0 0
      %5115 = vperm.xlu0 %5114, %v5105
      %v5116 = vpop.permute.xlu0 %5115
      %5119 = vset.pattern.permute.xlu0 0
      %5120 = vperm.xlu0 %5119, %v5106
      %v5121 = vpop.permute.xlu0 %5120
      %5124 = vset.pattern.permute.xlu0 0
      %5125 = vperm.xlu0 %5124, %v5107
      %v5126 = vpop.permute.xlu0 %5125
      %5129 = vset.pattern.permute.xlu0 0
      %5130 = vperm.xlu0 %5129, %v5108
      %v5131 = vpop.permute.xlu0 %5130
      %5134 = vset.pattern.permute.xlu0 0
      %5135 = vperm.xlu0 %5134, %v5109
      %v5136 = vpop.permute.xlu0 %5135
      %5139 = vset.pattern.permute.xlu0 0
      %5140 = vperm.xlu0 %5139, %v5110
      %v5141 = vpop.permute.xlu0 %5140
      %5144 = vset.pattern.permute.xlu0 0
      %5145 = vperm.xlu0 %5144, %v5111
      %v5146 = vpop.permute.xlu0 %5145
      %5149 = vset.pattern.permute.xlu0 0
      %5150 = vperm.xlu0 %5149, %v5112
      %v5151 = vpop.permute.xlu0 %5150
      %v5161 = vunpack.c.l.b16 %v5092
      %v5162 = vunpack.c.l.b16 %v5093
      %v5163 = vunpack.c.l.b16 %v5094
      %v5164 = vunpack.c.l.b16 %v5095
      %v5165 = vunpack.c.l.b16 %v5096
      %v5166 = vunpack.c.l.b16 %v5097
      %v5167 = vunpack.c.l.b16 %v5098
      %v5168 = vunpack.c.l.b16 %v5099
      %v5169 = vpack.c.b16 %v5162, %v5161
      %v5170 = vpack.c.b16 %v5164, %v5163
      %v5171 = vpack.c.b16 %v5166, %v5165
      %v5172 = vpack.c.b16 %v5168, %v5167
      %v5174 = vsel %vm703, %v5169, 0
      %v5177 = vsel %vm703, %v5170, 0
      %v5180 = vsel %vm703, %v5171, 0
      %v5183 = vsel %vm703, %v5172, 0
      %5185 = vmatprep.subr.bf16.mxu0 0
      %5186 = vmatpush1.bf16.msra.mxu0 0
      %5187 = vmatprep.subr.bf16.mxu0 0
      %5188 = vmatpush1.bf16.msra.mxu0 0
      %5189 = vmatprep.subr.bf16.mxu0 0
      %5190 = vmatpush1.bf16.msra.mxu0 0
      %5191 = vmatprep.subr.bf16.mxu0 0
      %5192 = vmatpush1.bf16.msra.mxu0 0
      %5193 = vmatprep.subr.bf16.mxu0 0
      %5194 = vmatpush1.bf16.msra.mxu0 0
      %5195 = vmatprep.subr.bf16.mxu0 0
      %5196 = vmatpush1.bf16.msra.mxu0 0
      %5197 = vmatprep.subr.bf16.mxu0 %v5103
      %5198 = vmatpush1.bf16.msra.mxu0 %v5102
      %5199 = vmatprep.subr.bf16.mxu0 %v5101
      %5200 = vmatpush1.bf16.msra.mxu0 %v5100
      %5201 = vmatprep.subr.bf16.mxu0 0
      %5202 = vmatpush2.bf16.msra.mxu0 0
      %5203 = vmatprep.subr.bf16.mxu0 0
      %5204 = vmatpush2.bf16.msra.mxu0 0
      %5205 = vmatprep.subr.bf16.mxu0 0
      %5206 = vmatpush2.bf16.msra.mxu0 0
      %5207 = vmatprep.subr.bf16.mxu0 0
      %5208 = vmatpush2.bf16.msra.mxu0 0
      %5209 = vmatprep.subr.bf16.mxu0 0
      %5210 = vmatpush2.bf16.msra.mxu0 0
      %5211 = vmatprep.subr.bf16.mxu0 0
      %5212 = vmatpush2.bf16.msra.mxu0 0
      %5213 = vmatprep.subr.bf16.mxu0 0
      %5214 = vmatpush2.bf16.msra.mxu0 0
      %5215 = vmatprep.subr.bf16.mxu0 0
      %5216 = vmatpush2.bf16.msra.mxu0 0
      %5217 = vmatprep.mubr.bf16.mxu0 0
      %5218 = vmatmul.mubr.bf16.gmra.mxu0 %v5174
      %v5219 = vpop.f32.mrf.mxu0
      %v5220 = vadd.f32 %v5116, %v5219
      %v5221 = vpop.f32.mrf.mxu0
      %v5222 = vadd.f32 %v5116, %v5221
      %v5223 = vpop.f32.mrf.mxu0
      %v5224 = vadd.f32 %v5121, %v5223
      %v5225 = vpop.f32.mrf.mxu0
      %v5226 = vadd.f32 %v5121, %v5225
      %5227 = vmatprep.mubr.bf16.mxu0 0
      %5228 = vmatmul.mubr.bf16.gmra.mxu0 %v5177
      %v5229 = vpop.f32.mrf.mxu0
      %v5230 = vadd.f32 %v5126, %v5229
      %v5231 = vpop.f32.mrf.mxu0
      %v5232 = vadd.f32 %v5126, %v5231
      %v5233 = vpop.f32.mrf.mxu0
      %v5234 = vadd.f32 %v5131, %v5233
      %v5235 = vpop.f32.mrf.mxu0
      %v5236 = vadd.f32 %v5131, %v5235
      %5237 = vmatprep.mubr.bf16.mxu0 0
      %5238 = vmatmul.mubr.bf16.gmra.mxu0 %v5180
      %v5239 = vpop.f32.mrf.mxu0
      %v5240 = vadd.f32 %v5136, %v5239
      %v5241 = vpop.f32.mrf.mxu0
      %v5242 = vadd.f32 %v5136, %v5241
      %v5243 = vpop.f32.mrf.mxu0
      %v5244 = vadd.f32 %v5141, %v5243
      %v5245 = vpop.f32.mrf.mxu0
      %v5246 = vadd.f32 %v5141, %v5245
      %5247 = vmatprep.mubr.bf16.mxu0 0
      %5248 = vmatmul.mubr.bf16.gmra.mxu0 %v5183
      %v5249 = vpop.f32.mrf.mxu0
      %v5250 = vadd.f32 %v5146, %v5249
      %v5251 = vpop.f32.mrf.mxu0
      %v5252 = vadd.f32 %v5146, %v5251
      %v5253 = vpop.f32.mrf.mxu0
      %v5254 = vadd.f32 %v5151, %v5253
      %v5255 = vpop.f32.mrf.mxu0
      %v5256 = vadd.f32 %v5151, %v5255
      %5257 = vdwg.mxu0
      %vm5258 = vcmp.ge.f32.partialorder %v5220, 0.0
      %vm5259 = vcmp.ge.f32.partialorder %v5222, 0.0
      %vm5260 = vcmp.ge.f32.partialorder %v5224, 0.0
      %vm5261 = vcmp.ge.f32.partialorder %v5226, 0.0
      %vm5262 = vcmp.ge.f32.partialorder %v5230, 0.0
      %vm5263 = vcmp.ge.f32.partialorder %v5232, 0.0
      %vm5264 = vcmp.ge.f32.partialorder %v5234, 0.0
      %vm5265 = vcmp.ge.f32.partialorder %v5236, 0.0
      %vm5266 = vcmp.ge.f32.partialorder %v5240, 0.0
      %vm5267 = vcmp.ge.f32.partialorder %v5242, 0.0
      %vm5268 = vcmp.ge.f32.partialorder %v5244, 0.0
      %vm5269 = vcmp.ge.f32.partialorder %v5246, 0.0
      %vm5270 = vcmp.ge.f32.partialorder %v5250, 0.0
      %vm5271 = vcmp.ge.f32.partialorder %v5252, 0.0
      %vm5272 = vcmp.ge.f32.partialorder %v5254, 0.0
      %vm5273 = vcmp.ge.f32.partialorder %v5256, 0.0
      %v5274 = vmul.f32 %v5220, 0.01
      %v5275 = vmul.f32 %v5222, 0.01
      %v5276 = vmul.f32 %v5224, 0.01
      %v5277 = vmul.f32 %v5226, 0.01
      %v5278 = vmul.f32 %v5230, 0.01
      %v5279 = vmul.f32 %v5232, 0.01
      %v5280 = vmul.f32 %v5234, 0.01
      %v5281 = vmul.f32 %v5236, 0.01
      %v5282 = vmul.f32 %v5240, 0.01
      %v5283 = vmul.f32 %v5242, 0.01
      %v5284 = vmul.f32 %v5244, 0.01
      %v5285 = vmul.f32 %v5246, 0.01
      %v5286 = vmul.f32 %v5250, 0.01
      %v5287 = vmul.f32 %v5252, 0.01
      %v5288 = vmul.f32 %v5254, 0.01
      %v5289 = vmul.f32 %v5256, 0.01
      %v5290 = vsel %vm5258, %v5220, %v5274
      %v5291 = vsel %vm5259, %v5222, %v5275
      %v5292 = vsel %vm5260, %v5224, %v5276
      %v5293 = vsel %vm5261, %v5226, %v5277
      %v5294 = vsel %vm5262, %v5230, %v5278
      %v5295 = vsel %vm5263, %v5232, %v5279
      %v5296 = vsel %vm5264, %v5234, %v5280
      %v5297 = vsel %vm5265, %v5236, %v5281
      %v5298 = vsel %vm5266, %v5240, %v5282
      %v5299 = vsel %vm5267, %v5242, %v5283
      %v5300 = vsel %vm5268, %v5244, %v5284
      %v5301 = vsel %vm5269, %v5246, %v5285
      %v5302 = vsel %vm5270, %v5250, %v5286
      %v5303 = vsel %vm5271, %v5252, %v5287
      %v5304 = vsel %vm5272, %v5254, %v5288
      %v5305 = vsel %vm5273, %v5256, %v5289
      %s5306 = scalar_lea.vmem %s11, 16
      %v5307 = vld [vmem:[%s5306] sm:$0xf]
      %v5308 = vld [vmem:[%s5306 + $0x4] sm:$0xf]
      %v5309 = vld [vmem:[%s5306 + $0x8] sm:$0xf]
      %v5310 = vld [vmem:[%s5306 + $0xc] sm:$0xf]
      %v5311 = vpack.c.bf16 %v5292, %v5290
      %v5312 = vpack.c.bf16 %v5293, %v5291
      %v5313 = vpack.c.bf16 %v5296, %v5294
      %v5314 = vpack.c.bf16 %v5297, %v5295
      %v5315 = vpack.c.bf16 %v5300, %v5298
      %v5316 = vpack.c.bf16 %v5301, %v5299
      %v5317 = vpack.c.bf16 %v5304, %v5302
      %v5318 = vpack.c.bf16 %v5305, %v5303
      %s5319 = scalar_lea.vmem %s12, 32
      %v5320 = vld [vmem:[%s5319] sm:$0xff]
      %v5321 = vld [vmem:[%s5319 + $0x8] sm:$0xff]
      %v5322 = vld [vmem:[%s5319 + $0x10] sm:$0xff]
      %v5323 = vld [vmem:[%s5319 + $0x18] sm:$0xff]
      %5325 = vset.pattern.permute.xlu0 0
      %5326 = vperm.xlu0 %5325, %v5320
      %v5327 = vpop.permute.xlu0 %5326
      %5330 = vset.pattern.permute.xlu0 0
      %5331 = vperm.xlu0 %5330, %v5321
      %v5332 = vpop.permute.xlu0 %5331
      %5335 = vset.pattern.permute.xlu0 0
      %5336 = vperm.xlu0 %5335, %v5322
      %v5337 = vpop.permute.xlu0 %5336
      %5340 = vset.pattern.permute.xlu0 0
      %5341 = vperm.xlu0 %5340, %v5323
      %v5342 = vpop.permute.xlu0 %5341
      %v5348 = vunpack.c.l.b16 %v5307
      %v5349 = vunpack.c.l.b16 %v5308
      %v5350 = vunpack.c.l.b16 %v5309
      %v5351 = vunpack.c.l.b16 %v5310
      %v5352 = vpack.c.b16 %v5349, %v5348
      %v5353 = vpack.c.b16 %v5351, %v5350
      %v5355 = vsel %vm883, %v5352, 0
      %v5358 = vsel %vm883, %v5353, 0
      %5360 = vmatprep.subr.bf16.mxu0 0
      %5361 = vmatpush1.bf16.msra.mxu0 0
      %5362 = vmatprep.subr.bf16.mxu0 0
      %5363 = vmatpush1.bf16.msra.mxu0 0
      %5364 = vmatprep.subr.bf16.mxu0 0
      %5365 = vmatpush1.bf16.msra.mxu0 0
      %5366 = vmatprep.subr.bf16.mxu0 0
      %5367 = vmatpush1.bf16.msra.mxu0 0
      %5368 = vmatprep.subr.bf16.mxu0 %v5318
      %5369 = vmatpush1.bf16.msra.mxu0 %v5317
      %5370 = vmatprep.subr.bf16.mxu0 %v5316
      %5371 = vmatpush1.bf16.msra.mxu0 %v5315
      %5372 = vmatprep.subr.bf16.mxu0 %v5314
      %5373 = vmatpush1.bf16.msra.mxu0 %v5313
      %5374 = vmatprep.subr.bf16.mxu0 %v5312
      %5375 = vmatpush1.bf16.msra.mxu0 %v5311
      %5376 = vmatprep.subr.bf16.mxu0 0
      %5377 = vmatpush2.bf16.msra.mxu0 0
      %5378 = vmatprep.subr.bf16.mxu0 0
      %5379 = vmatpush2.bf16.msra.mxu0 0
      %5380 = vmatprep.subr.bf16.mxu0 0
      %5381 = vmatpush2.bf16.msra.mxu0 0
      %5382 = vmatprep.subr.bf16.mxu0 0
      %5383 = vmatpush2.bf16.msra.mxu0 0
      %5384 = vmatprep.subr.bf16.mxu0 0
      %5385 = vmatpush2.bf16.msra.mxu0 0
      %5386 = vmatprep.subr.bf16.mxu0 0
      %5387 = vmatpush2.bf16.msra.mxu0 0
      %5388 = vmatprep.subr.bf16.mxu0 0
      %5389 = vmatpush2.bf16.msra.mxu0 0
      %5390 = vmatprep.subr.bf16.mxu0 0
      %5391 = vmatpush2.bf16.msra.mxu0 0
      %5392 = vmatprep.mubr.bf16.mxu0 0
      %5393 = vmatmul.mubr.bf16.gmra.mxu0 %v5355
      %v5394 = vpop.f32.mrf.mxu0
      %v5395 = vadd.f32 %v5327, %v5394
      %v5396 = vpop.f32.mrf.mxu0
      %v5397 = vadd.f32 %v5327, %v5396
      %v5398 = vpop.f32.mrf.mxu0
      %v5399 = vadd.f32 %v5332, %v5398
      %v5400 = vpop.f32.mrf.mxu0
      %v5401 = vadd.f32 %v5332, %v5400
      %5402 = vmatprep.mubr.bf16.mxu0 0
      %5403 = vmatmul.mubr.bf16.gmra.mxu0 %v5358
      %v5404 = vpop.f32.mrf.mxu0
      %v5405 = vadd.f32 %v5337, %v5404
      %v5406 = vpop.f32.mrf.mxu0
      %v5407 = vadd.f32 %v5337, %v5406
      %v5408 = vpop.f32.mrf.mxu0
      %v5409 = vadd.f32 %v5342, %v5408
      %v5410 = vpop.f32.mrf.mxu0
      %v5411 = vadd.f32 %v5342, %v5410
      %5412 = vdwg.mxu0
      %v5413 = vadd.f32 %v5083, %v5395
      %v5414 = vadd.f32 %v5084, %v5397
      %v5415 = vadd.f32 %v5085, %v5399
      %v5416 = vadd.f32 %v5086, %v5401
      %v5417 = vadd.f32 %v5087, %v5405
      %v5418 = vadd.f32 %v5088, %v5407
      %v5419 = vadd.f32 %v5089, %v5409
      %v5420 = vadd.f32 %v5090, %v5411
      %5421 = vst [vmem:[%s480] sm:$0xff] %v5413
      %5422 = vst [vmem:[%s480 + $0x8] sm:$0xff] %v5414
      %5423 = vst [vmem:[%s480 + $0x10] sm:$0xff] %v5415
      %5424 = vst [vmem:[%s480 + $0x18] sm:$0xff] %v5416
      %5425 = vst [vmem:[%s480 + $0x20] sm:$0xff] %v5417
      %5426 = vst [vmem:[%s480 + $0x28] sm:$0xff] %v5418
      %5427 = vst [vmem:[%s480 + $0x30] sm:$0xff] %v5419
      %5428 = vst [vmem:[%s480 + $0x38] sm:$0xff] %v5420
      %p5429 = scmp.lt.s32.totalorder %s24, 1
      %s5430 = scalar_select %p5429, %s24, 1
      %s5431 = smul.addr %s5430, 8
      %s5432 = smul.addr %s5431, 8
      %s5433 = scalar_lea.vmem %s13, %s5432
      // Predicated region
      $region73: #{attention_forward.1} parent=71 // pred_check
        %p5434 = pneg %p330
      $region74: #{attention_forward.1} parent=71 // pred_check_branch
        %5436 = sbr.rel (%p5434) target = $region76
      $region75: #{attention_forward.1} parent=71 // pred_region
        _
      $region76: #{attention_forward.1} parent=71 // pred_fallthru
        _
    $region72: #{attention_forward.1} parent=5 // pred_fallthru
      _
    %p5437 = scmp.le.s32.totalorder 2, %s19
    // Predicated region
    $region77: #{attention_forward.1} parent=5 // pred_check
      %p5438 = pneg %p5437
    $region78: #{attention_forward.1} parent=5 // pred_check_branch
      %5440 = sbr.rel (%p5438) target = $region80
    $region79: #{attention_forward.1} parent=5 // pred_region
      %s5441 = ssub.s32 %s19, 2
      // Predicated region
      $region81: #{attention_forward.1} parent=79 // pred_check
        %p5442 = pneg %p336
      $region82: #{attention_forward.1} parent=79 // pred_check_branch
        %5444 = sbr.rel (%p5442) target = $region84
      $region83: #{attention_forward.1} parent=79 // pred_region
        %p5445 = scmp.lt.s32.totalorder %s25, 1
        %s5446 = scalar_select %p5445, %s25, 1
        %s5447 = smul.addr %s5446, 8
        %s5448 = smul.addr %s5447, 8
        %s5449 = scalar_lea.vmem %s13, %s5448
      $region84: #{attention_forward.1} parent=79 // pred_fallthru
        _
    $region80: #{attention_forward.1} parent=5 // pred_fallthru
      _
  $region6: #{attention_forward.1} parent=0 // loop_footer
    %s23 = sadd.s32 1, %s19
  $region7: #{attention_forward.1} parent=0 // loop_footer_branch
    %18 = sbr.rel target = $region3
  $region8: #{attention_forward.1} parent=0 // loop_exit
    _

</llo_original>
